<compile_context>
chip_gen: v5e
topology: v5e:2x2
jax: 0.10.0
libtpu: 0.0.40
codegen_flags: <defaults>
</compile_context>

<pallas_src>
import functools
import math

import numpy as np
import jax
import jax.numpy as jnp
from jax.experimental import pallas as pl
from jax.experimental.pallas import tpu as pltpu


# 3x3 tap order shared by the kernel, the mask builder and the weight packer.
_TAPS = tuple((dy, dx) for dy in (-1, 0, 1) for dx in (-1, 0, 1))
_CENTER = 4   # (0, 0) tap index


# ----------------------------------------------------------------------------
# Fused Pallas kernel: upsample + conv_low + conv_high + att_layer + merge.
# One grid step per batch block; all activations stay in VMEM / vregs.
# ----------------------------------------------------------------------------
def _att_merge_fused_kernel(x_low_ref, x_high_ref, masks_ref, up_ref,
                            w_low_ref, b_low_ref,
                            w_high_ref, b_high_ref,
                            w_a1l_ref, w_a1h_ref, b_a1_ref,
                            w_a2d_ref, b_a2d_ref,
                            o_ref, *, H, W, b_blk):
    HW = H * W
    N = b_blk * HW                       # batch folded into the lane axis
    masks = masks_ref[...]               # (8, N) f32, hoisted once

    def conv9(w_ref, x):
        """3x3 conv as 9 accumulating MXU dots (no im2col materialization).

        x: (C, N) f32 activation, batch-folded along lanes.
        w_ref: (9*Cout, C) bf16, tap-major sublane blocks, BN scale pre-folded.
        The host-precomputed border masks give implicit zero padding and also
        zero out any cross-image leakage of the lane roll.
        """
        co = w_ref.shape[0] // 9
        # Center tap: no roll, no mask.
        acc = jnp.dot(w_ref[_CENTER * co:(_CENTER + 1) * co, :],
                      x.astype(jnp.bfloat16),
                      preferred_element_type=jnp.float32)
        mi = 0
        for t, (dy, dx) in enumerate(_TAPS):
            if t == _CENTER:
                continue
            d = dy * W + dx                              # flattened neighbour offset
            shifted = pltpu.roll(x, (-d) % N, axis=1) * masks[mi:mi + 1, :]
            acc += jnp.dot(w_ref[t * co:(t + 1) * co, :],
                           shifted.astype(jnp.bfloat16),
                           preferred_element_type=jnp.float32)
            mi += 1
        return acc

    # conv_low: 3x3 conv + folded BN + ReLU.
    low = jnp.maximum(conv9(w_low_ref, x_low_ref[0]) + b_low_ref[...], 0.0)

    # Bilinear upsample (align_corners=False) as one static bf16 matmul; the
    # matrix is block-diagonal over the b_blk images folded into the lanes.
    x_high_up = jnp.dot(x_high_ref[0].astype(jnp.bfloat16), up_ref[...],
                        preferred_element_type=jnp.float32)        # (cin_high, N)

    # conv_high: 3x3 conv + folded BN + ReLU.
    high = jnp.maximum(conv9(w_high_ref, x_high_up) + b_high_ref[...], 0.0)

    # F.dropout(p=0.2, training=False) -> identity at inference.

    # att conv1 on concat([low, high]) without materialising the concat: the
    # weight was split into its low/high input-channel halves on the host.
    h = jnp.maximum(conv9(w_a1l_ref, low) + conv9(w_a1h_ref, high)
                    + b_a1_ref[...], 0.0)                          # (chalf_p, N)

    # att conv2 with the 2-way softmax folded into a single logit-difference
    # row on the host: d = att[1] - att[0]; softmax(att)[0] = 1 / (1 + exp(d)).
    d = conv9(w_a2d_ref, h) + b_a2d_ref[...]                       # (1, N)
    w0 = pl.reciprocal(1.0 + jnp.exp(d), approx=False)             # exact (EUP)

    o_ref[0] = (high + (low - high) * w0).astype(o_ref.dtype)


def pick_batch_block(B):
    """Images folded into the lane axis per grid step.  Keep >= 2 grid steps
    when possible (both TensorCores on v7x); fold the rest of the batch into
    lanes for wider matmul N and fewer ~0.35 us per-step overheads."""
    if B >= 4 and B % 2 == 0:
        return B // 2
    return 1


def att_merge_forward(params, x_low_nchw, x_high_nchw):
    """x_low: (B, cin_low, H, W), x_high: (B, cin_high, H/s, W/s) -> (B, cout, H, W)."""
    B, cl, H, W = x_low_nchw.shape
    _, ch, Hh, Wh = x_high_nchw.shape
    HW, HhWh = H * W, Hh * Wh
    cout = params["b_low_col"].shape[0]
    chalf_p = params["b_att1_col"].shape[0]
    b_blk = params["masks"].shape[1] // HW          # images folded per grid step
    assert B % b_blk == 0, (B, b_blk)
    n_steps = B // b_blk
    N, Nh = b_blk * HW, b_blk * HhWh
    out_dtype = x_low_nchw.dtype

    # Fold b_blk images into the lane axis: (steps, C, b_blk*HW), image-contiguous
    # lanes (a tiny host-side transpose; everything lane-dense inside the kernel).
    x_low_f = (x_low_nchw.reshape(n_steps, b_blk, cl, HW)
               .transpose(0, 2, 1, 3).reshape(n_steps, cl, N))
    x_high_f = (x_high_nchw.reshape(n_steps, b_blk, ch, HhWh)
                .transpose(0, 2, 1, 3).reshape(n_steps, ch, Nh))

    # Constant operands (masks / upsample matrix / weights): their index maps are
    # grid-invariant, so they need no double buffer (total footprint << 1 MiB).
    # NOTE: if this module runs per layer with the same weights, keeping them
    # resident across calls (cross-pallas_call prefetch) would hide the ~0.3 MB
    # weight DMA; out of scope for this self-contained script.
    const = lambda a: pl.BlockSpec(a.shape, lambda s, _a=a: (0,) * _a.ndim)
    weights = (params["masks"], params["up_block"],
               params["w_low_tap"], params["b_low_col"],
               params["w_high_tap"], params["b_high_col"],
               params["w_att1_low_tap"], params["w_att1_high_tap"],
               params["b_att1_col"],
               params["w_att2_diff_tap"], params["b_att2_diff"])

    flops = n_steps * (2 * ch * Nh * N                 # upsample (block-diag dot)
                       + 2 * cout * 9 * cl * N         # conv_low
                       + 2 * cout * 9 * ch * N         # conv_high
                       + 2 * chalf_p * 9 * (2 * cout) * N   # att conv1
                       + 2 * 1 * 9 * chalf_p * N)      # att conv2 (logit diff)
    bytes_accessed = int(sum(math.prod(a.shape) * a.dtype.itemsize
                             for a in (x_low_f, x_high_f) + weights)
                         + B * cout * HW * jnp.dtype(out_dtype).itemsize)

    out = pl.pallas_call(
        functools.partial(_att_merge_fused_kernel, H=H, W=W, b_blk=b_blk),
        out_shape=jax.ShapeDtypeStruct((n_steps, cout, N), out_dtype),
        grid=(n_steps,),
        in_specs=[pl.BlockSpec((1, cl, N), lambda s: (s, 0, 0)),
                  pl.BlockSpec((1, ch, Nh), lambda s: (s, 0, 0))]
                 + [const(w) for w in weights],
        out_specs=pl.BlockSpec((1, cout, N), lambda s: (s, 0, 0)),
        compiler_params=pltpu.CompilerParams(
            dimension_semantics=("parallel",)),        # >=2 steps -> both v7x TCs
        cost_estimate=pl.CostEstimate(flops=int(flops),
                                      transcendentals=int(B * HW),
                                      bytes_accessed=bytes_accessed),
    )(x_low_f, x_high_f, *weights)

    # Unfold the lane-folded batch back to NCHW (pure reshape + tiny transpose).
    return (out.reshape(n_steps, cout, b_blk, HW)
            .transpose(0, 2, 1, 3).reshape(B, cout, H, W))


# ----------------------------------------------------------------------------
# Parameter construction (deterministic, synthetic) + host-side weight prep.
# ----------------------------------------------------------------------------
def _fold_bn(key, c):
    """Random eval-mode BatchNorm folded to per-channel (scale, bias)."""
    kg, kb, km, kv = jax.random.split(key, 4)
    gamma = jax.random.uniform(kg, (c,), jnp.float32, 0.5, 1.5)
    beta = jax.random.normal(kb, (c,), jnp.float32) * 0.1
    mean = jax.random.normal(km, (c,), jnp.float32) * 0.1
    var = jax.random.uniform(kv, (c,), jnp.float32, 0.5, 1.5)
    scale = gamma / jnp.sqrt(var + 1e-5)
    return scale, beta - mean * scale


def make_raw_params(key, cin_low, cin_high, cout):
    """Module parameters in standard form (HWIO conv weights, BN as scale/bias)."""
    ks = jax.random.split(key, 8)
    chalf = cout // 2
    p = {}
    p["w_low"] = jax.random.normal(ks[0], (3, 3, cin_low, cout), jnp.float32) * 0.1
    p["s_low"], p["b_low"] = _fold_bn(ks[1], cout)
    p["w_high"] = jax.random.normal(ks[2], (3, 3, cin_high, cout), jnp.float32) * 0.1
    p["s_high"], p["b_high"] = _fold_bn(ks[3], cout)
    p["w_att1"] = jax.random.normal(ks[4], (3, 3, 2 * cout, chalf), jnp.float32) * 0.1
    p["s_att1"], p["b_att1"] = _fold_bn(ks[5], chalf)
    p["w_att2"] = jax.random.normal(ks[6], (3, 3, chalf, 2), jnp.float32) * 0.1
    p["b_att2"] = jax.random.normal(ks[7], (2,), jnp.float32) * 0.1     # conv bias
    return p


def _tap_major(w_hwio):
    """(3, 3, Cin, Cout) HWIO -> (9*Cout, Cin) bf16; rows [t*Cout:(t+1)*Cout] are
    tap t of _TAPS, matching conv9's static sublane slicing of the weight ref."""
    kh, kw, cin, co = w_hwio.shape
    return (jnp.transpose(w_hwio, (0, 1, 3, 2))
            .reshape(kh * kw * co, cin).astype(jnp.bfloat16))


def _interp_matrix_1d(out_size, in_size):
    """1-D bilinear interpolation weights, PyTorch align_corners=False."""
    d = np.arange(out_size, dtype=np.float64)
    src = np.maximum((d + 0.5) * (in_size / out_size) - 0.5, 0.0)
    i0 = np.minimum(np.floor(src).astype(np.int64), in_size - 1)
    i1 = np.minimum(i0 + 1, in_size - 1)
    lam = src - i0
    m = np.zeros((out_size, in_size), np.float64)
    m[np.arange(out_size), i0] += 1.0 - lam
    m[np.arange(out_size), i1] += lam
    return m


def make_kernel_params(raw, cout, scale_factor, high_hw, b_blk):
    """Fold BN into bf16 tap-major conv weights, split/pad the att weights, fold
    the 2-way softmax into a logit-difference row, build the block-diagonal
    upsample matrix and the border masks for the chosen batch block size."""
    chalf = raw["w_att1"].shape[-1]
    chalf_p = max(8, -(-chalf // 8) * 8)          # sublane-aligned hidden width
    pad = chalf_p - chalf
    Hh, Wh = high_hw
    H, W = Hh * scale_factor, Wh * scale_factor
    HW = H * W

    p = {}
    # conv_low / conv_high: BN scale folded into the bf16 tap-major weights.
    p["w_low_tap"] = _tap_major(raw["w_low"] * raw["s_low"][None, None, None, :])
    p["b_low_col"] = raw["b_low"][:, None]
    p["w_high_tap"] = _tap_major(raw["w_high"] * raw["s_high"][None, None, None, :])
    p["b_high_col"] = raw["b_high"][:, None]

    # att conv1: split over its (low, high) input halves so concat() never
    # exists; pad its output channels to a sublane multiple.
    w1 = raw["w_att1"] * raw["s_att1"][None, None, None, :]
    w1 = jnp.pad(w1, ((0, 0), (0, 0), (0, 0), (0, pad)))
    p["w_att1_low_tap"] = _tap_major(w1[:, :, :cout, :])
    p["w_att1_high_tap"] = _tap_major(w1[:, :, cout:, :])
    p["b_att1_col"] = jnp.pad(raw["b_att1"], (0, pad))[:, None]

    # att conv2 + 2-way softmax folded into a single logit-difference row.
    wd = raw["w_att2"][..., 1:2] - raw["w_att2"][..., 0:1]          # (3,3,chalf,1)
    wd = jnp.pad(wd, ((0, 0), (0, 0), (0, pad), (0, 0)))
    p["w_att2_diff_tap"] = _tap_major(wd)                            # (9, chalf_p)
    p["b_att2_diff"] = (raw["b_att2"][1] - raw["b_att2"][0]).reshape(1, 1)

    # Bilinear upsample as a static bf16 matmul: x_up = x_high_folded @ up_block,
    # block-diagonal over the b_blk images sharing a grid step.
    up_img = np.kron(_interp_matrix_1d(H, Hh), _interp_matrix_1d(W, Wh)).T
    p["up_block"] = jnp.asarray(np.kron(np.eye(b_blk), up_img), jnp.bfloat16)

    # Border-validity masks for the 8 non-center taps (implicit zero padding;
    # also kills cross-image leakage of the lane roll).  Kept f32: the
    # elementwise path stays f32 (v5e VPU has no bf16 ALUs).
    yy, xx = np.divmod(np.arange(HW), W)
    rows = []
    for t, (dy, dx) in enumerate(_TAPS):
        if t == _CENTER:
            continue
        ok = (yy + dy >= 0) & (yy + dy < H) & (xx + dx >= 0) & (xx + dx < W)
        rows.append(ok.astype(np.float32))
    p["masks"] = jnp.asarray(np.tile(np.stack(rows), (1, b_blk)))
    return p


# ----------------------------------------------------------------------------
# Plain-JAX (XLA) reference of the same module, used to validate the kernel.
# It mirrors the kernel's numeric policy (BN folded into bf16 conv weights,
# f32 accumulation / elementwise) so the check isolates structural correctness.
# ----------------------------------------------------------------------------
def reference_forward(raw, x_low, x_high):
    bf16 = jnp.bfloat16

    def conv_bn_act(x, w_hwio, scale, bias, relu):
        w = (w_hwio * scale[None, None, None, :]).astype(bf16)
        y = jax.lax.conv_general_dilated(
            x.astype(bf16), w, window_strides=(1, 1), padding="SAME",
            dimension_numbers=("NCHW", "HWIO", "NCHW"),
            preferred_element_type=jnp.float32)
        y = y + bias[None, :, None, None]
        return jnp.maximum(y, 0.0) if relu else y

    B, _, H, W = x_low.shape
    _, ch, Hh, Wh = x_high.shape
    up_img = jnp.asarray(
        np.kron(_interp_matrix_1d(H, Hh), _interp_matrix_1d(W, Wh)).T, jnp.float32)
    xh_up = jnp.einsum("bcq,qp->bcp",
                       x_high.reshape(B, ch, Hh * Wh).astype(bf16),
                       up_img.astype(bf16),
                       preferred_element_type=jnp.float32).reshape(B, ch, H, W)
    low = conv_bn_act(x_low, raw["w_low"], raw["s_low"], raw["b_low"], True)
    high = conv_bn_act(xh_up, raw["w_high"], raw["s_high"], raw["b_high"], True)
    merged = jnp.concatenate([low, high], axis=1)
    h = conv_bn_act(merged, raw["w_att1"], raw["s_att1"], raw["b_att1"], True)
    att = conv_bn_act(h, raw["w_att2"], jnp.ones((2,), jnp.float32),
                      raw["b_att2"], False)
    wgt = jax.nn.softmax(att, axis=1)
    return low * wgt[:, 0:1] + high * wgt[:, 1:2]


if __name__ == "__main__":
    # Shapes consistent with the module: cin_low=8, cin_high=16, cout=8, x2 upsample.
    # batch=4 so two images fold into the lane axis per step (N = 512 lanes) while
    # the grid still has 2 "parallel" steps for v7x's two TensorCores.
    B, cin_low, cin_high, cout, scale_factor = 4, 8, 16, 8, 2
    H = W = 16
    Hh, Wh = H // scale_factor, W // scale_factor

    key = jax.random.PRNGKey(0)
    k_low, k_high, k_params = jax.random.split(key, 3)
    x_low = jax.random.normal(k_low, (B, cin_low, H, W), jnp.float32)       # NCHW
    x_high = jax.random.normal(k_high, (B, cin_high, Hh, Wh), jnp.float32)  # NCHW

    b_blk = pick_batch_block(B)                  # -> 2 images per grid step
    raw = make_raw_params(k_params, cin_low, cin_high, cout)
    params = make_kernel_params(raw, cout, scale_factor, (Hh, Wh), b_blk)

    fwd = jax.jit(att_merge_forward)
    out = fwd(params, x_low, x_high)                                        # NCHW out
    jax.block_until_ready(out)

    assert out.shape == (B, cout, H, W)
    assert bool(jnp.all(jnp.isfinite(out)))

    # Validate against the un-fused plain-JAX reference (bf16-operand policy
    # matched; tolerance covers bf16 rounding-order differences only).
    ref = reference_forward(raw, x_low, x_high)
    err = float(jnp.max(jnp.abs(out - ref)))
    assert err < 5e-2, f"kernel mismatch vs reference: max abs err {err}"
    print("KERNEL_OK")
</pallas_src>

<mosaic_0001>
module attributes {stable_mosaic.version = 11 : i64} {
  func.func @_att_merge_fused_kernel(%arg0: i32, %arg1: memref<1x8x512xf32, #tpu.memory_space<vmem>>, %arg2: memref<1x16x128xf32, #tpu.memory_space<vmem>>, %arg3: memref<8x512xf32, #tpu.memory_space<vmem>>, %arg4: memref<128x512xbf16, #tpu.memory_space<vmem>>, %arg5: memref<72x8xbf16, #tpu.memory_space<vmem>>, %arg6: memref<8x1xf32, #tpu.memory_space<vmem>>, %arg7: memref<72x16xbf16, #tpu.memory_space<vmem>>, %arg8: memref<8x1xf32, #tpu.memory_space<vmem>>, %arg9: memref<72x8xbf16, #tpu.memory_space<vmem>>, %arg10: memref<72x8xbf16, #tpu.memory_space<vmem>>, %arg11: memref<8x1xf32, #tpu.memory_space<vmem>>, %arg12: memref<9x8xbf16, #tpu.memory_space<vmem>>, %arg13: memref<1x1xf32, #tpu.memory_space<vmem>>, %arg14: memref<1x8x512xf32, #tpu.memory_space<vmem>>) attributes {dimension_semantics = [#tpu.dimension_semantics<parallel>], iteration_bounds = array<i64: 2>, scalar_prefetch = 0 : i64, scratch_operands = 0 : i64, tpu.core_type = #tpu.core_type<tc>, window_params = [{transform_indices = @transform_0, window_bounds = array<i64: 1, 8, 512>}, {transform_indices = @transform_1, window_bounds = array<i64: 1, 16, 128>}, {pipeline_mode = #tpu.pipeline_mode<synchronous>, transform_indices = @transform_2, window_bounds = array<i64: 8, 512>}, {pipeline_mode = #tpu.pipeline_mode<synchronous>, transform_indices = @transform_3, window_bounds = array<i64: 128, 512>}, {pipeline_mode = #tpu.pipeline_mode<synchronous>, transform_indices = @transform_4, window_bounds = array<i64: 72, 8>}, {pipeline_mode = #tpu.pipeline_mode<synchronous>, transform_indices = @transform_5, window_bounds = array<i64: 8, 1>}, {pipeline_mode = #tpu.pipeline_mode<synchronous>, transform_indices = @transform_6, window_bounds = array<i64: 72, 16>}, {pipeline_mode = #tpu.pipeline_mode<synchronous>, transform_indices = @transform_7, window_bounds = array<i64: 8, 1>}, {pipeline_mode = #tpu.pipeline_mode<synchronous>, transform_indices = @transform_8, window_bounds = array<i64: 72, 8>}, {pipeline_mode = #tpu.pipeline_mode<synchronous>, transform_indices = @transform_9, window_bounds = array<i64: 72, 8>}, {pipeline_mode = #tpu.pipeline_mode<synchronous>, transform_indices = @transform_10, window_bounds = array<i64: 8, 1>}, {pipeline_mode = #tpu.pipeline_mode<synchronous>, transform_indices = @transform_11, window_bounds = array<i64: 9, 8>}, {pipeline_mode = #tpu.pipeline_mode<synchronous>, transform_indices = @transform_12, window_bounds = array<i64: 1, 1>}, {transform_indices = @transform_13, window_bounds = array<i64: 1, 8, 512>}]} {
    %c0 = arith.constant 0 : index
    %c0_0 = arith.constant 0 : index
    %0 = vector.load %arg3[%c0, %c0_0] : memref<8x512xf32, #tpu.memory_space<vmem>>, vector<8x512xf32>
    %c0_1 = arith.constant 0 : index
    %c0_2 = arith.constant 0 : index
    %c0_3 = arith.constant 0 : index
    %1 = vector.load %arg1[%c0_1, %c0_2, %c0_3] : memref<1x8x512xf32, #tpu.memory_space<vmem>>, vector<1x8x512xf32>
    %2 = vector.shape_cast %1 : vector<1x8x512xf32> to vector<8x512xf32>
    %c32 = arith.constant 32 : index
    %c0_4 = arith.constant 0 : index
    %3 = vector.load %arg5[%c32, %c0_4] : memref<72x8xbf16, #tpu.memory_space<vmem>>, vector<8x8xbf16>
    %4 = arith.truncf %2 : vector<8x512xf32> to vector<8x512xbf16>
    %cst = arith.constant dense<0.000000e+00> : vector<8x512xf32>
    %5 = tpu.matmul %3, %4, %cst {dimension_numbers = #tpu.dot_dimension_numbers<[1], [0], [0], [1], [0, 0, 1, 1], [], []>} : vector<8x8xbf16>, vector<8x512xbf16>, vector<8x512xf32> -> vector<8x512xf32>
    %c17_i32 = arith.constant 17 : i32
    %6 = tpu.dynamic_rotate %2 by %c17_i32 dim 1 : vector<8x512xf32>, i32 -> vector<8x512xf32>
    %7 = vector.extract_strided_slice %0 {offsets = [0, 0], sizes = [1, 512], strides = [1, 1]} : vector<8x512xf32> to vector<1x512xf32>
    %8 = vector.broadcast %7 : vector<1x512xf32> to vector<8x512xf32>
    %9 = arith.mulf %6, %8 : vector<8x512xf32>
    %c0_5 = arith.constant 0 : index
    %c0_6 = arith.constant 0 : index
    %10 = vector.load %arg5[%c0_5, %c0_6] : memref<72x8xbf16, #tpu.memory_space<vmem>>, vector<8x8xbf16>
    %11 = arith.truncf %9 : vector<8x512xf32> to vector<8x512xbf16>
    %cst_7 = arith.constant dense<0.000000e+00> : vector<8x512xf32>
    %12 = tpu.matmul %10, %11, %cst_7 {dimension_numbers = #tpu.dot_dimension_numbers<[1], [0], [0], [1], [0, 0, 1, 1], [], []>} : vector<8x8xbf16>, vector<8x512xbf16>, vector<8x512xf32> -> vector<8x512xf32>
    %13 = arith.addf %5, %12 : vector<8x512xf32>
    %c16_i32 = arith.constant 16 : i32
    %14 = tpu.dynamic_rotate %2 by %c16_i32 dim 1 : vector<8x512xf32>, i32 -> vector<8x512xf32>
    %15 = vector.extract_strided_slice %0 {offsets = [1, 0], sizes = [1, 512], strides = [1, 1]} : vector<8x512xf32> to vector<1x512xf32>
    %16 = vector.broadcast %15 : vector<1x512xf32> to vector<8x512xf32>
    %17 = arith.mulf %14, %16 : vector<8x512xf32>
    %c8 = arith.constant 8 : index
    %c0_8 = arith.constant 0 : index
    %18 = vector.load %arg5[%c8, %c0_8] : memref<72x8xbf16, #tpu.memory_space<vmem>>, vector<8x8xbf16>
    %19 = arith.truncf %17 : vector<8x512xf32> to vector<8x512xbf16>
    %cst_9 = arith.constant dense<0.000000e+00> : vector<8x512xf32>
    %20 = tpu.matmul %18, %19, %cst_9 {dimension_numbers = #tpu.dot_dimension_numbers<[1], [0], [0], [1], [0, 0, 1, 1], [], []>} : vector<8x8xbf16>, vector<8x512xbf16>, vector<8x512xf32> -> vector<8x512xf32>
    %21 = arith.addf %13, %20 : vector<8x512xf32>
    %c15_i32 = arith.constant 15 : i32
    %22 = tpu.dynamic_rotate %2 by %c15_i32 dim 1 : vector<8x512xf32>, i32 -> vector<8x512xf32>
    %23 = vector.extract_strided_slice %0 {offsets = [2, 0], sizes = [1, 512], strides = [1, 1]} : vector<8x512xf32> to vector<1x512xf32>
    %24 = vector.broadcast %23 : vector<1x512xf32> to vector<8x512xf32>
    %25 = arith.mulf %22, %24 : vector<8x512xf32>
    %c16 = arith.constant 16 : index
    %c0_10 = arith.constant 0 : index
    %26 = vector.load %arg5[%c16, %c0_10] : memref<72x8xbf16, #tpu.memory_space<vmem>>, vector<8x8xbf16>
    %27 = arith.truncf %25 : vector<8x512xf32> to vector<8x512xbf16>
    %cst_11 = arith.constant dense<0.000000e+00> : vector<8x512xf32>
    %28 = tpu.matmul %26, %27, %cst_11 {dimension_numbers = #tpu.dot_dimension_numbers<[1], [0], [0], [1], [0, 0, 1, 1], [], []>} : vector<8x8xbf16>, vector<8x512xbf16>, vector<8x512xf32> -> vector<8x512xf32>
    %29 = arith.addf %21, %28 : vector<8x512xf32>
    %c1_i32 = arith.constant 1 : i32
    %30 = tpu.dynamic_rotate %2 by %c1_i32 dim 1 : vector<8x512xf32>, i32 -> vector<8x512xf32>
    %31 = vector.extract_strided_slice %0 {offsets = [3, 0], sizes = [1, 512], strides = [1, 1]} : vector<8x512xf32> to vector<1x512xf32>
    %32 = vector.broadcast %31 : vector<1x512xf32> to vector<8x512xf32>
    %33 = arith.mulf %30, %32 : vector<8x512xf32>
    %c24 = arith.constant 24 : index
    %c0_12 = arith.constant 0 : index
    %34 = vector.load %arg5[%c24, %c0_12] : memref<72x8xbf16, #tpu.memory_space<vmem>>, vector<8x8xbf16>
    %35 = arith.truncf %33 : vector<8x512xf32> to vector<8x512xbf16>
    %cst_13 = arith.constant dense<0.000000e+00> : vector<8x512xf32>
    %36 = tpu.matmul %34, %35, %cst_13 {dimension_numbers = #tpu.dot_dimension_numbers<[1], [0], [0], [1], [0, 0, 1, 1], [], []>} : vector<8x8xbf16>, vector<8x512xbf16>, vector<8x512xf32> -> vector<8x512xf32>
    %37 = arith.addf %29, %36 : vector<8x512xf32>
    %c511_i32 = arith.constant 511 : i32
    %38 = tpu.dynamic_rotate %2 by %c511_i32 dim 1 : vector<8x512xf32>, i32 -> vector<8x512xf32>
    %39 = vector.extract_strided_slice %0 {offsets = [4, 0], sizes = [1, 512], strides = [1, 1]} : vector<8x512xf32> to vector<1x512xf32>
    %40 = vector.broadcast %39 : vector<1x512xf32> to vector<8x512xf32>
    %41 = arith.mulf %38, %40 : vector<8x512xf32>
    %c40 = arith.constant 40 : index
    %c0_14 = arith.constant 0 : index
    %42 = vector.load %arg5[%c40, %c0_14] : memref<72x8xbf16, #tpu.memory_space<vmem>>, vector<8x8xbf16>
    %43 = arith.truncf %41 : vector<8x512xf32> to vector<8x512xbf16>
    %cst_15 = arith.constant dense<0.000000e+00> : vector<8x512xf32>
    %44 = tpu.matmul %42, %43, %cst_15 {dimension_numbers = #tpu.dot_dimension_numbers<[1], [0], [0], [1], [0, 0, 1, 1], [], []>} : vector<8x8xbf16>, vector<8x512xbf16>, vector<8x512xf32> -> vector<8x512xf32>
    %45 = arith.addf %37, %44 : vector<8x512xf32>
    %c497_i32 = arith.constant 497 : i32
    %46 = tpu.dynamic_rotate %2 by %c497_i32 dim 1 : vector<8x512xf32>, i32 -> vector<8x512xf32>
    %47 = vector.extract_strided_slice %0 {offsets = [5, 0], sizes = [1, 512], strides = [1, 1]} : vector<8x512xf32> to vector<1x512xf32>
    %48 = vector.broadcast %47 : vector<1x512xf32> to vector<8x512xf32>
    %49 = arith.mulf %46, %48 : vector<8x512xf32>
    %c48 = arith.constant 48 : index
    %c0_16 = arith.constant 0 : index
    %50 = vector.load %arg5[%c48, %c0_16] : memref<72x8xbf16, #tpu.memory_space<vmem>>, vector<8x8xbf16>
    %51 = arith.truncf %49 : vector<8x512xf32> to vector<8x512xbf16>
    %cst_17 = arith.constant dense<0.000000e+00> : vector<8x512xf32>
    %52 = tpu.matmul %50, %51, %cst_17 {dimension_numbers = #tpu.dot_dimension_numbers<[1], [0], [0], [1], [0, 0, 1, 1], [], []>} : vector<8x8xbf16>, vector<8x512xbf16>, vector<8x512xf32> -> vector<8x512xf32>
    %53 = arith.addf %45, %52 : vector<8x512xf32>
    %c496_i32 = arith.constant 496 : i32
    %54 = tpu.dynamic_rotate %2 by %c496_i32 dim 1 : vector<8x512xf32>, i32 -> vector<8x512xf32>
    %55 = vector.extract_strided_slice %0 {offsets = [6, 0], sizes = [1, 512], strides = [1, 1]} : vector<8x512xf32> to vector<1x512xf32>
    %56 = vector.broadcast %55 : vector<1x512xf32> to vector<8x512xf32>
    %57 = arith.mulf %54, %56 : vector<8x512xf32>
    %c56 = arith.constant 56 : index
    %c0_18 = arith.constant 0 : index
    %58 = vector.load %arg5[%c56, %c0_18] : memref<72x8xbf16, #tpu.memory_space<vmem>>, vector<8x8xbf16>
    %59 = arith.truncf %57 : vector<8x512xf32> to vector<8x512xbf16>
    %cst_19 = arith.constant dense<0.000000e+00> : vector<8x512xf32>
    %60 = tpu.matmul %58, %59, %cst_19 {dimension_numbers = #tpu.dot_dimension_numbers<[1], [0], [0], [1], [0, 0, 1, 1], [], []>} : vector<8x8xbf16>, vector<8x512xbf16>, vector<8x512xf32> -> vector<8x512xf32>
    %61 = arith.addf %53, %60 : vector<8x512xf32>
    %c495_i32 = arith.constant 495 : i32
    %62 = tpu.dynamic_rotate %2 by %c495_i32 dim 1 : vector<8x512xf32>, i32 -> vector<8x512xf32>
    %63 = vector.extract_strided_slice %0 {offsets = [7, 0], sizes = [1, 512], strides = [1, 1]} : vector<8x512xf32> to vector<1x512xf32>
    %64 = vector.broadcast %63 : vector<1x512xf32> to vector<8x512xf32>
    %65 = arith.mulf %62, %64 : vector<8x512xf32>
    %c64 = arith.constant 64 : index
    %c0_20 = arith.constant 0 : index
    %66 = vector.load %arg5[%c64, %c0_20] : memref<72x8xbf16, #tpu.memory_space<vmem>>, vector<8x8xbf16>
    %67 = arith.truncf %65 : vector<8x512xf32> to vector<8x512xbf16>
    %cst_21 = arith.constant dense<0.000000e+00> : vector<8x512xf32>
    %68 = tpu.matmul %66, %67, %cst_21 {dimension_numbers = #tpu.dot_dimension_numbers<[1], [0], [0], [1], [0, 0, 1, 1], [], []>} : vector<8x8xbf16>, vector<8x512xbf16>, vector<8x512xf32> -> vector<8x512xf32>
    %69 = arith.addf %61, %68 : vector<8x512xf32>
    %c0_22 = arith.constant 0 : index
    %c0_23 = arith.constant 0 : index
    %70 = vector.load %arg6[%c0_22, %c0_23] : memref<8x1xf32, #tpu.memory_space<vmem>>, vector<8x1xf32>
    %71 = vector.broadcast %70 : vector<8x1xf32> to vector<8x512xf32>
    %72 = arith.addf %69, %71 : vector<8x512xf32>
    %cst_24 = arith.constant 0.000000e+00 : f32
    %73 = vector.broadcast %cst_24 : f32 to vector<8x512xf32>
    %74 = arith.maximumf %72, %73 : vector<8x512xf32>
    %c0_25 = arith.constant 0 : index
    %c0_26 = arith.constant 0 : index
    %c0_27 = arith.constant 0 : index
    %75 = vector.load %arg2[%c0_25, %c0_26, %c0_27] : memref<1x16x128xf32, #tpu.memory_space<vmem>>, vector<1x16x128xf32>
    %76 = vector.shape_cast %75 : vector<1x16x128xf32> to vector<16x128xf32>
    %77 = arith.truncf %76 : vector<16x128xf32> to vector<16x128xbf16>
    %c0_28 = arith.constant 0 : index
    %c0_29 = arith.constant 0 : index
    %78 = vector.load %arg4[%c0_28, %c0_29] : memref<128x512xbf16, #tpu.memory_space<vmem>>, vector<128x512xbf16>
    %cst_30 = arith.constant dense<0.000000e+00> : vector<16x512xf32>
    %79 = tpu.matmul %77, %78, %cst_30 {dimension_numbers = #tpu.dot_dimension_numbers<[1], [0], [0], [1], [0, 0, 1, 1], [], []>} : vector<16x128xbf16>, vector<128x512xbf16>, vector<16x512xf32> -> vector<16x512xf32>
    %c32_31 = arith.constant 32 : index
    %c0_32 = arith.constant 0 : index
    %80 = vector.load %arg7[%c32_31, %c0_32] : memref<72x16xbf16, #tpu.memory_space<vmem>>, vector<8x16xbf16>
    %81 = arith.truncf %79 : vector<16x512xf32> to vector<16x512xbf16>
    %cst_33 = arith.constant dense<0.000000e+00> : vector<8x512xf32>
    %82 = tpu.matmul %80, %81, %cst_33 {dimension_numbers = #tpu.dot_dimension_numbers<[1], [0], [0], [1], [0, 0, 1, 1], [], []>} : vector<8x16xbf16>, vector<16x512xbf16>, vector<8x512xf32> -> vector<8x512xf32>
    %c17_i32_34 = arith.constant 17 : i32
    %83 = tpu.dynamic_rotate %79 by %c17_i32_34 dim 1 : vector<16x512xf32>, i32 -> vector<16x512xf32>
    %84 = vector.extract_strided_slice %0 {offsets = [0, 0], sizes = [1, 512], strides = [1, 1]} : vector<8x512xf32> to vector<1x512xf32>
    %85 = vector.broadcast %84 : vector<1x512xf32> to vector<16x512xf32>
    %86 = arith.mulf %83, %85 : vector<16x512xf32>
    %c0_35 = arith.constant 0 : index
    %c0_36 = arith.constant 0 : index
    %87 = vector.load %arg7[%c0_35, %c0_36] : memref<72x16xbf16, #tpu.memory_space<vmem>>, vector<8x16xbf16>
    %88 = arith.truncf %86 : vector<16x512xf32> to vector<16x512xbf16>
    %cst_37 = arith.constant dense<0.000000e+00> : vector<8x512xf32>
    %89 = tpu.matmul %87, %88, %cst_37 {dimension_numbers = #tpu.dot_dimension_numbers<[1], [0], [0], [1], [0, 0, 1, 1], [], []>} : vector<8x16xbf16>, vector<16x512xbf16>, vector<8x512xf32> -> vector<8x512xf32>
    %90 = arith.addf %82, %89 : vector<8x512xf32>
    %c16_i32_38 = arith.constant 16 : i32
    %91 = tpu.dynamic_rotate %79 by %c16_i32_38 dim 1 : vector<16x512xf32>, i32 -> vector<16x512xf32>
    %92 = vector.extract_strided_slice %0 {offsets = [1, 0], sizes = [1, 512], strides = [1, 1]} : vector<8x512xf32> to vector<1x512xf32>
    %93 = vector.broadcast %92 : vector<1x512xf32> to vector<16x512xf32>
    %94 = arith.mulf %91, %93 : vector<16x512xf32>
    %c8_39 = arith.constant 8 : index
    %c0_40 = arith.constant 0 : index
    %95 = vector.load %arg7[%c8_39, %c0_40] : memref<72x16xbf16, #tpu.memory_space<vmem>>, vector<8x16xbf16>
    %96 = arith.truncf %94 : vector<16x512xf32> to vector<16x512xbf16>
    %cst_41 = arith.constant dense<0.000000e+00> : vector<8x512xf32>
    %97 = tpu.matmul %95, %96, %cst_41 {dimension_numbers = #tpu.dot_dimension_numbers<[1], [0], [0], [1], [0, 0, 1, 1], [], []>} : vector<8x16xbf16>, vector<16x512xbf16>, vector<8x512xf32> -> vector<8x512xf32>
    %98 = arith.addf %90, %97 : vector<8x512xf32>
    %c15_i32_42 = arith.constant 15 : i32
    %99 = tpu.dynamic_rotate %79 by %c15_i32_42 dim 1 : vector<16x512xf32>, i32 -> vector<16x512xf32>
    %100 = vector.extract_strided_slice %0 {offsets = [2, 0], sizes = [1, 512], strides = [1, 1]} : vector<8x512xf32> to vector<1x512xf32>
    %101 = vector.broadcast %100 : vector<1x512xf32> to vector<16x512xf32>
    %102 = arith.mulf %99, %101 : vector<16x512xf32>
    %c16_43 = arith.constant 16 : index
    %c0_44 = arith.constant 0 : index
    %103 = vector.load %arg7[%c16_43, %c0_44] : memref<72x16xbf16, #tpu.memory_space<vmem>>, vector<8x16xbf16>
    %104 = arith.truncf %102 : vector<16x512xf32> to vector<16x512xbf16>
    %cst_45 = arith.constant dense<0.000000e+00> : vector<8x512xf32>
    %105 = tpu.matmul %103, %104, %cst_45 {dimension_numbers = #tpu.dot_dimension_numbers<[1], [0], [0], [1], [0, 0, 1, 1], [], []>} : vector<8x16xbf16>, vector<16x512xbf16>, vector<8x512xf32> -> vector<8x512xf32>
    %106 = arith.addf %98, %105 : vector<8x512xf32>
    %c1_i32_46 = arith.constant 1 : i32
    %107 = tpu.dynamic_rotate %79 by %c1_i32_46 dim 1 : vector<16x512xf32>, i32 -> vector<16x512xf32>
    %108 = vector.extract_strided_slice %0 {offsets = [3, 0], sizes = [1, 512], strides = [1, 1]} : vector<8x512xf32> to vector<1x512xf32>
    %109 = vector.broadcast %108 : vector<1x512xf32> to vector<16x512xf32>
    %110 = arith.mulf %107, %109 : vector<16x512xf32>
    %c24_47 = arith.constant 24 : index
    %c0_48 = arith.constant 0 : index
    %111 = vector.load %arg7[%c24_47, %c0_48] : memref<72x16xbf16, #tpu.memory_space<vmem>>, vector<8x16xbf16>
    %112 = arith.truncf %110 : vector<16x512xf32> to vector<16x512xbf16>
    %cst_49 = arith.constant dense<0.000000e+00> : vector<8x512xf32>
    %113 = tpu.matmul %111, %112, %cst_49 {dimension_numbers = #tpu.dot_dimension_numbers<[1], [0], [0], [1], [0, 0, 1, 1], [], []>} : vector<8x16xbf16>, vector<16x512xbf16>, vector<8x512xf32> -> vector<8x512xf32>
    %114 = arith.addf %106, %113 : vector<8x512xf32>
    %c511_i32_50 = arith.constant 511 : i32
    %115 = tpu.dynamic_rotate %79 by %c511_i32_50 dim 1 : vector<16x512xf32>, i32 -> vector<16x512xf32>
    %116 = vector.extract_strided_slice %0 {offsets = [4, 0], sizes = [1, 512], strides = [1, 1]} : vector<8x512xf32> to vector<1x512xf32>
    %117 = vector.broadcast %116 : vector<1x512xf32> to vector<16x512xf32>
    %118 = arith.mulf %115, %117 : vector<16x512xf32>
    %c40_51 = arith.constant 40 : index
    %c0_52 = arith.constant 0 : index
    %119 = vector.load %arg7[%c40_51, %c0_52] : memref<72x16xbf16, #tpu.memory_space<vmem>>, vector<8x16xbf16>
    %120 = arith.truncf %118 : vector<16x512xf32> to vector<16x512xbf16>
    %cst_53 = arith.constant dense<0.000000e+00> : vector<8x512xf32>
    %121 = tpu.matmul %119, %120, %cst_53 {dimension_numbers = #tpu.dot_dimension_numbers<[1], [0], [0], [1], [0, 0, 1, 1], [], []>} : vector<8x16xbf16>, vector<16x512xbf16>, vector<8x512xf32> -> vector<8x512xf32>
    %122 = arith.addf %114, %121 : vector<8x512xf32>
    %c497_i32_54 = arith.constant 497 : i32
    %123 = tpu.dynamic_rotate %79 by %c497_i32_54 dim 1 : vector<16x512xf32>, i32 -> vector<16x512xf32>
    %124 = vector.extract_strided_slice %0 {offsets = [5, 0], sizes = [1, 512], strides = [1, 1]} : vector<8x512xf32> to vector<1x512xf32>
    %125 = vector.broadcast %124 : vector<1x512xf32> to vector<16x512xf32>
    %126 = arith.mulf %123, %125 : vector<16x512xf32>
    %c48_55 = arith.constant 48 : index
    %c0_56 = arith.constant 0 : index
    %127 = vector.load %arg7[%c48_55, %c0_56] : memref<72x16xbf16, #tpu.memory_space<vmem>>, vector<8x16xbf16>
    %128 = arith.truncf %126 : vector<16x512xf32> to vector<16x512xbf16>
    %cst_57 = arith.constant dense<0.000000e+00> : vector<8x512xf32>
    %129 = tpu.matmul %127, %128, %cst_57 {dimension_numbers = #tpu.dot_dimension_numbers<[1], [0], [0], [1], [0, 0, 1, 1], [], []>} : vector<8x16xbf16>, vector<16x512xbf16>, vector<8x512xf32> -> vector<8x512xf32>
    %130 = arith.addf %122, %129 : vector<8x512xf32>
    %c496_i32_58 = arith.constant 496 : i32
    %131 = tpu.dynamic_rotate %79 by %c496_i32_58 dim 1 : vector<16x512xf32>, i32 -> vector<16x512xf32>
    %132 = vector.extract_strided_slice %0 {offsets = [6, 0], sizes = [1, 512], strides = [1, 1]} : vector<8x512xf32> to vector<1x512xf32>
    %133 = vector.broadcast %132 : vector<1x512xf32> to vector<16x512xf32>
    %134 = arith.mulf %131, %133 : vector<16x512xf32>
    %c56_59 = arith.constant 56 : index
    %c0_60 = arith.constant 0 : index
    %135 = vector.load %arg7[%c56_59, %c0_60] : memref<72x16xbf16, #tpu.memory_space<vmem>>, vector<8x16xbf16>
    %136 = arith.truncf %134 : vector<16x512xf32> to vector<16x512xbf16>
    %cst_61 = arith.constant dense<0.000000e+00> : vector<8x512xf32>
    %137 = tpu.matmul %135, %136, %cst_61 {dimension_numbers = #tpu.dot_dimension_numbers<[1], [0], [0], [1], [0, 0, 1, 1], [], []>} : vector<8x16xbf16>, vector<16x512xbf16>, vector<8x512xf32> -> vector<8x512xf32>
    %138 = arith.addf %130, %137 : vector<8x512xf32>
    %c495_i32_62 = arith.constant 495 : i32
    %139 = tpu.dynamic_rotate %79 by %c495_i32_62 dim 1 : vector<16x512xf32>, i32 -> vector<16x512xf32>
    %140 = vector.extract_strided_slice %0 {offsets = [7, 0], sizes = [1, 512], strides = [1, 1]} : vector<8x512xf32> to vector<1x512xf32>
    %141 = vector.broadcast %140 : vector<1x512xf32> to vector<16x512xf32>
    %142 = arith.mulf %139, %141 : vector<16x512xf32>
    %c64_63 = arith.constant 64 : index
    %c0_64 = arith.constant 0 : index
    %143 = vector.load %arg7[%c64_63, %c0_64] : memref<72x16xbf16, #tpu.memory_space<vmem>>, vector<8x16xbf16>
    %144 = arith.truncf %142 : vector<16x512xf32> to vector<16x512xbf16>
    %cst_65 = arith.constant dense<0.000000e+00> : vector<8x512xf32>
    %145 = tpu.matmul %143, %144, %cst_65 {dimension_numbers = #tpu.dot_dimension_numbers<[1], [0], [0], [1], [0, 0, 1, 1], [], []>} : vector<8x16xbf16>, vector<16x512xbf16>, vector<8x512xf32> -> vector<8x512xf32>
    %146 = arith.addf %138, %145 : vector<8x512xf32>
    %c0_66 = arith.constant 0 : index
    %c0_67 = arith.constant 0 : index
    %147 = vector.load %arg8[%c0_66, %c0_67] : memref<8x1xf32, #tpu.memory_space<vmem>>, vector<8x1xf32>
    %148 = vector.broadcast %147 : vector<8x1xf32> to vector<8x512xf32>
    %149 = arith.addf %146, %148 : vector<8x512xf32>
    %cst_68 = arith.constant 0.000000e+00 : f32
    %150 = vector.broadcast %cst_68 : f32 to vector<8x512xf32>
    %151 = arith.maximumf %149, %150 : vector<8x512xf32>
    %c32_69 = arith.constant 32 : index
    %c0_70 = arith.constant 0 : index
    %152 = vector.load %arg9[%c32_69, %c0_70] : memref<72x8xbf16, #tpu.memory_space<vmem>>, vector<8x8xbf16>
    %153 = arith.truncf %74 : vector<8x512xf32> to vector<8x512xbf16>
    %cst_71 = arith.constant dense<0.000000e+00> : vector<8x512xf32>
    %154 = tpu.matmul %152, %153, %cst_71 {dimension_numbers = #tpu.dot_dimension_numbers<[1], [0], [0], [1], [0, 0, 1, 1], [], []>} : vector<8x8xbf16>, vector<8x512xbf16>, vector<8x512xf32> -> vector<8x512xf32>
    %c17_i32_72 = arith.constant 17 : i32
    %155 = tpu.dynamic_rotate %74 by %c17_i32_72 dim 1 : vector<8x512xf32>, i32 -> vector<8x512xf32>
    %156 = vector.extract_strided_slice %0 {offsets = [0, 0], sizes = [1, 512], strides = [1, 1]} : vector<8x512xf32> to vector<1x512xf32>
    %157 = vector.broadcast %156 : vector<1x512xf32> to vector<8x512xf32>
    %158 = arith.mulf %155, %157 : vector<8x512xf32>
    %c0_73 = arith.constant 0 : index
    %c0_74 = arith.constant 0 : index
    %159 = vector.load %arg9[%c0_73, %c0_74] : memref<72x8xbf16, #tpu.memory_space<vmem>>, vector<8x8xbf16>
    %160 = arith.truncf %158 : vector<8x512xf32> to vector<8x512xbf16>
    %cst_75 = arith.constant dense<0.000000e+00> : vector<8x512xf32>
    %161 = tpu.matmul %159, %160, %cst_75 {dimension_numbers = #tpu.dot_dimension_numbers<[1], [0], [0], [1], [0, 0, 1, 1], [], []>} : vector<8x8xbf16>, vector<8x512xbf16>, vector<8x512xf32> -> vector<8x512xf32>
    %162 = arith.addf %154, %161 : vector<8x512xf32>
    %c16_i32_76 = arith.constant 16 : i32
    %163 = tpu.dynamic_rotate %74 by %c16_i32_76 dim 1 : vector<8x512xf32>, i32 -> vector<8x512xf32>
    %164 = vector.extract_strided_slice %0 {offsets = [1, 0], sizes = [1, 512], strides = [1, 1]} : vector<8x512xf32> to vector<1x512xf32>
    %165 = vector.broadcast %164 : vector<1x512xf32> to vector<8x512xf32>
    %166 = arith.mulf %163, %165 : vector<8x512xf32>
    %c8_77 = arith.constant 8 : index
    %c0_78 = arith.constant 0 : index
    %167 = vector.load %arg9[%c8_77, %c0_78] : memref<72x8xbf16, #tpu.memory_space<vmem>>, vector<8x8xbf16>
    %168 = arith.truncf %166 : vector<8x512xf32> to vector<8x512xbf16>
    %cst_79 = arith.constant dense<0.000000e+00> : vector<8x512xf32>
    %169 = tpu.matmul %167, %168, %cst_79 {dimension_numbers = #tpu.dot_dimension_numbers<[1], [0], [0], [1], [0, 0, 1, 1], [], []>} : vector<8x8xbf16>, vector<8x512xbf16>, vector<8x512xf32> -> vector<8x512xf32>
    %170 = arith.addf %162, %169 : vector<8x512xf32>
    %c15_i32_80 = arith.constant 15 : i32
    %171 = tpu.dynamic_rotate %74 by %c15_i32_80 dim 1 : vector<8x512xf32>, i32 -> vector<8x512xf32>
    %172 = vector.extract_strided_slice %0 {offsets = [2, 0], sizes = [1, 512], strides = [1, 1]} : vector<8x512xf32> to vector<1x512xf32>
    %173 = vector.broadcast %172 : vector<1x512xf32> to vector<8x512xf32>
    %174 = arith.mulf %171, %173 : vector<8x512xf32>
    %c16_81 = arith.constant 16 : index
    %c0_82 = arith.constant 0 : index
    %175 = vector.load %arg9[%c16_81, %c0_82] : memref<72x8xbf16, #tpu.memory_space<vmem>>, vector<8x8xbf16>
    %176 = arith.truncf %174 : vector<8x512xf32> to vector<8x512xbf16>
    %cst_83 = arith.constant dense<0.000000e+00> : vector<8x512xf32>
    %177 = tpu.matmul %175, %176, %cst_83 {dimension_numbers = #tpu.dot_dimension_numbers<[1], [0], [0], [1], [0, 0, 1, 1], [], []>} : vector<8x8xbf16>, vector<8x512xbf16>, vector<8x512xf32> -> vector<8x512xf32>
    %178 = arith.addf %170, %177 : vector<8x512xf32>
    %c1_i32_84 = arith.constant 1 : i32
    %179 = tpu.dynamic_rotate %74 by %c1_i32_84 dim 1 : vector<8x512xf32>, i32 -> vector<8x512xf32>
    %180 = vector.extract_strided_slice %0 {offsets = [3, 0], sizes = [1, 512], strides = [1, 1]} : vector<8x512xf32> to vector<1x512xf32>
    %181 = vector.broadcast %180 : vector<1x512xf32> to vector<8x512xf32>
    %182 = arith.mulf %179, %181 : vector<8x512xf32>
    %c24_85 = arith.constant 24 : index
    %c0_86 = arith.constant 0 : index
    %183 = vector.load %arg9[%c24_85, %c0_86] : memref<72x8xbf16, #tpu.memory_space<vmem>>, vector<8x8xbf16>
    %184 = arith.truncf %182 : vector<8x512xf32> to vector<8x512xbf16>
    %cst_87 = arith.constant dense<0.000000e+00> : vector<8x512xf32>
    %185 = tpu.matmul %183, %184, %cst_87 {dimension_numbers = #tpu.dot_dimension_numbers<[1], [0], [0], [1], [0, 0, 1, 1], [], []>} : vector<8x8xbf16>, vector<8x512xbf16>, vector<8x512xf32> -> vector<8x512xf32>
    %186 = arith.addf %178, %185 : vector<8x512xf32>
    %c511_i32_88 = arith.constant 511 : i32
    %187 = tpu.dynamic_rotate %74 by %c511_i32_88 dim 1 : vector<8x512xf32>, i32 -> vector<8x512xf32>
    %188 = vector.extract_strided_slice %0 {offsets = [4, 0], sizes = [1, 512], strides = [1, 1]} : vector<8x512xf32> to vector<1x512xf32>
    %189 = vector.broadcast %188 : vector<1x512xf32> to vector<8x512xf32>
    %190 = arith.mulf %187, %189 : vector<8x512xf32>
    %c40_89 = arith.constant 40 : index
    %c0_90 = arith.constant 0 : index
    %191 = vector.load %arg9[%c40_89, %c0_90] : memref<72x8xbf16, #tpu.memory_space<vmem>>, vector<8x8xbf16>
    %192 = arith.truncf %190 : vector<8x512xf32> to vector<8x512xbf16>
    %cst_91 = arith.constant dense<0.000000e+00> : vector<8x512xf32>
    %193 = tpu.matmul %191, %192, %cst_91 {dimension_numbers = #tpu.dot_dimension_numbers<[1], [0], [0], [1], [0, 0, 1, 1], [], []>} : vector<8x8xbf16>, vector<8x512xbf16>, vector<8x512xf32> -> vector<8x512xf32>
    %194 = arith.addf %186, %193 : vector<8x512xf32>
    %c497_i32_92 = arith.constant 497 : i32
    %195 = tpu.dynamic_rotate %74 by %c497_i32_92 dim 1 : vector<8x512xf32>, i32 -> vector<8x512xf32>
    %196 = vector.extract_strided_slice %0 {offsets = [5, 0], sizes = [1, 512], strides = [1, 1]} : vector<8x512xf32> to vector<1x512xf32>
    %197 = vector.broadcast %196 : vector<1x512xf32> to vector<8x512xf32>
    %198 = arith.mulf %195, %197 : vector<8x512xf32>
    %c48_93 = arith.constant 48 : index
    %c0_94 = arith.constant 0 : index
    %199 = vector.load %arg9[%c48_93, %c0_94] : memref<72x8xbf16, #tpu.memory_space<vmem>>, vector<8x8xbf16>
    %200 = arith.truncf %198 : vector<8x512xf32> to vector<8x512xbf16>
    %cst_95 = arith.constant dense<0.000000e+00> : vector<8x512xf32>
    %201 = tpu.matmul %199, %200, %cst_95 {dimension_numbers = #tpu.dot_dimension_numbers<[1], [0], [0], [1], [0, 0, 1, 1], [], []>} : vector<8x8xbf16>, vector<8x512xbf16>, vector<8x512xf32> -> vector<8x512xf32>
    %202 = arith.addf %194, %201 : vector<8x512xf32>
    %c496_i32_96 = arith.constant 496 : i32
    %203 = tpu.dynamic_rotate %74 by %c496_i32_96 dim 1 : vector<8x512xf32>, i32 -> vector<8x512xf32>
    %204 = vector.extract_strided_slice %0 {offsets = [6, 0], sizes = [1, 512], strides = [1, 1]} : vector<8x512xf32> to vector<1x512xf32>
    %205 = vector.broadcast %204 : vector<1x512xf32> to vector<8x512xf32>
    %206 = arith.mulf %203, %205 : vector<8x512xf32>
    %c56_97 = arith.constant 56 : index
    %c0_98 = arith.constant 0 : index
    %207 = vector.load %arg9[%c56_97, %c0_98] : memref<72x8xbf16, #tpu.memory_space<vmem>>, vector<8x8xbf16>
    %208 = arith.truncf %206 : vector<8x512xf32> to vector<8x512xbf16>
    %cst_99 = arith.constant dense<0.000000e+00> : vector<8x512xf32>
    %209 = tpu.matmul %207, %208, %cst_99 {dimension_numbers = #tpu.dot_dimension_numbers<[1], [0], [0], [1], [0, 0, 1, 1], [], []>} : vector<8x8xbf16>, vector<8x512xbf16>, vector<8x512xf32> -> vector<8x512xf32>
    %210 = arith.addf %202, %209 : vector<8x512xf32>
    %c495_i32_100 = arith.constant 495 : i32
    %211 = tpu.dynamic_rotate %74 by %c495_i32_100 dim 1 : vector<8x512xf32>, i32 -> vector<8x512xf32>
    %212 = vector.extract_strided_slice %0 {offsets = [7, 0], sizes = [1, 512], strides = [1, 1]} : vector<8x512xf32> to vector<1x512xf32>
    %213 = vector.broadcast %212 : vector<1x512xf32> to vector<8x512xf32>
    %214 = arith.mulf %211, %213 : vector<8x512xf32>
    %c64_101 = arith.constant 64 : index
    %c0_102 = arith.constant 0 : index
    %215 = vector.load %arg9[%c64_101, %c0_102] : memref<72x8xbf16, #tpu.memory_space<vmem>>, vector<8x8xbf16>
    %216 = arith.truncf %214 : vector<8x512xf32> to vector<8x512xbf16>
    %cst_103 = arith.constant dense<0.000000e+00> : vector<8x512xf32>
    %217 = tpu.matmul %215, %216, %cst_103 {dimension_numbers = #tpu.dot_dimension_numbers<[1], [0], [0], [1], [0, 0, 1, 1], [], []>} : vector<8x8xbf16>, vector<8x512xbf16>, vector<8x512xf32> -> vector<8x512xf32>
    %218 = arith.addf %210, %217 : vector<8x512xf32>
    %c32_104 = arith.constant 32 : index
    %c0_105 = arith.constant 0 : index
    %219 = vector.load %arg10[%c32_104, %c0_105] : memref<72x8xbf16, #tpu.memory_space<vmem>>, vector<8x8xbf16>
    %220 = arith.truncf %151 : vector<8x512xf32> to vector<8x512xbf16>
    %cst_106 = arith.constant dense<0.000000e+00> : vector<8x512xf32>
    %221 = tpu.matmul %219, %220, %cst_106 {dimension_numbers = #tpu.dot_dimension_numbers<[1], [0], [0], [1], [0, 0, 1, 1], [], []>} : vector<8x8xbf16>, vector<8x512xbf16>, vector<8x512xf32> -> vector<8x512xf32>
    %c17_i32_107 = arith.constant 17 : i32
    %222 = tpu.dynamic_rotate %151 by %c17_i32_107 dim 1 : vector<8x512xf32>, i32 -> vector<8x512xf32>
    %223 = vector.extract_strided_slice %0 {offsets = [0, 0], sizes = [1, 512], strides = [1, 1]} : vector<8x512xf32> to vector<1x512xf32>
    %224 = vector.broadcast %223 : vector<1x512xf32> to vector<8x512xf32>
    %225 = arith.mulf %222, %224 : vector<8x512xf32>
    %c0_108 = arith.constant 0 : index
    %c0_109 = arith.constant 0 : index
    %226 = vector.load %arg10[%c0_108, %c0_109] : memref<72x8xbf16, #tpu.memory_space<vmem>>, vector<8x8xbf16>
    %227 = arith.truncf %225 : vector<8x512xf32> to vector<8x512xbf16>
    %cst_110 = arith.constant dense<0.000000e+00> : vector<8x512xf32>
    %228 = tpu.matmul %226, %227, %cst_110 {dimension_numbers = #tpu.dot_dimension_numbers<[1], [0], [0], [1], [0, 0, 1, 1], [], []>} : vector<8x8xbf16>, vector<8x512xbf16>, vector<8x512xf32> -> vector<8x512xf32>
    %229 = arith.addf %221, %228 : vector<8x512xf32>
    %c16_i32_111 = arith.constant 16 : i32
    %230 = tpu.dynamic_rotate %151 by %c16_i32_111 dim 1 : vector<8x512xf32>, i32 -> vector<8x512xf32>
    %231 = vector.extract_strided_slice %0 {offsets = [1, 0], sizes = [1, 512], strides = [1, 1]} : vector<8x512xf32> to vector<1x512xf32>
    %232 = vector.broadcast %231 : vector<1x512xf32> to vector<8x512xf32>
    %233 = arith.mulf %230, %232 : vector<8x512xf32>
    %c8_112 = arith.constant 8 : index
    %c0_113 = arith.constant 0 : index
    %234 = vector.load %arg10[%c8_112, %c0_113] : memref<72x8xbf16, #tpu.memory_space<vmem>>, vector<8x8xbf16>
    %235 = arith.truncf %233 : vector<8x512xf32> to vector<8x512xbf16>
    %cst_114 = arith.constant dense<0.000000e+00> : vector<8x512xf32>
    %236 = tpu.matmul %234, %235, %cst_114 {dimension_numbers = #tpu.dot_dimension_numbers<[1], [0], [0], [1], [0, 0, 1, 1], [], []>} : vector<8x8xbf16>, vector<8x512xbf16>, vector<8x512xf32> -> vector<8x512xf32>
    %237 = arith.addf %229, %236 : vector<8x512xf32>
    %c15_i32_115 = arith.constant 15 : i32
    %238 = tpu.dynamic_rotate %151 by %c15_i32_115 dim 1 : vector<8x512xf32>, i32 -> vector<8x512xf32>
    %239 = vector.extract_strided_slice %0 {offsets = [2, 0], sizes = [1, 512], strides = [1, 1]} : vector<8x512xf32> to vector<1x512xf32>
    %240 = vector.broadcast %239 : vector<1x512xf32> to vector<8x512xf32>
    %241 = arith.mulf %238, %240 : vector<8x512xf32>
    %c16_116 = arith.constant 16 : index
    %c0_117 = arith.constant 0 : index
    %242 = vector.load %arg10[%c16_116, %c0_117] : memref<72x8xbf16, #tpu.memory_space<vmem>>, vector<8x8xbf16>
    %243 = arith.truncf %241 : vector<8x512xf32> to vector<8x512xbf16>
    %cst_118 = arith.constant dense<0.000000e+00> : vector<8x512xf32>
    %244 = tpu.matmul %242, %243, %cst_118 {dimension_numbers = #tpu.dot_dimension_numbers<[1], [0], [0], [1], [0, 0, 1, 1], [], []>} : vector<8x8xbf16>, vector<8x512xbf16>, vector<8x512xf32> -> vector<8x512xf32>
    %245 = arith.addf %237, %244 : vector<8x512xf32>
    %c1_i32_119 = arith.constant 1 : i32
    %246 = tpu.dynamic_rotate %151 by %c1_i32_119 dim 1 : vector<8x512xf32>, i32 -> vector<8x512xf32>
    %247 = vector.extract_strided_slice %0 {offsets = [3, 0], sizes = [1, 512], strides = [1, 1]} : vector<8x512xf32> to vector<1x512xf32>
    %248 = vector.broadcast %247 : vector<1x512xf32> to vector<8x512xf32>
    %249 = arith.mulf %246, %248 : vector<8x512xf32>
    %c24_120 = arith.constant 24 : index
    %c0_121 = arith.constant 0 : index
    %250 = vector.load %arg10[%c24_120, %c0_121] : memref<72x8xbf16, #tpu.memory_space<vmem>>, vector<8x8xbf16>
    %251 = arith.truncf %249 : vector<8x512xf32> to vector<8x512xbf16>
    %cst_122 = arith.constant dense<0.000000e+00> : vector<8x512xf32>
    %252 = tpu.matmul %250, %251, %cst_122 {dimension_numbers = #tpu.dot_dimension_numbers<[1], [0], [0], [1], [0, 0, 1, 1], [], []>} : vector<8x8xbf16>, vector<8x512xbf16>, vector<8x512xf32> -> vector<8x512xf32>
    %253 = arith.addf %245, %252 : vector<8x512xf32>
    %c511_i32_123 = arith.constant 511 : i32
    %254 = tpu.dynamic_rotate %151 by %c511_i32_123 dim 1 : vector<8x512xf32>, i32 -> vector<8x512xf32>
    %255 = vector.extract_strided_slice %0 {offsets = [4, 0], sizes = [1, 512], strides = [1, 1]} : vector<8x512xf32> to vector<1x512xf32>
    %256 = vector.broadcast %255 : vector<1x512xf32> to vector<8x512xf32>
    %257 = arith.mulf %254, %256 : vector<8x512xf32>
    %c40_124 = arith.constant 40 : index
    %c0_125 = arith.constant 0 : index
    %258 = vector.load %arg10[%c40_124, %c0_125] : memref<72x8xbf16, #tpu.memory_space<vmem>>, vector<8x8xbf16>
    %259 = arith.truncf %257 : vector<8x512xf32> to vector<8x512xbf16>
    %cst_126 = arith.constant dense<0.000000e+00> : vector<8x512xf32>
    %260 = tpu.matmul %258, %259, %cst_126 {dimension_numbers = #tpu.dot_dimension_numbers<[1], [0], [0], [1], [0, 0, 1, 1], [], []>} : vector<8x8xbf16>, vector<8x512xbf16>, vector<8x512xf32> -> vector<8x512xf32>
    %261 = arith.addf %253, %260 : vector<8x512xf32>
    %c497_i32_127 = arith.constant 497 : i32
    %262 = tpu.dynamic_rotate %151 by %c497_i32_127 dim 1 : vector<8x512xf32>, i32 -> vector<8x512xf32>
    %263 = vector.extract_strided_slice %0 {offsets = [5, 0], sizes = [1, 512], strides = [1, 1]} : vector<8x512xf32> to vector<1x512xf32>
    %264 = vector.broadcast %263 : vector<1x512xf32> to vector<8x512xf32>
    %265 = arith.mulf %262, %264 : vector<8x512xf32>
    %c48_128 = arith.constant 48 : index
    %c0_129 = arith.constant 0 : index
    %266 = vector.load %arg10[%c48_128, %c0_129] : memref<72x8xbf16, #tpu.memory_space<vmem>>, vector<8x8xbf16>
    %267 = arith.truncf %265 : vector<8x512xf32> to vector<8x512xbf16>
    %cst_130 = arith.constant dense<0.000000e+00> : vector<8x512xf32>
    %268 = tpu.matmul %266, %267, %cst_130 {dimension_numbers = #tpu.dot_dimension_numbers<[1], [0], [0], [1], [0, 0, 1, 1], [], []>} : vector<8x8xbf16>, vector<8x512xbf16>, vector<8x512xf32> -> vector<8x512xf32>
    %269 = arith.addf %261, %268 : vector<8x512xf32>
    %c496_i32_131 = arith.constant 496 : i32
    %270 = tpu.dynamic_rotate %151 by %c496_i32_131 dim 1 : vector<8x512xf32>, i32 -> vector<8x512xf32>
    %271 = vector.extract_strided_slice %0 {offsets = [6, 0], sizes = [1, 512], strides = [1, 1]} : vector<8x512xf32> to vector<1x512xf32>
    %272 = vector.broadcast %271 : vector<1x512xf32> to vector<8x512xf32>
    %273 = arith.mulf %270, %272 : vector<8x512xf32>
    %c56_132 = arith.constant 56 : index
    %c0_133 = arith.constant 0 : index
    %274 = vector.load %arg10[%c56_132, %c0_133] : memref<72x8xbf16, #tpu.memory_space<vmem>>, vector<8x8xbf16>
    %275 = arith.truncf %273 : vector<8x512xf32> to vector<8x512xbf16>
    %cst_134 = arith.constant dense<0.000000e+00> : vector<8x512xf32>
    %276 = tpu.matmul %274, %275, %cst_134 {dimension_numbers = #tpu.dot_dimension_numbers<[1], [0], [0], [1], [0, 0, 1, 1], [], []>} : vector<8x8xbf16>, vector<8x512xbf16>, vector<8x512xf32> -> vector<8x512xf32>
    %277 = arith.addf %269, %276 : vector<8x512xf32>
    %c495_i32_135 = arith.constant 495 : i32
    %278 = tpu.dynamic_rotate %151 by %c495_i32_135 dim 1 : vector<8x512xf32>, i32 -> vector<8x512xf32>
    %279 = vector.extract_strided_slice %0 {offsets = [7, 0], sizes = [1, 512], strides = [1, 1]} : vector<8x512xf32> to vector<1x512xf32>
    %280 = vector.broadcast %279 : vector<1x512xf32> to vector<8x512xf32>
    %281 = arith.mulf %278, %280 : vector<8x512xf32>
    %c64_136 = arith.constant 64 : index
    %c0_137 = arith.constant 0 : index
    %282 = vector.load %arg10[%c64_136, %c0_137] : memref<72x8xbf16, #tpu.memory_space<vmem>>, vector<8x8xbf16>
    %283 = arith.truncf %281 : vector<8x512xf32> to vector<8x512xbf16>
    %cst_138 = arith.constant dense<0.000000e+00> : vector<8x512xf32>
    %284 = tpu.matmul %282, %283, %cst_138 {dimension_numbers = #tpu.dot_dimension_numbers<[1], [0], [0], [1], [0, 0, 1, 1], [], []>} : vector<8x8xbf16>, vector<8x512xbf16>, vector<8x512xf32> -> vector<8x512xf32>
    %285 = arith.addf %277, %284 : vector<8x512xf32>
    %286 = arith.addf %218, %285 : vector<8x512xf32>
    %c0_139 = arith.constant 0 : index
    %c0_140 = arith.constant 0 : index
    %287 = vector.load %arg11[%c0_139, %c0_140] : memref<8x1xf32, #tpu.memory_space<vmem>>, vector<8x1xf32>
    %288 = vector.broadcast %287 : vector<8x1xf32> to vector<8x512xf32>
    %289 = arith.addf %286, %288 : vector<8x512xf32>
    %cst_141 = arith.constant 0.000000e+00 : f32
    %290 = vector.broadcast %cst_141 : f32 to vector<8x512xf32>
    %291 = arith.maximumf %289, %290 : vector<8x512xf32>
    %c4 = arith.constant 4 : index
    %c0_142 = arith.constant 0 : index
    %292 = vector.load %arg12[%c4, %c0_142] : memref<9x8xbf16, #tpu.memory_space<vmem>>, vector<1x8xbf16>
    %293 = arith.truncf %291 : vector<8x512xf32> to vector<8x512xbf16>
    %cst_143 = arith.constant dense<0.000000e+00> : vector<1x512xf32>
    %294 = tpu.matmul %292, %293, %cst_143 {dimension_numbers = #tpu.dot_dimension_numbers<[1], [0], [0], [1], [0, 0, 1, 1], [], []>} : vector<1x8xbf16>, vector<8x512xbf16>, vector<1x512xf32> -> vector<1x512xf32>
    %c17_i32_144 = arith.constant 17 : i32
    %295 = tpu.dynamic_rotate %291 by %c17_i32_144 dim 1 : vector<8x512xf32>, i32 -> vector<8x512xf32>
    %296 = vector.extract_strided_slice %0 {offsets = [0, 0], sizes = [1, 512], strides = [1, 1]} : vector<8x512xf32> to vector<1x512xf32>
    %297 = vector.broadcast %296 : vector<1x512xf32> to vector<8x512xf32>
    %298 = arith.mulf %295, %297 : vector<8x512xf32>
    %c0_145 = arith.constant 0 : index
    %c0_146 = arith.constant 0 : index
    %299 = vector.load %arg12[%c0_145, %c0_146] : memref<9x8xbf16, #tpu.memory_space<vmem>>, vector<1x8xbf16>
    %300 = arith.truncf %298 : vector<8x512xf32> to vector<8x512xbf16>
    %cst_147 = arith.constant dense<0.000000e+00> : vector<1x512xf32>
    %301 = tpu.matmul %299, %300, %cst_147 {dimension_numbers = #tpu.dot_dimension_numbers<[1], [0], [0], [1], [0, 0, 1, 1], [], []>} : vector<1x8xbf16>, vector<8x512xbf16>, vector<1x512xf32> -> vector<1x512xf32>
    %302 = arith.addf %294, %301 : vector<1x512xf32>
    %c16_i32_148 = arith.constant 16 : i32
    %303 = tpu.dynamic_rotate %291 by %c16_i32_148 dim 1 : vector<8x512xf32>, i32 -> vector<8x512xf32>
    %304 = vector.extract_strided_slice %0 {offsets = [1, 0], sizes = [1, 512], strides = [1, 1]} : vector<8x512xf32> to vector<1x512xf32>
    %305 = vector.broadcast %304 : vector<1x512xf32> to vector<8x512xf32>
    %306 = arith.mulf %303, %305 : vector<8x512xf32>
    %c1 = arith.constant 1 : index
    %c0_149 = arith.constant 0 : index
    %307 = vector.load %arg12[%c1, %c0_149] : memref<9x8xbf16, #tpu.memory_space<vmem>>, vector<1x8xbf16>
    %308 = arith.truncf %306 : vector<8x512xf32> to vector<8x512xbf16>
    %cst_150 = arith.constant dense<0.000000e+00> : vector<1x512xf32>
    %309 = tpu.matmul %307, %308, %cst_150 {dimension_numbers = #tpu.dot_dimension_numbers<[1], [0], [0], [1], [0, 0, 1, 1], [], []>} : vector<1x8xbf16>, vector<8x512xbf16>, vector<1x512xf32> -> vector<1x512xf32>
    %310 = arith.addf %302, %309 : vector<1x512xf32>
    %c15_i32_151 = arith.constant 15 : i32
    %311 = tpu.dynamic_rotate %291 by %c15_i32_151 dim 1 : vector<8x512xf32>, i32 -> vector<8x512xf32>
    %312 = vector.extract_strided_slice %0 {offsets = [2, 0], sizes = [1, 512], strides = [1, 1]} : vector<8x512xf32> to vector<1x512xf32>
    %313 = vector.broadcast %312 : vector<1x512xf32> to vector<8x512xf32>
    %314 = arith.mulf %311, %313 : vector<8x512xf32>
    %c2 = arith.constant 2 : index
    %c0_152 = arith.constant 0 : index
    %315 = vector.load %arg12[%c2, %c0_152] : memref<9x8xbf16, #tpu.memory_space<vmem>>, vector<1x8xbf16>
    %316 = arith.truncf %314 : vector<8x512xf32> to vector<8x512xbf16>
    %cst_153 = arith.constant dense<0.000000e+00> : vector<1x512xf32>
    %317 = tpu.matmul %315, %316, %cst_153 {dimension_numbers = #tpu.dot_dimension_numbers<[1], [0], [0], [1], [0, 0, 1, 1], [], []>} : vector<1x8xbf16>, vector<8x512xbf16>, vector<1x512xf32> -> vector<1x512xf32>
    %318 = arith.addf %310, %317 : vector<1x512xf32>
    %c1_i32_154 = arith.constant 1 : i32
    %319 = tpu.dynamic_rotate %291 by %c1_i32_154 dim 1 : vector<8x512xf32>, i32 -> vector<8x512xf32>
    %320 = vector.extract_strided_slice %0 {offsets = [3, 0], sizes = [1, 512], strides = [1, 1]} : vector<8x512xf32> to vector<1x512xf32>
    %321 = vector.broadcast %320 : vector<1x512xf32> to vector<8x512xf32>
    %322 = arith.mulf %319, %321 : vector<8x512xf32>
    %c3 = arith.constant 3 : index
    %c0_155 = arith.constant 0 : index
    %323 = vector.load %arg12[%c3, %c0_155] : memref<9x8xbf16, #tpu.memory_space<vmem>>, vector<1x8xbf16>
    %324 = arith.truncf %322 : vector<8x512xf32> to vector<8x512xbf16>
    %cst_156 = arith.constant dense<0.000000e+00> : vector<1x512xf32>
    %325 = tpu.matmul %323, %324, %cst_156 {dimension_numbers = #tpu.dot_dimension_numbers<[1], [0], [0], [1], [0, 0, 1, 1], [], []>} : vector<1x8xbf16>, vector<8x512xbf16>, vector<1x512xf32> -> vector<1x512xf32>
    %326 = arith.addf %318, %325 : vector<1x512xf32>
    %c511_i32_157 = arith.constant 511 : i32
    %327 = tpu.dynamic_rotate %291 by %c511_i32_157 dim 1 : vector<8x512xf32>, i32 -> vector<8x512xf32>
    %328 = vector.extract_strided_slice %0 {offsets = [4, 0], sizes = [1, 512], strides = [1, 1]} : vector<8x512xf32> to vector<1x512xf32>
    %329 = vector.broadcast %328 : vector<1x512xf32> to vector<8x512xf32>
    %330 = arith.mulf %327, %329 : vector<8x512xf32>
    %c5 = arith.constant 5 : index
    %c0_158 = arith.constant 0 : index
    %331 = vector.load %arg12[%c5, %c0_158] : memref<9x8xbf16, #tpu.memory_space<vmem>>, vector<1x8xbf16>
    %332 = arith.truncf %330 : vector<8x512xf32> to vector<8x512xbf16>
    %cst_159 = arith.constant dense<0.000000e+00> : vector<1x512xf32>
    %333 = tpu.matmul %331, %332, %cst_159 {dimension_numbers = #tpu.dot_dimension_numbers<[1], [0], [0], [1], [0, 0, 1, 1], [], []>} : vector<1x8xbf16>, vector<8x512xbf16>, vector<1x512xf32> -> vector<1x512xf32>
    %334 = arith.addf %326, %333 : vector<1x512xf32>
    %c497_i32_160 = arith.constant 497 : i32
    %335 = tpu.dynamic_rotate %291 by %c497_i32_160 dim 1 : vector<8x512xf32>, i32 -> vector<8x512xf32>
    %336 = vector.extract_strided_slice %0 {offsets = [5, 0], sizes = [1, 512], strides = [1, 1]} : vector<8x512xf32> to vector<1x512xf32>
    %337 = vector.broadcast %336 : vector<1x512xf32> to vector<8x512xf32>
    %338 = arith.mulf %335, %337 : vector<8x512xf32>
    %c6 = arith.constant 6 : index
    %c0_161 = arith.constant 0 : index
    %339 = vector.load %arg12[%c6, %c0_161] : memref<9x8xbf16, #tpu.memory_space<vmem>>, vector<1x8xbf16>
    %340 = arith.truncf %338 : vector<8x512xf32> to vector<8x512xbf16>
    %cst_162 = arith.constant dense<0.000000e+00> : vector<1x512xf32>
    %341 = tpu.matmul %339, %340, %cst_162 {dimension_numbers = #tpu.dot_dimension_numbers<[1], [0], [0], [1], [0, 0, 1, 1], [], []>} : vector<1x8xbf16>, vector<8x512xbf16>, vector<1x512xf32> -> vector<1x512xf32>
    %342 = arith.addf %334, %341 : vector<1x512xf32>
    %c496_i32_163 = arith.constant 496 : i32
    %343 = tpu.dynamic_rotate %291 by %c496_i32_163 dim 1 : vector<8x512xf32>, i32 -> vector<8x512xf32>
    %344 = vector.extract_strided_slice %0 {offsets = [6, 0], sizes = [1, 512], strides = [1, 1]} : vector<8x512xf32> to vector<1x512xf32>
    %345 = vector.broadcast %344 : vector<1x512xf32> to vector<8x512xf32>
    %346 = arith.mulf %343, %345 : vector<8x512xf32>
    %c7 = arith.constant 7 : index
    %c0_164 = arith.constant 0 : index
    %347 = vector.load %arg12[%c7, %c0_164] : memref<9x8xbf16, #tpu.memory_space<vmem>>, vector<1x8xbf16>
    %348 = arith.truncf %346 : vector<8x512xf32> to vector<8x512xbf16>
    %cst_165 = arith.constant dense<0.000000e+00> : vector<1x512xf32>
    %349 = tpu.matmul %347, %348, %cst_165 {dimension_numbers = #tpu.dot_dimension_numbers<[1], [0], [0], [1], [0, 0, 1, 1], [], []>} : vector<1x8xbf16>, vector<8x512xbf16>, vector<1x512xf32> -> vector<1x512xf32>
    %350 = arith.addf %342, %349 : vector<1x512xf32>
    %c495_i32_166 = arith.constant 495 : i32
    %351 = tpu.dynamic_rotate %291 by %c495_i32_166 dim 1 : vector<8x512xf32>, i32 -> vector<8x512xf32>
    %352 = vector.extract_strided_slice %0 {offsets = [7, 0], sizes = [1, 512], strides = [1, 1]} : vector<8x512xf32> to vector<1x512xf32>
    %353 = vector.broadcast %352 : vector<1x512xf32> to vector<8x512xf32>
    %354 = arith.mulf %351, %353 : vector<8x512xf32>
    %c8_167 = arith.constant 8 : index
    %c0_168 = arith.constant 0 : index
    %355 = vector.load %arg12[%c8_167, %c0_168] : memref<9x8xbf16, #tpu.memory_space<vmem>>, vector<1x8xbf16>
    %356 = arith.truncf %354 : vector<8x512xf32> to vector<8x512xbf16>
    %cst_169 = arith.constant dense<0.000000e+00> : vector<1x512xf32>
    %357 = tpu.matmul %355, %356, %cst_169 {dimension_numbers = #tpu.dot_dimension_numbers<[1], [0], [0], [1], [0, 0, 1, 1], [], []>} : vector<1x8xbf16>, vector<8x512xbf16>, vector<1x512xf32> -> vector<1x512xf32>
    %358 = arith.addf %350, %357 : vector<1x512xf32>
    %c0_170 = arith.constant 0 : index
    %c0_171 = arith.constant 0 : index
    %359 = vector.load %arg13[%c0_170, %c0_171] : memref<1x1xf32, #tpu.memory_space<vmem>>, vector<1x1xf32>
    %360 = vector.broadcast %359 : vector<1x1xf32> to vector<1x512xf32>
    %361 = arith.addf %358, %360 : vector<1x512xf32>
    %362 = math.exp %361 : vector<1x512xf32>
    %cst_172 = arith.constant 1.000000e+00 : f32
    %363 = vector.broadcast %cst_172 : f32 to vector<1x512xf32>
    %364 = arith.addf %363, %362 : vector<1x512xf32>
    %365 = tpu.reciprocal %364 : vector<1x512xf32> -> vector<1x512xf32>
    %366 = arith.subf %74, %151 : vector<8x512xf32>
    %367 = vector.broadcast %365 : vector<1x512xf32> to vector<8x512xf32>
    %368 = arith.mulf %366, %367 : vector<8x512xf32>
    %369 = arith.addf %151, %368 : vector<8x512xf32>
    %c0_173 = arith.constant 0 : index
    %c0_174 = arith.constant 0 : index
    %c0_175 = arith.constant 0 : index
    %370 = vector.load %arg14[%c0_173, %c0_174, %c0_175] : memref<1x8x512xf32, #tpu.memory_space<vmem>>, vector<1x8x512xf32>
    %371 = vector.shape_cast %370 : vector<1x8x512xf32> to vector<8x512xf32>
    %372 = vector.shape_cast %369 : vector<8x512xf32> to vector<1x8x512xf32>
    tpu.vector_store %arg14[%c0_173, %c0_174, %c0_175], %372 {strides = array<i32>} : memref<1x8x512xf32, #tpu.memory_space<vmem>>, vector<1x8x512xf32>,
    return
  }
  func.func @transform_0(%arg0: i32) -> (i32, i32, i32) {
    %c0_i32 = arith.constant 0 : i32
    %c0_i32_0 = arith.constant 0 : i32
    %c0_i32_1 = arith.constant 0 : i32
    return %arg0, %c0_i32, %c0_i32_0 : i32, i32, i32
  }
  func.func @transform_1(%arg0: i32) -> (i32, i32, i32) {
    %c0_i32 = arith.constant 0 : i32
    %c0_i32_0 = arith.constant 0 : i32
    %c0_i32_1 = arith.constant 0 : i32
    return %arg0, %c0_i32, %c0_i32_0 : i32, i32, i32
  }
  func.func @transform_2(%arg0: i32) -> (i32, i32) {
    %c0_i32 = arith.constant 0 : i32
    %c0_i32_0 = arith.constant 0 : i32
    %c0_i32_1 = arith.constant 0 : i32
    return %c0_i32, %c0_i32_0 : i32, i32
  }
  func.func @transform_3(%arg0: i32) -> (i32, i32) {
    %c0_i32 = arith.constant 0 : i32
    %c0_i32_0 = arith.constant 0 : i32
    %c0_i32_1 = arith.constant 0 : i32
    return %c0_i32, %c0_i32_0 : i32, i32
  }
  func.func @transform_4(%arg0: i32) -> (i32, i32) {
    %c0_i32 = arith.constant 0 : i32
    %c0_i32_0 = arith.constant 0 : i32
    %c0_i32_1 = arith.constant 0 : i32
    return %c0_i32, %c0_i32_0 : i32, i32
  }
  func.func @transform_5(%arg0: i32) -> (i32, i32) {
    %c0_i32 = arith.constant 0 : i32
    %c0_i32_0 = arith.constant 0 : i32
    %c0_i32_1 = arith.constant 0 : i32
    return %c0_i32, %c0_i32_0 : i32, i32
  }
  func.func @transform_6(%arg0: i32) -> (i32, i32) {
    %c0_i32 = arith.constant 0 : i32
    %c0_i32_0 = arith.constant 0 : i32
    %c0_i32_1 = arith.constant 0 : i32
    return %c0_i32, %c0_i32_0 : i32, i32
  }
  func.func @transform_7(%arg0: i32) -> (i32, i32) {
    %c0_i32 = arith.constant 0 : i32
    %c0_i32_0 = arith.constant 0 : i32
    %c0_i32_1 = arith.constant 0 : i32
    return %c0_i32, %c0_i32_0 : i32, i32
  }
  func.func @transform_8(%arg0: i32) -> (i32, i32) {
    %c0_i32 = arith.constant 0 : i32
    %c0_i32_0 = arith.constant 0 : i32
    %c0_i32_1 = arith.constant 0 : i32
    return %c0_i32, %c0_i32_0 : i32, i32
  }
  func.func @transform_9(%arg0: i32) -> (i32, i32) {
    %c0_i32 = arith.constant 0 : i32
    %c0_i32_0 = arith.constant 0 : i32
    %c0_i32_1 = arith.constant 0 : i32
    return %c0_i32, %c0_i32_0 : i32, i32
  }
  func.func @transform_10(%arg0: i32) -> (i32, i32) {
    %c0_i32 = arith.constant 0 : i32
    %c0_i32_0 = arith.constant 0 : i32
    %c0_i32_1 = arith.constant 0 : i32
    return %c0_i32, %c0_i32_0 : i32, i32
  }
  func.func @transform_11(%arg0: i32) -> (i32, i32) {
    %c0_i32 = arith.constant 0 : i32
    %c0_i32_0 = arith.constant 0 : i32
    %c0_i32_1 = arith.constant 0 : i32
    return %c0_i32, %c0_i32_0 : i32, i32
  }
  func.func @transform_12(%arg0: i32) -> (i32, i32) {
    %c0_i32 = arith.constant 0 : i32
    %c0_i32_0 = arith.constant 0 : i32
    %c0_i32_1 = arith.constant 0 : i32
    return %c0_i32, %c0_i32_0 : i32, i32
  }
  func.func @transform_13(%arg0: i32) -> (i32, i32, i32) {
    %c0_i32 = arith.constant 0 : i32
    %c0_i32_0 = arith.constant 0 : i32
    %c0_i32_1 = arith.constant 0 : i32
    return %arg0, %c0_i32, %c0_i32_0 : i32, i32, i32
  }
}

</mosaic_0001>

<llo_original>
// kernel: att_merge_forward.1
$region0: #{att_merge_forward.1}
  #allocation0 [shape = 'u32[]', space=smem, size = 0x4, offset = 0x4, fixed_abs, tag = 'smem constant byte address 0x4 - core index']
  #allocation1 [shape = 'u32[72,128]{1,0:T(1,128)}', space=vmem, size = 0x9000, scoped, tag = 'internal scratch']
  #allocation2 [shape = 'f32[1,1]{1,0:T(1,128)S(1)}', space=vmem, size = 0x200, scoped, tag = 'scoped memory for att_merge_forward.1']
  %s0 = inlined_call_operand.vmem [shape: f32[2,8,512], index: 0, kind: input, shape index: {}]
  %s1 = inlined_call_operand.vmem [shape: f32[2,16,128], index: 1, kind: input, shape index: {}]
  %s2 = inlined_call_operand.vmem [shape: f32[8,512], index: 2, kind: input, shape index: {}]
  %s3 = inlined_call_operand.vmem [shape: bf16[128,512], index: 3, kind: input, shape index: {}]
  %s4 = inlined_call_operand.vmem [shape: bf16[72,8], index: 4, kind: input, shape index: {}]
  %s5 = inlined_call_operand.vmem [shape: f32[8,1], index: 5, kind: input, shape index: {}]
  %s6 = inlined_call_operand.vmem [shape: bf16[72,16], index: 6, kind: input, shape index: {}]
  %s7 = inlined_call_operand.vmem [shape: f32[8,1], index: 7, kind: input, shape index: {}]
  %s8 = inlined_call_operand.vmem [shape: bf16[72,8], index: 8, kind: input, shape index: {}]
  %s9 = inlined_call_operand.vmem [shape: bf16[72,8], index: 9, kind: input, shape index: {}]
  %s10 = inlined_call_operand.vmem [shape: f32[8,1], index: 10, kind: input, shape index: {}]
  %s11 = inlined_call_operand.vmem [shape: bf16[9,8], index: 11, kind: input, shape index: {}]
  %s12 = inlined_call_operand.<no memory space> [shape: f32[1,1], index: 12, kind: input, shape index: {}]
  %s13 = inlined_call_operand.vmem [shape: f32[2,8,512], index: 13, kind: output, shape index: {}]
  %s14 = sld [smem:[#allocation0]]
  $region85: #{att_merge_forward.1} parent=0
    _
  %s16 = ssub.s32 1, %s14
  %s17 = scalar_select 0, %s16, %s14
  %v18 = vstv %s12
  %19 = vst [vmem:[#allocation2] sm:$0x1] %v18
  loop: start=0, step=1, limit=4
  $region2: #{att_merge_forward.1} parent=0 // loop_pre_header
    _
  $region3: #{att_merge_forward.1} parent=0 // loop_header
    %s21 = sphi 0, %s25
    %p22 = scmp.ge.s32.totalorder %s21, 4
    %s31 = sphi 0, %s33
    %s34 = sphi 0, %s31
    %s35 = sphi 0, %s34
    %s51 = sphi 0, %s35
    %s57 = sphi 0, %s59
    %s60 = sphi 0, %s57
    %s61 = sphi 0, %s60
    %s77 = sphi 0, %s61
    %s81 = sphi 0, %s81
    %s83 = sphi 0, %s81
    %s84 = sphi 0, %s83
    %s98 = sphi 0, %s84
    %s102 = sphi 0, %s102
    %s104 = sphi 0, %s102
    %s105 = sphi 0, %s104
    %s119 = sphi 0, %s105
    %s123 = sphi 0, %s123
    %s125 = sphi 0, %s123
    %s126 = sphi 0, %s125
    %s140 = sphi 0, %s126
    %s144 = sphi 0, %s144
    %s146 = sphi 0, %s144
    %s147 = sphi 0, %s146
    %s161 = sphi 0, %s147
    %s165 = sphi 0, %s165
    %s167 = sphi 0, %s165
    %s168 = sphi 0, %s167
    %s182 = sphi 0, %s168
    %s186 = sphi 0, %s186
    %s188 = sphi 0, %s186
    %s189 = sphi 0, %s188
    %s203 = sphi 0, %s189
    %s207 = sphi 0, %s207
    %s209 = sphi 0, %s207
    %s210 = sphi 0, %s209
    %s224 = sphi 0, %s210
    %s228 = sphi 0, %s228
    %s230 = sphi 0, %s228
    %s231 = sphi 0, %s230
    %s245 = sphi 0, %s231
    %s249 = sphi 0, %s249
    %s251 = sphi 0, %s249
    %s252 = sphi 0, %s251
    %s266 = sphi 0, %s252
    %s270 = sphi 0, %s270
    %s272 = sphi 0, %s270
    %s273 = sphi 0, %s272
    %s287 = sphi 0, %s273
    %s291 = sphi 0, %s291
    %s293 = sphi 0, %s291
    %s294 = sphi 0, %s293
    %s308 = sphi 0, %s294
    %s314 = sphi 0, %s316
    %s317 = sphi 0, %s314
    %s318 = sphi 0, %s317
    %s334 = sphi 0, %s318
  $region4: #{att_merge_forward.1} parent=0 // loop_header_branch
    %24 = sbr.rel (%p22) target = $region8
  $region5: #{att_merge_forward.1} parent=0 // loop_body
    %s26 = ssub.s32 %s21, 1
    %s27 = ssub.s32 %s21, 2
    %s28 = sadd.s32 %s21, 1
    %s29 = ssub.s32 %s21, %s28
    %p30 = scmp.eq.s32.totalorder %s29, 0
    %s32 = sadd.s32 %s31, 1
    %s33 = scalar_select %p30, %s31, %s32
    %p36 = pneg %p30
    %p37 = scmp.eq.s32.totalorder %s21, 1
    %p38 = por %p36, %p37
    %p39 = scmp.ne.s32.totalorder %s31, %s34
    %p40 = scmp.eq.s32.totalorder %s21, 0
    %p41 = por %p39, %p40
    %p42 = scmp.ne.s32.totalorder %s31, %s34
    %p43 = scmp.eq.s32.totalorder %s26, 1
    %p44 = por %p42, %p43
    %p45 = scmp.ne.s32.totalorder %s34, %s35
    %p46 = scmp.eq.s32.totalorder %s26, 0
    %p47 = por %p45, %p46
    %p48 = scmp.ne.s32.totalorder %s34, %s35
    %p49 = scmp.eq.s32.totalorder %s27, 1
    %p50 = por %p48, %p49
    %p52 = scmp.ne.s32.totalorder %s35, %s51
    %p53 = scmp.eq.s32.totalorder %s27, 0
    %p54 = por %p52, %p53
    %s55 = ssub.s32 %s21, %s28
    %p56 = scmp.eq.s32.totalorder %s55, 0
    %s58 = sadd.s32 %s57, 1
    %s59 = scalar_select %p56, %s57, %s58
    %p62 = pneg %p56
    %p63 = scmp.eq.s32.totalorder %s21, 1
    %p64 = por %p62, %p63
    %p65 = scmp.ne.s32.totalorder %s57, %s60
    %p66 = scmp.eq.s32.totalorder %s21, 0
    %p67 = por %p65, %p66
    %p68 = scmp.ne.s32.totalorder %s57, %s60
    %p69 = scmp.eq.s32.totalorder %s26, 1
    %p70 = por %p68, %p69
    %p71 = scmp.ne.s32.totalorder %s60, %s61
    %p72 = scmp.eq.s32.totalorder %s26, 0
    %p73 = por %p71, %p72
    %p74 = scmp.ne.s32.totalorder %s60, %s61
    %p75 = scmp.eq.s32.totalorder %s27, 1
    %p76 = por %p74, %p75
    %p78 = scmp.ne.s32.totalorder %s61, %s77
    %p79 = scmp.eq.s32.totalorder %s27, 0
    %p80 = por %p78, %p79
    %s82 = sadd.s32 %s81, 1
    %p85 = scmp.eq.s32.totalorder %s21, 1
    %p86 = scmp.ne.s32.totalorder %s81, %s83
    %p87 = scmp.eq.s32.totalorder %s21, 0
    %p88 = por %p86, %p87
    %p89 = scmp.ne.s32.totalorder %s81, %s83
    %p90 = scmp.eq.s32.totalorder %s26, 1
    %p91 = por %p89, %p90
    %p92 = scmp.ne.s32.totalorder %s83, %s84
    %p93 = scmp.eq.s32.totalorder %s26, 0
    %p94 = por %p92, %p93
    %p95 = scmp.ne.s32.totalorder %s83, %s84
    %p96 = scmp.eq.s32.totalorder %s27, 1
    %p97 = por %p95, %p96
    %p99 = scmp.ne.s32.totalorder %s84, %s98
    %p100 = scmp.eq.s32.totalorder %s27, 0
    %p101 = por %p99, %p100
    %s103 = sadd.s32 %s102, 1
    %p106 = scmp.eq.s32.totalorder %s21, 1
    %p107 = scmp.ne.s32.totalorder %s102, %s104
    %p108 = scmp.eq.s32.totalorder %s21, 0
    %p109 = por %p107, %p108
    %p110 = scmp.ne.s32.totalorder %s102, %s104
    %p111 = scmp.eq.s32.totalorder %s26, 1
    %p112 = por %p110, %p111
    %p113 = scmp.ne.s32.totalorder %s104, %s105
    %p114 = scmp.eq.s32.totalorder %s26, 0
    %p115 = por %p113, %p114
    %p116 = scmp.ne.s32.totalorder %s104, %s105
    %p117 = scmp.eq.s32.totalorder %s27, 1
    %p118 = por %p116, %p117
    %p120 = scmp.ne.s32.totalorder %s105, %s119
    %p121 = scmp.eq.s32.totalorder %s27, 0
    %p122 = por %p120, %p121
    %s124 = sadd.s32 %s123, 1
    %p127 = scmp.eq.s32.totalorder %s21, 1
    %p128 = scmp.ne.s32.totalorder %s123, %s125
    %p129 = scmp.eq.s32.totalorder %s21, 0
    %p130 = por %p128, %p129
    %p131 = scmp.ne.s32.totalorder %s123, %s125
    %p132 = scmp.eq.s32.totalorder %s26, 1
    %p133 = por %p131, %p132
    %p134 = scmp.ne.s32.totalorder %s125, %s126
    %p135 = scmp.eq.s32.totalorder %s26, 0
    %p136 = por %p134, %p135
    %p137 = scmp.ne.s32.totalorder %s125, %s126
    %p138 = scmp.eq.s32.totalorder %s27, 1
    %p139 = por %p137, %p138
    %p141 = scmp.ne.s32.totalorder %s126, %s140
    %p142 = scmp.eq.s32.totalorder %s27, 0
    %p143 = por %p141, %p142
    %s145 = sadd.s32 %s144, 1
    %p148 = scmp.eq.s32.totalorder %s21, 1
    %p149 = scmp.ne.s32.totalorder %s144, %s146
    %p150 = scmp.eq.s32.totalorder %s21, 0
    %p151 = por %p149, %p150
    %p152 = scmp.ne.s32.totalorder %s144, %s146
    %p153 = scmp.eq.s32.totalorder %s26, 1
    %p154 = por %p152, %p153
    %p155 = scmp.ne.s32.totalorder %s146, %s147
    %p156 = scmp.eq.s32.totalorder %s26, 0
    %p157 = por %p155, %p156
    %p158 = scmp.ne.s32.totalorder %s146, %s147
    %p159 = scmp.eq.s32.totalorder %s27, 1
    %p160 = por %p158, %p159
    %p162 = scmp.ne.s32.totalorder %s147, %s161
    %p163 = scmp.eq.s32.totalorder %s27, 0
    %p164 = por %p162, %p163
    %s166 = sadd.s32 %s165, 1
    %p169 = scmp.eq.s32.totalorder %s21, 1
    %p170 = scmp.ne.s32.totalorder %s165, %s167
    %p171 = scmp.eq.s32.totalorder %s21, 0
    %p172 = por %p170, %p171
    %p173 = scmp.ne.s32.totalorder %s165, %s167
    %p174 = scmp.eq.s32.totalorder %s26, 1
    %p175 = por %p173, %p174
    %p176 = scmp.ne.s32.totalorder %s167, %s168
    %p177 = scmp.eq.s32.totalorder %s26, 0
    %p178 = por %p176, %p177
    %p179 = scmp.ne.s32.totalorder %s167, %s168
    %p180 = scmp.eq.s32.totalorder %s27, 1
    %p181 = por %p179, %p180
    %p183 = scmp.ne.s32.totalorder %s168, %s182
    %p184 = scmp.eq.s32.totalorder %s27, 0
    %p185 = por %p183, %p184
    %s187 = sadd.s32 %s186, 1
    %p190 = scmp.eq.s32.totalorder %s21, 1
    %p191 = scmp.ne.s32.totalorder %s186, %s188
    %p192 = scmp.eq.s32.totalorder %s21, 0
    %p193 = por %p191, %p192
    %p194 = scmp.ne.s32.totalorder %s186, %s188
    %p195 = scmp.eq.s32.totalorder %s26, 1
    %p196 = por %p194, %p195
    %p197 = scmp.ne.s32.totalorder %s188, %s189
    %p198 = scmp.eq.s32.totalorder %s26, 0
    %p199 = por %p197, %p198
    %p200 = scmp.ne.s32.totalorder %s188, %s189
    %p201 = scmp.eq.s32.totalorder %s27, 1
    %p202 = por %p200, %p201
    %p204 = scmp.ne.s32.totalorder %s189, %s203
    %p205 = scmp.eq.s32.totalorder %s27, 0
    %p206 = por %p204, %p205
    %s208 = sadd.s32 %s207, 1
    %p211 = scmp.eq.s32.totalorder %s21, 1
    %p212 = scmp.ne.s32.totalorder %s207, %s209
    %p213 = scmp.eq.s32.totalorder %s21, 0
    %p214 = por %p212, %p213
    %p215 = scmp.ne.s32.totalorder %s207, %s209
    %p216 = scmp.eq.s32.totalorder %s26, 1
    %p217 = por %p215, %p216
    %p218 = scmp.ne.s32.totalorder %s209, %s210
    %p219 = scmp.eq.s32.totalorder %s26, 0
    %p220 = por %p218, %p219
    %p221 = scmp.ne.s32.totalorder %s209, %s210
    %p222 = scmp.eq.s32.totalorder %s27, 1
    %p223 = por %p221, %p222
    %p225 = scmp.ne.s32.totalorder %s210, %s224
    %p226 = scmp.eq.s32.totalorder %s27, 0
    %p227 = por %p225, %p226
    %s229 = sadd.s32 %s228, 1
    %p232 = scmp.eq.s32.totalorder %s21, 1
    %p233 = scmp.ne.s32.totalorder %s228, %s230
    %p234 = scmp.eq.s32.totalorder %s21, 0
    %p235 = por %p233, %p234
    %p236 = scmp.ne.s32.totalorder %s228, %s230
    %p237 = scmp.eq.s32.totalorder %s26, 1
    %p238 = por %p236, %p237
    %p239 = scmp.ne.s32.totalorder %s230, %s231
    %p240 = scmp.eq.s32.totalorder %s26, 0
    %p241 = por %p239, %p240
    %p242 = scmp.ne.s32.totalorder %s230, %s231
    %p243 = scmp.eq.s32.totalorder %s27, 1
    %p244 = por %p242, %p243
    %p246 = scmp.ne.s32.totalorder %s231, %s245
    %p247 = scmp.eq.s32.totalorder %s27, 0
    %p248 = por %p246, %p247
    %s250 = sadd.s32 %s249, 1
    %p253 = scmp.eq.s32.totalorder %s21, 1
    %p254 = scmp.ne.s32.totalorder %s249, %s251
    %p255 = scmp.eq.s32.totalorder %s21, 0
    %p256 = por %p254, %p255
    %p257 = scmp.ne.s32.totalorder %s249, %s251
    %p258 = scmp.eq.s32.totalorder %s26, 1
    %p259 = por %p257, %p258
    %p260 = scmp.ne.s32.totalorder %s251, %s252
    %p261 = scmp.eq.s32.totalorder %s26, 0
    %p262 = por %p260, %p261
    %p263 = scmp.ne.s32.totalorder %s251, %s252
    %p264 = scmp.eq.s32.totalorder %s27, 1
    %p265 = por %p263, %p264
    %p267 = scmp.ne.s32.totalorder %s252, %s266
    %p268 = scmp.eq.s32.totalorder %s27, 0
    %p269 = por %p267, %p268
    %s271 = sadd.s32 %s270, 1
    %p274 = scmp.eq.s32.totalorder %s21, 1
    %p275 = scmp.ne.s32.totalorder %s270, %s272
    %p276 = scmp.eq.s32.totalorder %s21, 0
    %p277 = por %p275, %p276
    %p278 = scmp.ne.s32.totalorder %s270, %s272
    %p279 = scmp.eq.s32.totalorder %s26, 1
    %p280 = por %p278, %p279
    %p281 = scmp.ne.s32.totalorder %s272, %s273
    %p282 = scmp.eq.s32.totalorder %s26, 0
    %p283 = por %p281, %p282
    %p284 = scmp.ne.s32.totalorder %s272, %s273
    %p285 = scmp.eq.s32.totalorder %s27, 1
    %p286 = por %p284, %p285
    %p288 = scmp.ne.s32.totalorder %s273, %s287
    %p289 = scmp.eq.s32.totalorder %s27, 0
    %p290 = por %p288, %p289
    %s292 = sadd.s32 %s291, 1
    %p295 = scmp.eq.s32.totalorder %s21, 1
    %p296 = scmp.ne.s32.totalorder %s291, %s293
    %p297 = scmp.eq.s32.totalorder %s21, 0
    %p298 = por %p296, %p297
    %p299 = scmp.ne.s32.totalorder %s291, %s293
    %p300 = scmp.eq.s32.totalorder %s26, 1
    %p301 = por %p299, %p300
    %p302 = scmp.ne.s32.totalorder %s293, %s294
    %p303 = scmp.eq.s32.totalorder %s26, 0
    %p304 = por %p302, %p303
    %p305 = scmp.ne.s32.totalorder %s293, %s294
    %p306 = scmp.eq.s32.totalorder %s27, 1
    %p307 = por %p305, %p306
    %p309 = scmp.ne.s32.totalorder %s294, %s308
    %p310 = scmp.eq.s32.totalorder %s27, 0
    %p311 = por %p309, %p310
    %s312 = ssub.s32 %s21, %s28
    %p313 = scmp.eq.s32.totalorder %s312, 0
    %s315 = sadd.s32 %s314, 1
    %s316 = scalar_select %p313, %s314, %s315
    %p319 = pneg %p313
    %p320 = scmp.eq.s32.totalorder %s21, 1
    %p321 = por %p319, %p320
    %p322 = scmp.ne.s32.totalorder %s314, %s317
    %p323 = scmp.eq.s32.totalorder %s21, 0
    %p324 = por %p322, %p323
    %p325 = scmp.ne.s32.totalorder %s314, %s317
    %p326 = scmp.eq.s32.totalorder %s26, 1
    %p327 = por %p325, %p326
    %p328 = scmp.ne.s32.totalorder %s317, %s318
    %p329 = scmp.eq.s32.totalorder %s26, 0
    %p330 = por %p328, %p329
    %p331 = scmp.ne.s32.totalorder %s317, %s318
    %p332 = scmp.eq.s32.totalorder %s27, 1
    %p333 = por %p331, %p332
    %p335 = scmp.ne.s32.totalorder %s318, %s334
    %p336 = scmp.eq.s32.totalorder %s27, 0
    %p337 = por %p335, %p336
    %p338 = scmp.le.s32.totalorder 1, %s21
    %p339 = scmp.lt.s32.totalorder %s21, 3
    %p340 = pnand %p338, %p339
    %p341 = pneg %p340
    // Predicated region
    $region9: #{att_merge_forward.1} parent=5 // pred_check
      _
    $region10: #{att_merge_forward.1} parent=5 // pred_check_branch
      %343 = sbr.rel (%p340) target = $region12
    $region11: #{att_merge_forward.1} parent=5 // pred_region
      %s344 = ssub.s32 %s21, 1
      // Predicated region
      $region13: #{att_merge_forward.1} parent=11 // pred_check
        %p345 = pneg %p94
      $region14: #{att_merge_forward.1} parent=11 // pred_check_branch
        %347 = sbr.rel (%p345) target = $region16
      $region15: #{att_merge_forward.1} parent=11 // pred_region
        _
      $region16: #{att_merge_forward.1} parent=11 // pred_fallthru
        _
      // Predicated region
      $region17: #{att_merge_forward.1} parent=11 // pred_check
        %p348 = pneg %p115
      $region18: #{att_merge_forward.1} parent=11 // pred_check_branch
        %350 = sbr.rel (%p348) target = $region20
      $region19: #{att_merge_forward.1} parent=11 // pred_region
        _
      $region20: #{att_merge_forward.1} parent=11 // pred_fallthru
        _
      // Predicated region
      $region21: #{att_merge_forward.1} parent=11 // pred_check
        %p351 = pneg %p136
      $region22: #{att_merge_forward.1} parent=11 // pred_check_branch
        %353 = sbr.rel (%p351) target = $region24
      $region23: #{att_merge_forward.1} parent=11 // pred_region
        _
      $region24: #{att_merge_forward.1} parent=11 // pred_fallthru
        _
      // Predicated region
      $region25: #{att_merge_forward.1} parent=11 // pred_check
        %p354 = pneg %p157
      $region26: #{att_merge_forward.1} parent=11 // pred_check_branch
        %356 = sbr.rel (%p354) target = $region28
      $region27: #{att_merge_forward.1} parent=11 // pred_region
        _
      $region28: #{att_merge_forward.1} parent=11 // pred_fallthru
        _
      // Predicated region
      $region29: #{att_merge_forward.1} parent=11 // pred_check
        %p357 = pneg %p178
      $region30: #{att_merge_forward.1} parent=11 // pred_check_branch
        %359 = sbr.rel (%p357) target = $region32
      $region31: #{att_merge_forward.1} parent=11 // pred_region
        _
      $region32: #{att_merge_forward.1} parent=11 // pred_fallthru
        _
      // Predicated region
      $region33: #{att_merge_forward.1} parent=11 // pred_check
        %p360 = pneg %p199
      $region34: #{att_merge_forward.1} parent=11 // pred_check_branch
        %362 = sbr.rel (%p360) target = $region36
      $region35: #{att_merge_forward.1} parent=11 // pred_region
        _
      $region36: #{att_merge_forward.1} parent=11 // pred_fallthru
        _
      // Predicated region
      $region37: #{att_merge_forward.1} parent=11 // pred_check
        %p363 = pneg %p220
      $region38: #{att_merge_forward.1} parent=11 // pred_check_branch
        %365 = sbr.rel (%p363) target = $region40
      $region39: #{att_merge_forward.1} parent=11 // pred_region
        _
      $region40: #{att_merge_forward.1} parent=11 // pred_fallthru
        _
      // Predicated region
      $region41: #{att_merge_forward.1} parent=11 // pred_check
        %p366 = pneg %p241
      $region42: #{att_merge_forward.1} parent=11 // pred_check_branch
        %368 = sbr.rel (%p366) target = $region44
      $region43: #{att_merge_forward.1} parent=11 // pred_region
        _
      $region44: #{att_merge_forward.1} parent=11 // pred_fallthru
        _
      // Predicated region
      $region45: #{att_merge_forward.1} parent=11 // pred_check
        %p369 = pneg %p262
      $region46: #{att_merge_forward.1} parent=11 // pred_check_branch
        %371 = sbr.rel (%p369) target = $region48
      $region47: #{att_merge_forward.1} parent=11 // pred_region
        _
      $region48: #{att_merge_forward.1} parent=11 // pred_fallthru
        _
      // Predicated region
      $region49: #{att_merge_forward.1} parent=11 // pred_check
        %p372 = pneg %p283
      $region50: #{att_merge_forward.1} parent=11 // pred_check_branch
        %374 = sbr.rel (%p372) target = $region52
      $region51: #{att_merge_forward.1} parent=11 // pred_region
        _
      $region52: #{att_merge_forward.1} parent=11 // pred_fallthru
        _
      // Predicated region
      $region53: #{att_merge_forward.1} parent=11 // pred_check
        %p375 = pneg %p304
      $region54: #{att_merge_forward.1} parent=11 // pred_check_branch
        %377 = sbr.rel (%p375) target = $region56
      $region55: #{att_merge_forward.1} parent=11 // pred_region
        _
      $region56: #{att_merge_forward.1} parent=11 // pred_fallthru
        _
    $region12: #{att_merge_forward.1} parent=5 // pred_fallthru
      _
    %p378 = scmp.lt.s32.totalorder %s21, 2
    // Predicated region
    $region57: #{att_merge_forward.1} parent=5 // pred_check
      %p379 = pneg %p378
    $region58: #{att_merge_forward.1} parent=5 // pred_check_branch
      %381 = sbr.rel (%p379) target = $region60
    $region59: #{att_merge_forward.1} parent=5 // pred_region
      // Predicated region
      $region61: #{att_merge_forward.1} parent=59 // pred_check
        %p382 = pneg %p41
      $region62: #{att_merge_forward.1} parent=59 // pred_check_branch
        %384 = sbr.rel (%p382) target = $region64
      $region63: #{att_merge_forward.1} parent=59 // pred_region
        %p385 = scmp.lt.s32.totalorder %s21, 1
        %s386 = scalar_select %p385, %s21, 1
        %s387 = smul.addr %s386, 4
        %s388 = smul.addr %s387, 8
        %s389 = scalar_lea.vmem %s0, %s388
      $region64: #{att_merge_forward.1} parent=59 // pred_fallthru
        _
      // Predicated region
      $region65: #{att_merge_forward.1} parent=59 // pred_check
        %p390 = pneg %p67
      $region66: #{att_merge_forward.1} parent=59 // pred_check_branch
        %392 = sbr.rel (%p390) target = $region68
      $region67: #{att_merge_forward.1} parent=59 // pred_region
        %p393 = scmp.lt.s32.totalorder %s21, 1
        %s394 = scalar_select %p393, %s21, 1
        %s395 = smul.addr %s394, 2
        %s396 = smul.addr %s395, 8
        %s397 = scalar_lea.vmem %s1, %s396
      $region68: #{att_merge_forward.1} parent=59 // pred_fallthru
        _
    $region60: #{att_merge_forward.1} parent=5 // pred_fallthru
      _
    %p398 = scmp.le.s32.totalorder 1, %s21
    %p399 = scmp.lt.s32.totalorder %s21, 3
    %p400 = pnand %p398, %p399
    %p401 = pneg %p400
    // Predicated region
    $region69: #{att_merge_forward.1} parent=5 // pred_check
      _
    $region70: #{att_merge_forward.1} parent=5 // pred_check_branch
      %403 = sbr.rel (%p400) target = $region72
    $region71: #{att_merge_forward.1} parent=5 // pred_region
      %s404 = ssub.s32 %s21, 1
      %p405 = scmp.lt.s32.totalorder %s26, 1
      %s406 = scalar_select %p405, %s26, 1
      %s407 = smul.addr %s406, 4
      %s408 = smul.addr %s407, 8
      %s409 = scalar_lea.vmem %s0, %s408
      %p410 = pneg %p47
      %p411 = pneg %p44
      %p412 = scmp.lt.s32.totalorder %s26, 1
      %s413 = scalar_select %p412, %s26, 1
      %s414 = smul.addr %s413, 2
      %s415 = smul.addr %s414, 8
      %s416 = scalar_lea.vmem %s1, %s415
      %p417 = pneg %p73
      %p418 = pneg %p70
      %p419 = pneg %p94
      %p420 = pneg %p91
      %p421 = pneg %p115
      %p422 = pneg %p112
      %p423 = pneg %p136
      %p424 = pneg %p133
      %p425 = pneg %p157
      %p426 = pneg %p154
      %p427 = pneg %p178
      %p428 = pneg %p175
      %p429 = pneg %p199
      %p430 = pneg %p196
      %p431 = pneg %p220
      %p432 = pneg %p217
      %p433 = pneg %p241
      %p434 = pneg %p238
      %p435 = pneg %p262
      %p436 = pneg %p259
      %p437 = pneg %p283
      %p438 = pneg %p280
      %p439 = pneg %p304
      %p440 = pneg %p301
      %p441 = pneg %p330
      %p442 = pneg %p327
      %p443 = scmp.lt.s32.totalorder %s26, 1
      %s444 = scalar_select %p443, %s26, 1
      %s445 = smul.addr %s444, 4
      %s446 = smul.addr %s445, 8
      %s447 = scalar_lea.vmem %s13, %s446
      %p448 = scmp.lt.s32.totalorder %s26, 1
      %s449 = scalar_select %p448, %s26, 1
      %s450 = smul.addr %s449, 4
      %s451 = smul.addr %s450, 8
      %s452 = scalar_lea.vmem %s0, %s451
      %p453 = scmp.lt.s32.totalorder %s26, 1
      %s454 = scalar_select %p453, %s26, 1
      %s455 = smul.addr %s454, 2
      %s456 = smul.addr %s455, 8
      %s457 = scalar_lea.vmem %s1, %s456
      %p458 = scmp.lt.s32.totalorder %s26, 1
      %s459 = scalar_select %p458, %s26, 1
      %s460 = smul.addr %s459, 4
      %s461 = smul.addr %s460, 8
      %s462 = scalar_lea.vmem %s13, %s461
      %v464 = vld [vmem:[%s2] sm:$0xff]
      %v465 = vld [vmem:[%s2 + $0x8] sm:$0xff]
      %v466 = vld [vmem:[%s2 + $0x10] sm:$0xff]
      %v467 = vld [vmem:[%s2 + $0x18] sm:$0xff]
      %v468 = vld [vmem:[%s452] sm:$0xff]
      %v469 = vld [vmem:[%s452 + $0x8] sm:$0xff]
      %v470 = vld [vmem:[%s452 + $0x10] sm:$0xff]
      %v471 = vld [vmem:[%s452 + $0x18] sm:$0xff]
      %v472 = vld [vmem:[%s4 + $0x10] sm:$0xf]
      %v473 = vpack.c.bf16 %v468, %v468
      %v474 = vpack.c.bf16 %v469, %v469
      %v475 = vpack.c.bf16 %v470, %v470
      %v476 = vpack.c.bf16 %v471, %v471
      %477 = vrot.lane.b32.xlu0 %v468, 17
      %v478 = vpop.permute.xlu0 %477
      %479 = vrot.lane.b32.xlu0 %v469, 17
      %v480 = vpop.permute.xlu0 %479
      %481 = vrot.lane.b32.xlu0 %v470, 17
      %v482 = vpop.permute.xlu0 %481
      %483 = vrot.lane.b32.xlu0 %v471, 17
      %v484 = vpop.permute.xlu0 %483
      %v485 = vlaneseq
      %v486 = vand.u32 %v485, 127
      %vm487 = vcmp.lt.s32.totalorder %v486, 17
      %v488 = vsel %vm487, %v482, %v484
      %v489 = vsel %vm487, %v480, %v482
      %v490 = vsel %vm487, %v478, %v480
      %v491 = vsel %vm487, %v484, %v478
      %v492 = vperm.slane %v464, 0
      %v493 = vperm.slane %v465, 0
      %v494 = vperm.slane %v466, 0
      %v495 = vperm.slane %v467, 0
      %v496 = vmul.f32 %v491, %v492
      %v497 = vmul.f32 %v490, %v493
      %v498 = vmul.f32 %v489, %v494
      %v499 = vmul.f32 %v488, %v495
      %v500 = vld [vmem:[%s4] sm:$0xf]
      %v501 = vpack.c.bf16 %v496, %v496
      %v502 = vpack.c.bf16 %v497, %v497
      %v503 = vpack.c.bf16 %v498, %v498
      %v504 = vpack.c.bf16 %v499, %v499
      %vm505 = vcmask 64512
      %v507 = vsel %vm505, %v500, 0
      %vm509 = vcmask 1043456
      %v511 = vsel %vm509, %v501, 0
      %v514 = vsel %vm509, %v502, 0
      %v517 = vsel %vm509, %v503, 0
      %v520 = vsel %vm509, %v504, 0
      %522 = vmatpush.bf16.msra.mxu0 0
      %523 = vmatpush.bf16.msra.mxu0 0
      %524 = vmatpush.bf16.msra.mxu0 0
      %525 = vmatpush.bf16.msra.mxu0 0
      %526 = vmatpush.bf16.msra.mxu0 0
      %527 = vmatpush.bf16.msra.mxu0 0
      %528 = vmatpush.bf16.msra.mxu0 0
      %529 = vmatpush.bf16.msra.mxu0 %v511
      %530 = vmatmul.bf16.gmra.mxu0 %v507
      %v531 = vpop.f32.mrf.mxu0
      %v532 = vadd.f32 0.0, %v531
      %v533 = vpop.f32.mrf.mxu0
      %534 = vdwg.mxu0
      %535 = vmatpush.bf16.msra.mxu0 0
      %536 = vmatpush.bf16.msra.mxu0 0
      %537 = vmatpush.bf16.msra.mxu0 0
      %538 = vmatpush.bf16.msra.mxu0 0
      %539 = vmatpush.bf16.msra.mxu0 0
      %540 = vmatpush.bf16.msra.mxu0 0
      %541 = vmatpush.bf16.msra.mxu0 0
      %542 = vmatpush.bf16.msra.mxu0 %v514
      %543 = vmatmul.bf16.gmra.mxu0 %v507
      %v544 = vpop.f32.mrf.mxu0
      %v545 = vadd.f32 0.0, %v544
      %v546 = vpop.f32.mrf.mxu0
      %547 = vdwg.mxu0
      %548 = vmatpush.bf16.msra.mxu0 0
      %549 = vmatpush.bf16.msra.mxu0 0
      %550 = vmatpush.bf16.msra.mxu0 0
      %551 = vmatpush.bf16.msra.mxu0 0
      %552 = vmatpush.bf16.msra.mxu0 0
      %553 = vmatpush.bf16.msra.mxu0 0
      %554 = vmatpush.bf16.msra.mxu0 0
      %555 = vmatpush.bf16.msra.mxu0 %v517
      %556 = vmatmul.bf16.gmra.mxu0 %v507
      %v557 = vpop.f32.mrf.mxu0
      %v558 = vadd.f32 0.0, %v557
      %v559 = vpop.f32.mrf.mxu0
      %560 = vdwg.mxu0
      %561 = vmatpush.bf16.msra.mxu0 0
      %562 = vmatpush.bf16.msra.mxu0 0
      %563 = vmatpush.bf16.msra.mxu0 0
      %564 = vmatpush.bf16.msra.mxu0 0
      %565 = vmatpush.bf16.msra.mxu0 0
      %566 = vmatpush.bf16.msra.mxu0 0
      %567 = vmatpush.bf16.msra.mxu0 0
      %568 = vmatpush.bf16.msra.mxu0 %v520
      %569 = vmatmul.bf16.gmra.mxu0 %v507
      %v570 = vpop.f32.mrf.mxu0
      %v571 = vadd.f32 0.0, %v570
      %v572 = vpop.f32.mrf.mxu0
      %573 = vdwg.mxu0
      %v575 = vsel %vm505, %v472, 0
      %v578 = vsel %vm509, %v473, 0
      %v581 = vsel %vm509, %v474, 0
      %v584 = vsel %vm509, %v475, 0
      %v587 = vsel %vm509, %v476, 0
      %589 = vmatpush.bf16.msra.mxu0 0
      %590 = vmatpush.bf16.msra.mxu0 0
      %591 = vmatpush.bf16.msra.mxu0 0
      %592 = vmatpush.bf16.msra.mxu0 0
      %593 = vmatpush.bf16.msra.mxu0 0
      %594 = vmatpush.bf16.msra.mxu0 0
      %595 = vmatpush.bf16.msra.mxu0 0
      %596 = vmatpush.bf16.msra.mxu0 %v578
      %597 = vmatmul.bf16.gmra.mxu0 %v575
      %v598 = vpop.f32.mrf.mxu0
      %v599 = vadd.f32 %v532, %v598
      %v600 = vpop.f32.mrf.mxu0
      %601 = vdwg.mxu0
      %602 = vmatpush.bf16.msra.mxu0 0
      %603 = vmatpush.bf16.msra.mxu0 0
      %604 = vmatpush.bf16.msra.mxu0 0
      %605 = vmatpush.bf16.msra.mxu0 0
      %606 = vmatpush.bf16.msra.mxu0 0
      %607 = vmatpush.bf16.msra.mxu0 0
      %608 = vmatpush.bf16.msra.mxu0 0
      %609 = vmatpush.bf16.msra.mxu0 %v581
      %610 = vmatmul.bf16.gmra.mxu0 %v575
      %v611 = vpop.f32.mrf.mxu0
      %v612 = vadd.f32 %v545, %v611
      %v613 = vpop.f32.mrf.mxu0
      %614 = vdwg.mxu0
      %615 = vmatpush.bf16.msra.mxu0 0
      %616 = vmatpush.bf16.msra.mxu0 0
      %617 = vmatpush.bf16.msra.mxu0 0
      %618 = vmatpush.bf16.msra.mxu0 0
      %619 = vmatpush.bf16.msra.mxu0 0
      %620 = vmatpush.bf16.msra.mxu0 0
      %621 = vmatpush.bf16.msra.mxu0 0
      %622 = vmatpush.bf16.msra.mxu0 %v584
      %623 = vmatmul.bf16.gmra.mxu0 %v575
      %v624 = vpop.f32.mrf.mxu0
      %v625 = vadd.f32 %v558, %v624
      %v626 = vpop.f32.mrf.mxu0
      %627 = vdwg.mxu0
      %628 = vmatpush.bf16.msra.mxu0 0
      %629 = vmatpush.bf16.msra.mxu0 0
      %630 = vmatpush.bf16.msra.mxu0 0
      %631 = vmatpush.bf16.msra.mxu0 0
      %632 = vmatpush.bf16.msra.mxu0 0
      %633 = vmatpush.bf16.msra.mxu0 0
      %634 = vmatpush.bf16.msra.mxu0 0
      %635 = vmatpush.bf16.msra.mxu0 %v587
      %636 = vmatmul.bf16.gmra.mxu0 %v575
      %v637 = vpop.f32.mrf.mxu0
      %v638 = vadd.f32 %v571, %v637
      %v639 = vpop.f32.mrf.mxu0
      %640 = vdwg.mxu0
      %641 = vrot.lane.b32.xlu0 %v468, 16
      %v642 = vpop.permute.xlu0 %641
      %643 = vrot.lane.b32.xlu0 %v469, 16
      %v644 = vpop.permute.xlu0 %643
      %645 = vrot.lane.b32.xlu0 %v470, 16
      %v646 = vpop.permute.xlu0 %645
      %647 = vrot.lane.b32.xlu0 %v471, 16
      %v648 = vpop.permute.xlu0 %647
      %vm649 = vcmp.lt.s32.totalorder %v486, 16
      %v650 = vsel %vm649, %v646, %v648
      %v651 = vsel %vm649, %v644, %v646
      %v652 = vsel %vm649, %v642, %v644
      %v653 = vsel %vm649, %v648, %v642
      %v654 = vperm.slane %v464, 1
      %v655 = vperm.slane %v465, 1
      %v656 = vperm.slane %v466, 1
      %v657 = vperm.slane %v467, 1
      %v658 = vmul.f32 %v653, %v654
      %v659 = vmul.f32 %v652, %v655
      %v660 = vmul.f32 %v651, %v656
      %v661 = vmul.f32 %v650, %v657
      %v662 = vld [vmem:[%s4 + $0x4] sm:$0xf]
      %v663 = vpack.c.bf16 %v658, %v658
      %v664 = vpack.c.bf16 %v659, %v659
      %v665 = vpack.c.bf16 %v660, %v660
      %v666 = vpack.c.bf16 %v661, %v661
      %v668 = vsel %vm505, %v662, 0
      %v671 = vsel %vm509, %v663, 0
      %v674 = vsel %vm509, %v664, 0
      %v677 = vsel %vm509, %v665, 0
      %v680 = vsel %vm509, %v666, 0
      %682 = vmatpush.bf16.msra.mxu0 0
      %683 = vmatpush.bf16.msra.mxu0 0
      %684 = vmatpush.bf16.msra.mxu0 0
      %685 = vmatpush.bf16.msra.mxu0 0
      %686 = vmatpush.bf16.msra.mxu0 0
      %687 = vmatpush.bf16.msra.mxu0 0
      %688 = vmatpush.bf16.msra.mxu0 0
      %689 = vmatpush.bf16.msra.mxu0 %v671
      %690 = vmatmul.bf16.gmra.mxu0 %v668
      %v691 = vpop.f32.mrf.mxu0
      %v692 = vadd.f32 0.0, %v691
      %v693 = vpop.f32.mrf.mxu0
      %694 = vdwg.mxu0
      %695 = vmatpush.bf16.msra.mxu0 0
      %696 = vmatpush.bf16.msra.mxu0 0
      %697 = vmatpush.bf16.msra.mxu0 0
      %698 = vmatpush.bf16.msra.mxu0 0
      %699 = vmatpush.bf16.msra.mxu0 0
      %700 = vmatpush.bf16.msra.mxu0 0
      %701 = vmatpush.bf16.msra.mxu0 0
      %702 = vmatpush.bf16.msra.mxu0 %v674
      %703 = vmatmul.bf16.gmra.mxu0 %v668
      %v704 = vpop.f32.mrf.mxu0
      %v705 = vadd.f32 0.0, %v704
      %v706 = vpop.f32.mrf.mxu0
      %707 = vdwg.mxu0
      %708 = vmatpush.bf16.msra.mxu0 0
      %709 = vmatpush.bf16.msra.mxu0 0
      %710 = vmatpush.bf16.msra.mxu0 0
      %711 = vmatpush.bf16.msra.mxu0 0
      %712 = vmatpush.bf16.msra.mxu0 0
      %713 = vmatpush.bf16.msra.mxu0 0
      %714 = vmatpush.bf16.msra.mxu0 0
      %715 = vmatpush.bf16.msra.mxu0 %v677
      %716 = vmatmul.bf16.gmra.mxu0 %v668
      %v717 = vpop.f32.mrf.mxu0
      %v718 = vadd.f32 0.0, %v717
      %v719 = vpop.f32.mrf.mxu0
      %720 = vdwg.mxu0
      %721 = vmatpush.bf16.msra.mxu0 0
      %722 = vmatpush.bf16.msra.mxu0 0
      %723 = vmatpush.bf16.msra.mxu0 0
      %724 = vmatpush.bf16.msra.mxu0 0
      %725 = vmatpush.bf16.msra.mxu0 0
      %726 = vmatpush.bf16.msra.mxu0 0
      %727 = vmatpush.bf16.msra.mxu0 0
      %728 = vmatpush.bf16.msra.mxu0 %v680
      %729 = vmatmul.bf16.gmra.mxu0 %v668
      %v730 = vpop.f32.mrf.mxu0
      %v731 = vadd.f32 0.0, %v730
      %v732 = vpop.f32.mrf.mxu0
      %733 = vdwg.mxu0
      %v734 = vadd.f32 %v599, %v692
      %v735 = vadd.f32 %v612, %v705
      %v736 = vadd.f32 %v625, %v718
      %v737 = vadd.f32 %v638, %v731
      %738 = vrot.lane.b32.xlu0 %v468, 15
      %v739 = vpop.permute.xlu0 %738
      %740 = vrot.lane.b32.xlu0 %v469, 15
      %v741 = vpop.permute.xlu0 %740
      %742 = vrot.lane.b32.xlu0 %v470, 15
      %v743 = vpop.permute.xlu0 %742
      %744 = vrot.lane.b32.xlu0 %v471, 15
      %v745 = vpop.permute.xlu0 %744
      %vm746 = vcmp.lt.s32.totalorder %v486, 15
      %v747 = vsel %vm746, %v743, %v745
      %v748 = vsel %vm746, %v741, %v743
      %v749 = vsel %vm746, %v739, %v741
      %v750 = vsel %vm746, %v745, %v739
      %v751 = vperm.slane %v464, 2
      %v752 = vperm.slane %v465, 2
      %v753 = vperm.slane %v466, 2
      %v754 = vperm.slane %v467, 2
      %v755 = vmul.f32 %v750, %v751
      %v756 = vmul.f32 %v749, %v752
      %v757 = vmul.f32 %v748, %v753
      %v758 = vmul.f32 %v747, %v754
      %v759 = vld [vmem:[%s4 + $0x8] sm:$0xf]
      %v760 = vpack.c.bf16 %v755, %v755
      %v761 = vpack.c.bf16 %v756, %v756
      %v762 = vpack.c.bf16 %v757, %v757
      %v763 = vpack.c.bf16 %v758, %v758
      %v765 = vsel %vm505, %v759, 0
      %v768 = vsel %vm509, %v760, 0
      %v771 = vsel %vm509, %v761, 0
      %v774 = vsel %vm509, %v762, 0
      %v777 = vsel %vm509, %v763, 0
      %779 = vmatpush.bf16.msra.mxu0 0
      %780 = vmatpush.bf16.msra.mxu0 0
      %781 = vmatpush.bf16.msra.mxu0 0
      %782 = vmatpush.bf16.msra.mxu0 0
      %783 = vmatpush.bf16.msra.mxu0 0
      %784 = vmatpush.bf16.msra.mxu0 0
      %785 = vmatpush.bf16.msra.mxu0 0
      %786 = vmatpush.bf16.msra.mxu0 %v768
      %787 = vmatmul.bf16.gmra.mxu0 %v765
      %v788 = vpop.f32.mrf.mxu0
      %v789 = vadd.f32 0.0, %v788
      %v790 = vpop.f32.mrf.mxu0
      %791 = vdwg.mxu0
      %792 = vmatpush.bf16.msra.mxu0 0
      %793 = vmatpush.bf16.msra.mxu0 0
      %794 = vmatpush.bf16.msra.mxu0 0
      %795 = vmatpush.bf16.msra.mxu0 0
      %796 = vmatpush.bf16.msra.mxu0 0
      %797 = vmatpush.bf16.msra.mxu0 0
      %798 = vmatpush.bf16.msra.mxu0 0
      %799 = vmatpush.bf16.msra.mxu0 %v771
      %800 = vmatmul.bf16.gmra.mxu0 %v765
      %v801 = vpop.f32.mrf.mxu0
      %v802 = vadd.f32 0.0, %v801
      %v803 = vpop.f32.mrf.mxu0
      %804 = vdwg.mxu0
      %805 = vmatpush.bf16.msra.mxu0 0
      %806 = vmatpush.bf16.msra.mxu0 0
      %807 = vmatpush.bf16.msra.mxu0 0
      %808 = vmatpush.bf16.msra.mxu0 0
      %809 = vmatpush.bf16.msra.mxu0 0
      %810 = vmatpush.bf16.msra.mxu0 0
      %811 = vmatpush.bf16.msra.mxu0 0
      %812 = vmatpush.bf16.msra.mxu0 %v774
      %813 = vmatmul.bf16.gmra.mxu0 %v765
      %v814 = vpop.f32.mrf.mxu0
      %v815 = vadd.f32 0.0, %v814
      %v816 = vpop.f32.mrf.mxu0
      %817 = vdwg.mxu0
      %818 = vmatpush.bf16.msra.mxu0 0
      %819 = vmatpush.bf16.msra.mxu0 0
      %820 = vmatpush.bf16.msra.mxu0 0
      %821 = vmatpush.bf16.msra.mxu0 0
      %822 = vmatpush.bf16.msra.mxu0 0
      %823 = vmatpush.bf16.msra.mxu0 0
      %824 = vmatpush.bf16.msra.mxu0 0
      %825 = vmatpush.bf16.msra.mxu0 %v777
      %826 = vmatmul.bf16.gmra.mxu0 %v765
      %v827 = vpop.f32.mrf.mxu0
      %v828 = vadd.f32 0.0, %v827
      %v829 = vpop.f32.mrf.mxu0
      %830 = vdwg.mxu0
      %v831 = vadd.f32 %v734, %v789
      %v832 = vadd.f32 %v735, %v802
      %v833 = vadd.f32 %v736, %v815
      %v834 = vadd.f32 %v737, %v828
      %835 = vrot.lane.b32.xlu0 %v468, 1
      %v836 = vpop.permute.xlu0 %835
      %837 = vrot.lane.b32.xlu0 %v469, 1
      %v838 = vpop.permute.xlu0 %837
      %839 = vrot.lane.b32.xlu0 %v470, 1
      %v840 = vpop.permute.xlu0 %839
      %841 = vrot.lane.b32.xlu0 %v471, 1
      %v842 = vpop.permute.xlu0 %841
      %vm843 = vcmp.lt.s32.totalorder %v486, 1
      %v844 = vsel %vm843, %v840, %v842
      %v845 = vsel %vm843, %v838, %v840
      %v846 = vsel %vm843, %v836, %v838
      %v847 = vsel %vm843, %v842, %v836
      %v848 = vperm.slane %v464, 3
      %v849 = vperm.slane %v465, 3
      %v850 = vperm.slane %v466, 3
      %v851 = vperm.slane %v467, 3
      %v852 = vmul.f32 %v847, %v848
      %v853 = vmul.f32 %v846, %v849
      %v854 = vmul.f32 %v845, %v850
      %v855 = vmul.f32 %v844, %v851
      %v856 = vld [vmem:[%s4 + $0xc] sm:$0xf]
      %v857 = vpack.c.bf16 %v852, %v852
      %v858 = vpack.c.bf16 %v853, %v853
      %v859 = vpack.c.bf16 %v854, %v854
      %v860 = vpack.c.bf16 %v855, %v855
      %v862 = vsel %vm505, %v856, 0
      %v865 = vsel %vm509, %v857, 0
      %v868 = vsel %vm509, %v858, 0
      %v871 = vsel %vm509, %v859, 0
      %v874 = vsel %vm509, %v860, 0
      %876 = vmatpush.bf16.msra.mxu0 0
      %877 = vmatpush.bf16.msra.mxu0 0
      %878 = vmatpush.bf16.msra.mxu0 0
      %879 = vmatpush.bf16.msra.mxu0 0
      %880 = vmatpush.bf16.msra.mxu0 0
      %881 = vmatpush.bf16.msra.mxu0 0
      %882 = vmatpush.bf16.msra.mxu0 0
      %883 = vmatpush.bf16.msra.mxu0 %v865
      %884 = vmatmul.bf16.gmra.mxu0 %v862
      %v885 = vpop.f32.mrf.mxu0
      %v886 = vadd.f32 0.0, %v885
      %v887 = vpop.f32.mrf.mxu0
      %888 = vdwg.mxu0
      %889 = vmatpush.bf16.msra.mxu0 0
      %890 = vmatpush.bf16.msra.mxu0 0
      %891 = vmatpush.bf16.msra.mxu0 0
      %892 = vmatpush.bf16.msra.mxu0 0
      %893 = vmatpush.bf16.msra.mxu0 0
      %894 = vmatpush.bf16.msra.mxu0 0
      %895 = vmatpush.bf16.msra.mxu0 0
      %896 = vmatpush.bf16.msra.mxu0 %v868
      %897 = vmatmul.bf16.gmra.mxu0 %v862
      %v898 = vpop.f32.mrf.mxu0
      %v899 = vadd.f32 0.0, %v898
      %v900 = vpop.f32.mrf.mxu0
      %901 = vdwg.mxu0
      %902 = vmatpush.bf16.msra.mxu0 0
      %903 = vmatpush.bf16.msra.mxu0 0
      %904 = vmatpush.bf16.msra.mxu0 0
      %905 = vmatpush.bf16.msra.mxu0 0
      %906 = vmatpush.bf16.msra.mxu0 0
      %907 = vmatpush.bf16.msra.mxu0 0
      %908 = vmatpush.bf16.msra.mxu0 0
      %909 = vmatpush.bf16.msra.mxu0 %v871
      %910 = vmatmul.bf16.gmra.mxu0 %v862
      %v911 = vpop.f32.mrf.mxu0
      %v912 = vadd.f32 0.0, %v911
      %v913 = vpop.f32.mrf.mxu0
      %914 = vdwg.mxu0
      %915 = vmatpush.bf16.msra.mxu0 0
      %916 = vmatpush.bf16.msra.mxu0 0
      %917 = vmatpush.bf16.msra.mxu0 0
      %918 = vmatpush.bf16.msra.mxu0 0
      %919 = vmatpush.bf16.msra.mxu0 0
      %920 = vmatpush.bf16.msra.mxu0 0
      %921 = vmatpush.bf16.msra.mxu0 0
      %922 = vmatpush.bf16.msra.mxu0 %v874
      %923 = vmatmul.bf16.gmra.mxu0 %v862
      %v924 = vpop.f32.mrf.mxu0
      %v925 = vadd.f32 0.0, %v924
      %v926 = vpop.f32.mrf.mxu0
      %927 = vdwg.mxu0
      %v928 = vadd.f32 %v831, %v886
      %v929 = vadd.f32 %v832, %v899
      %v930 = vadd.f32 %v833, %v912
      %v931 = vadd.f32 %v834, %v925
      %932 = vrot.lane.b32.xlu0 %v468, 127
      %v933 = vpop.permute.xlu0 %932
      %934 = vrot.lane.b32.xlu0 %v469, 127
      %v935 = vpop.permute.xlu0 %934
      %936 = vrot.lane.b32.xlu0 %v470, 127
      %v937 = vpop.permute.xlu0 %936
      %938 = vrot.lane.b32.xlu0 %v471, 127
      %v939 = vpop.permute.xlu0 %938
      %vm940 = vcmp.lt.s32.totalorder %v486, 127
      %v941 = vsel %vm940, %v937, %v939
      %v942 = vsel %vm940, %v935, %v937
      %v943 = vsel %vm940, %v933, %v935
      %v944 = vsel %vm940, %v939, %v933
      %v945 = vperm.slane %v464, 4
      %v946 = vperm.slane %v465, 4
      %v947 = vperm.slane %v466, 4
      %v948 = vperm.slane %v467, 4
      %v949 = vmul.f32 %v943, %v945
      %v950 = vmul.f32 %v942, %v946
      %v951 = vmul.f32 %v941, %v947
      %v952 = vmul.f32 %v944, %v948
      %v953 = vld [vmem:[%s4 + $0x14] sm:$0xf]
      %v954 = vpack.c.bf16 %v949, %v949
      %v955 = vpack.c.bf16 %v950, %v950
      %v956 = vpack.c.bf16 %v951, %v951
      %v957 = vpack.c.bf16 %v952, %v952
      %v959 = vsel %vm505, %v953, 0
      %v962 = vsel %vm509, %v954, 0
      %v965 = vsel %vm509, %v955, 0
      %v968 = vsel %vm509, %v956, 0
      %v971 = vsel %vm509, %v957, 0
      %973 = vmatpush.bf16.msra.mxu0 0
      %974 = vmatpush.bf16.msra.mxu0 0
      %975 = vmatpush.bf16.msra.mxu0 0
      %976 = vmatpush.bf16.msra.mxu0 0
      %977 = vmatpush.bf16.msra.mxu0 0
      %978 = vmatpush.bf16.msra.mxu0 0
      %979 = vmatpush.bf16.msra.mxu0 0
      %980 = vmatpush.bf16.msra.mxu0 %v962
      %981 = vmatmul.bf16.gmra.mxu0 %v959
      %v982 = vpop.f32.mrf.mxu0
      %v983 = vadd.f32 0.0, %v982
      %v984 = vpop.f32.mrf.mxu0
      %985 = vdwg.mxu0
      %986 = vmatpush.bf16.msra.mxu0 0
      %987 = vmatpush.bf16.msra.mxu0 0
      %988 = vmatpush.bf16.msra.mxu0 0
      %989 = vmatpush.bf16.msra.mxu0 0
      %990 = vmatpush.bf16.msra.mxu0 0
      %991 = vmatpush.bf16.msra.mxu0 0
      %992 = vmatpush.bf16.msra.mxu0 0
      %993 = vmatpush.bf16.msra.mxu0 %v965
      %994 = vmatmul.bf16.gmra.mxu0 %v959
      %v995 = vpop.f32.mrf.mxu0
      %v996 = vadd.f32 0.0, %v995
      %v997 = vpop.f32.mrf.mxu0
      %998 = vdwg.mxu0
      %999 = vmatpush.bf16.msra.mxu0 0
      %1000 = vmatpush.bf16.msra.mxu0 0
      %1001 = vmatpush.bf16.msra.mxu0 0
      %1002 = vmatpush.bf16.msra.mxu0 0
      %1003 = vmatpush.bf16.msra.mxu0 0
      %1004 = vmatpush.bf16.msra.mxu0 0
      %1005 = vmatpush.bf16.msra.mxu0 0
      %1006 = vmatpush.bf16.msra.mxu0 %v968
      %1007 = vmatmul.bf16.gmra.mxu0 %v959
      %v1008 = vpop.f32.mrf.mxu0
      %v1009 = vadd.f32 0.0, %v1008
      %v1010 = vpop.f32.mrf.mxu0
      %1011 = vdwg.mxu0
      %1012 = vmatpush.bf16.msra.mxu0 0
      %1013 = vmatpush.bf16.msra.mxu0 0
      %1014 = vmatpush.bf16.msra.mxu0 0
      %1015 = vmatpush.bf16.msra.mxu0 0
      %1016 = vmatpush.bf16.msra.mxu0 0
      %1017 = vmatpush.bf16.msra.mxu0 0
      %1018 = vmatpush.bf16.msra.mxu0 0
      %1019 = vmatpush.bf16.msra.mxu0 %v971
      %1020 = vmatmul.bf16.gmra.mxu0 %v959
      %v1021 = vpop.f32.mrf.mxu0
      %v1022 = vadd.f32 0.0, %v1021
      %v1023 = vpop.f32.mrf.mxu0
      %1024 = vdwg.mxu0
      %v1025 = vadd.f32 %v928, %v983
      %v1026 = vadd.f32 %v929, %v996
      %v1027 = vadd.f32 %v930, %v1009
      %v1028 = vadd.f32 %v931, %v1022
      %1029 = vrot.lane.b32.xlu0 %v468, 113
      %v1030 = vpop.permute.xlu0 %1029
      %1031 = vrot.lane.b32.xlu0 %v469, 113
      %v1032 = vpop.permute.xlu0 %1031
      %1033 = vrot.lane.b32.xlu0 %v470, 113
      %v1034 = vpop.permute.xlu0 %1033
      %1035 = vrot.lane.b32.xlu0 %v471, 113
      %v1036 = vpop.permute.xlu0 %1035
      %vm1037 = vcmp.lt.s32.totalorder %v486, 113
      %v1038 = vsel %vm1037, %v1034, %v1036
      %v1039 = vsel %vm1037, %v1032, %v1034
      %v1040 = vsel %vm1037, %v1030, %v1032
      %v1041 = vsel %vm1037, %v1036, %v1030
      %v1042 = vperm.slane %v464, 5
      %v1043 = vperm.slane %v465, 5
      %v1044 = vperm.slane %v466, 5
      %v1045 = vperm.slane %v467, 5
      %v1046 = vmul.f32 %v1040, %v1042
      %v1047 = vmul.f32 %v1039, %v1043
      %v1048 = vmul.f32 %v1038, %v1044
      %v1049 = vmul.f32 %v1041, %v1045
      %v1050 = vld [vmem:[%s4 + $0x18] sm:$0xf]
      %v1051 = vpack.c.bf16 %v1046, %v1046
      %v1052 = vpack.c.bf16 %v1047, %v1047
      %v1053 = vpack.c.bf16 %v1048, %v1048
      %v1054 = vpack.c.bf16 %v1049, %v1049
      %v1056 = vsel %vm505, %v1050, 0
      %v1059 = vsel %vm509, %v1051, 0
      %v1062 = vsel %vm509, %v1052, 0
      %v1065 = vsel %vm509, %v1053, 0
      %v1068 = vsel %vm509, %v1054, 0
      %1070 = vmatpush.bf16.msra.mxu0 0
      %1071 = vmatpush.bf16.msra.mxu0 0
      %1072 = vmatpush.bf16.msra.mxu0 0
      %1073 = vmatpush.bf16.msra.mxu0 0
      %1074 = vmatpush.bf16.msra.mxu0 0
      %1075 = vmatpush.bf16.msra.mxu0 0
      %1076 = vmatpush.bf16.msra.mxu0 0
      %1077 = vmatpush.bf16.msra.mxu0 %v1059
      %1078 = vmatmul.bf16.gmra.mxu0 %v1056
      %v1079 = vpop.f32.mrf.mxu0
      %v1080 = vadd.f32 0.0, %v1079
      %v1081 = vpop.f32.mrf.mxu0
      %1082 = vdwg.mxu0
      %1083 = vmatpush.bf16.msra.mxu0 0
      %1084 = vmatpush.bf16.msra.mxu0 0
      %1085 = vmatpush.bf16.msra.mxu0 0
      %1086 = vmatpush.bf16.msra.mxu0 0
      %1087 = vmatpush.bf16.msra.mxu0 0
      %1088 = vmatpush.bf16.msra.mxu0 0
      %1089 = vmatpush.bf16.msra.mxu0 0
      %1090 = vmatpush.bf16.msra.mxu0 %v1062
      %1091 = vmatmul.bf16.gmra.mxu0 %v1056
      %v1092 = vpop.f32.mrf.mxu0
      %v1093 = vadd.f32 0.0, %v1092
      %v1094 = vpop.f32.mrf.mxu0
      %1095 = vdwg.mxu0
      %1096 = vmatpush.bf16.msra.mxu0 0
      %1097 = vmatpush.bf16.msra.mxu0 0
      %1098 = vmatpush.bf16.msra.mxu0 0
      %1099 = vmatpush.bf16.msra.mxu0 0
      %1100 = vmatpush.bf16.msra.mxu0 0
      %1101 = vmatpush.bf16.msra.mxu0 0
      %1102 = vmatpush.bf16.msra.mxu0 0
      %1103 = vmatpush.bf16.msra.mxu0 %v1065
      %1104 = vmatmul.bf16.gmra.mxu0 %v1056
      %v1105 = vpop.f32.mrf.mxu0
      %v1106 = vadd.f32 0.0, %v1105
      %v1107 = vpop.f32.mrf.mxu0
      %1108 = vdwg.mxu0
      %1109 = vmatpush.bf16.msra.mxu0 0
      %1110 = vmatpush.bf16.msra.mxu0 0
      %1111 = vmatpush.bf16.msra.mxu0 0
      %1112 = vmatpush.bf16.msra.mxu0 0
      %1113 = vmatpush.bf16.msra.mxu0 0
      %1114 = vmatpush.bf16.msra.mxu0 0
      %1115 = vmatpush.bf16.msra.mxu0 0
      %1116 = vmatpush.bf16.msra.mxu0 %v1068
      %1117 = vmatmul.bf16.gmra.mxu0 %v1056
      %v1118 = vpop.f32.mrf.mxu0
      %v1119 = vadd.f32 0.0, %v1118
      %v1120 = vpop.f32.mrf.mxu0
      %1121 = vdwg.mxu0
      %v1122 = vadd.f32 %v1025, %v1080
      %v1123 = vadd.f32 %v1026, %v1093
      %v1124 = vadd.f32 %v1027, %v1106
      %v1125 = vadd.f32 %v1028, %v1119
      %1126 = vrot.lane.b32.xlu0 %v468, 112
      %v1127 = vpop.permute.xlu0 %1126
      %1128 = vrot.lane.b32.xlu0 %v469, 112
      %v1129 = vpop.permute.xlu0 %1128
      %1130 = vrot.lane.b32.xlu0 %v470, 112
      %v1131 = vpop.permute.xlu0 %1130
      %1132 = vrot.lane.b32.xlu0 %v471, 112
      %v1133 = vpop.permute.xlu0 %1132
      %vm1134 = vcmp.lt.s32.totalorder %v486, 112
      %v1135 = vsel %vm1134, %v1131, %v1133
      %v1136 = vsel %vm1134, %v1129, %v1131
      %v1137 = vsel %vm1134, %v1127, %v1129
      %v1138 = vsel %vm1134, %v1133, %v1127
      %v1139 = vperm.slane %v464, 6
      %v1140 = vperm.slane %v465, 6
      %v1141 = vperm.slane %v466, 6
      %v1142 = vperm.slane %v467, 6
      %v1143 = vmul.f32 %v1137, %v1139
      %v1144 = vmul.f32 %v1136, %v1140
      %v1145 = vmul.f32 %v1135, %v1141
      %v1146 = vmul.f32 %v1138, %v1142
      %v1147 = vld [vmem:[%s4 + $0x1c] sm:$0xf]
      %v1148 = vpack.c.bf16 %v1143, %v1143
      %v1149 = vpack.c.bf16 %v1144, %v1144
      %v1150 = vpack.c.bf16 %v1145, %v1145
      %v1151 = vpack.c.bf16 %v1146, %v1146
      %v1153 = vsel %vm505, %v1147, 0
      %v1156 = vsel %vm509, %v1148, 0
      %v1159 = vsel %vm509, %v1149, 0
      %v1162 = vsel %vm509, %v1150, 0
      %v1165 = vsel %vm509, %v1151, 0
      %1167 = vmatpush.bf16.msra.mxu0 0
      %1168 = vmatpush.bf16.msra.mxu0 0
      %1169 = vmatpush.bf16.msra.mxu0 0
      %1170 = vmatpush.bf16.msra.mxu0 0
      %1171 = vmatpush.bf16.msra.mxu0 0
      %1172 = vmatpush.bf16.msra.mxu0 0
      %1173 = vmatpush.bf16.msra.mxu0 0
      %1174 = vmatpush.bf16.msra.mxu0 %v1156
      %1175 = vmatmul.bf16.gmra.mxu0 %v1153
      %v1176 = vpop.f32.mrf.mxu0
      %v1177 = vadd.f32 0.0, %v1176
      %v1178 = vpop.f32.mrf.mxu0
      %1179 = vdwg.mxu0
      %1180 = vmatpush.bf16.msra.mxu0 0
      %1181 = vmatpush.bf16.msra.mxu0 0
      %1182 = vmatpush.bf16.msra.mxu0 0
      %1183 = vmatpush.bf16.msra.mxu0 0
      %1184 = vmatpush.bf16.msra.mxu0 0
      %1185 = vmatpush.bf16.msra.mxu0 0
      %1186 = vmatpush.bf16.msra.mxu0 0
      %1187 = vmatpush.bf16.msra.mxu0 %v1159
      %1188 = vmatmul.bf16.gmra.mxu0 %v1153
      %v1189 = vpop.f32.mrf.mxu0
      %v1190 = vadd.f32 0.0, %v1189
      %v1191 = vpop.f32.mrf.mxu0
      %1192 = vdwg.mxu0
      %1193 = vmatpush.bf16.msra.mxu0 0
      %1194 = vmatpush.bf16.msra.mxu0 0
      %1195 = vmatpush.bf16.msra.mxu0 0
      %1196 = vmatpush.bf16.msra.mxu0 0
      %1197 = vmatpush.bf16.msra.mxu0 0
      %1198 = vmatpush.bf16.msra.mxu0 0
      %1199 = vmatpush.bf16.msra.mxu0 0
      %1200 = vmatpush.bf16.msra.mxu0 %v1162
      %1201 = vmatmul.bf16.gmra.mxu0 %v1153
      %v1202 = vpop.f32.mrf.mxu0
      %v1203 = vadd.f32 0.0, %v1202
      %v1204 = vpop.f32.mrf.mxu0
      %1205 = vdwg.mxu0
      %1206 = vmatpush.bf16.msra.mxu0 0
      %1207 = vmatpush.bf16.msra.mxu0 0
      %1208 = vmatpush.bf16.msra.mxu0 0
      %1209 = vmatpush.bf16.msra.mxu0 0
      %1210 = vmatpush.bf16.msra.mxu0 0
      %1211 = vmatpush.bf16.msra.mxu0 0
      %1212 = vmatpush.bf16.msra.mxu0 0
      %1213 = vmatpush.bf16.msra.mxu0 %v1165
      %1214 = vmatmul.bf16.gmra.mxu0 %v1153
      %v1215 = vpop.f32.mrf.mxu0
      %v1216 = vadd.f32 0.0, %v1215
      %v1217 = vpop.f32.mrf.mxu0
      %1218 = vdwg.mxu0
      %v1219 = vadd.f32 %v1122, %v1177
      %v1220 = vadd.f32 %v1123, %v1190
      %v1221 = vadd.f32 %v1124, %v1203
      %v1222 = vadd.f32 %v1125, %v1216
      %1223 = vrot.lane.b32.xlu0 %v468, 111
      %v1224 = vpop.permute.xlu0 %1223
      %1225 = vrot.lane.b32.xlu0 %v469, 111
      %v1226 = vpop.permute.xlu0 %1225
      %1227 = vrot.lane.b32.xlu0 %v470, 111
      %v1228 = vpop.permute.xlu0 %1227
      %1229 = vrot.lane.b32.xlu0 %v471, 111
      %v1230 = vpop.permute.xlu0 %1229
      %vm1231 = vcmp.lt.s32.totalorder %v486, 111
      %v1232 = vsel %vm1231, %v1228, %v1230
      %v1233 = vsel %vm1231, %v1226, %v1228
      %v1234 = vsel %vm1231, %v1224, %v1226
      %v1235 = vsel %vm1231, %v1230, %v1224
      %v1236 = vperm.slane %v464, 7
      %v1237 = vperm.slane %v465, 7
      %v1238 = vperm.slane %v466, 7
      %v1239 = vperm.slane %v467, 7
      %v1240 = vmul.f32 %v1234, %v1236
      %v1241 = vmul.f32 %v1233, %v1237
      %v1242 = vmul.f32 %v1232, %v1238
      %v1243 = vmul.f32 %v1235, %v1239
      %v1244 = vld [vmem:[%s4 + $0x20] sm:$0xf]
      %v1245 = vpack.c.bf16 %v1240, %v1240
      %v1246 = vpack.c.bf16 %v1241, %v1241
      %v1247 = vpack.c.bf16 %v1242, %v1242
      %v1248 = vpack.c.bf16 %v1243, %v1243
      %v1250 = vsel %vm505, %v1244, 0
      %v1253 = vsel %vm509, %v1245, 0
      %v1256 = vsel %vm509, %v1246, 0
      %v1259 = vsel %vm509, %v1247, 0
      %v1262 = vsel %vm509, %v1248, 0
      %1264 = vmatpush.bf16.msra.mxu0 0
      %1265 = vmatpush.bf16.msra.mxu0 0
      %1266 = vmatpush.bf16.msra.mxu0 0
      %1267 = vmatpush.bf16.msra.mxu0 0
      %1268 = vmatpush.bf16.msra.mxu0 0
      %1269 = vmatpush.bf16.msra.mxu0 0
      %1270 = vmatpush.bf16.msra.mxu0 0
      %1271 = vmatpush.bf16.msra.mxu0 %v1253
      %1272 = vmatmul.bf16.gmra.mxu0 %v1250
      %v1273 = vpop.f32.mrf.mxu0
      %v1274 = vadd.f32 0.0, %v1273
      %v1275 = vpop.f32.mrf.mxu0
      %1276 = vdwg.mxu0
      %1277 = vmatpush.bf16.msra.mxu0 0
      %1278 = vmatpush.bf16.msra.mxu0 0
      %1279 = vmatpush.bf16.msra.mxu0 0
      %1280 = vmatpush.bf16.msra.mxu0 0
      %1281 = vmatpush.bf16.msra.mxu0 0
      %1282 = vmatpush.bf16.msra.mxu0 0
      %1283 = vmatpush.bf16.msra.mxu0 0
      %1284 = vmatpush.bf16.msra.mxu0 %v1256
      %1285 = vmatmul.bf16.gmra.mxu0 %v1250
      %v1286 = vpop.f32.mrf.mxu0
      %v1287 = vadd.f32 0.0, %v1286
      %v1288 = vpop.f32.mrf.mxu0
      %1289 = vdwg.mxu0
      %1290 = vmatpush.bf16.msra.mxu0 0
      %1291 = vmatpush.bf16.msra.mxu0 0
      %1292 = vmatpush.bf16.msra.mxu0 0
      %1293 = vmatpush.bf16.msra.mxu0 0
      %1294 = vmatpush.bf16.msra.mxu0 0
      %1295 = vmatpush.bf16.msra.mxu0 0
      %1296 = vmatpush.bf16.msra.mxu0 0
      %1297 = vmatpush.bf16.msra.mxu0 %v1259
      %1298 = vmatmul.bf16.gmra.mxu0 %v1250
      %v1299 = vpop.f32.mrf.mxu0
      %v1300 = vadd.f32 0.0, %v1299
      %v1301 = vpop.f32.mrf.mxu0
      %1302 = vdwg.mxu0
      %1303 = vmatpush.bf16.msra.mxu0 0
      %1304 = vmatpush.bf16.msra.mxu0 0
      %1305 = vmatpush.bf16.msra.mxu0 0
      %1306 = vmatpush.bf16.msra.mxu0 0
      %1307 = vmatpush.bf16.msra.mxu0 0
      %1308 = vmatpush.bf16.msra.mxu0 0
      %1309 = vmatpush.bf16.msra.mxu0 0
      %1310 = vmatpush.bf16.msra.mxu0 %v1262
      %1311 = vmatmul.bf16.gmra.mxu0 %v1250
      %v1312 = vpop.f32.mrf.mxu0
      %v1313 = vadd.f32 0.0, %v1312
      %v1314 = vpop.f32.mrf.mxu0
      %1315 = vdwg.mxu0
      %v1316 = vadd.f32 %v1219, %v1274
      %v1317 = vadd.f32 %v1220, %v1287
      %v1318 = vadd.f32 %v1221, %v1300
      %v1319 = vadd.f32 %v1222, %v1313
      %v1320 = vld [vmem:[%s5] sm:$0xff]
      %1322 = vset.pattern.permute.xlu0 0
      %1323 = vperm.xlu0 %1322, %v1320
      %v1324 = vpop.permute.xlu0 %1323
      %v1326 = vadd.f32 %v1316, %v1324
      %v1327 = vadd.f32 %v1317, %v1324
      %v1328 = vadd.f32 %v1318, %v1324
      %v1329 = vadd.f32 %v1319, %v1324
      %v1330 = vmax.f32 %v1326, 0.0
      %v1331 = vmax.f32 %v1327, 0.0
      %v1332 = vmax.f32 %v1328, 0.0
      %v1333 = vmax.f32 %v1329, 0.0
      %v1334 = vld [vmem:[%s457] sm:$0xff]
      %v1335 = vld [vmem:[%s457 + $0x8] sm:$0xff]
      %v1336 = vpack.c.bf16 %v1335, %v1334
      %v1337 = vld [vmem:[%s3] sm:$0xff]
      %v1338 = vld [vmem:[%s3 + $0x8] sm:$0xff]
      %v1339 = vld [vmem:[%s3 + $0x10] sm:$0xff]
      %v1340 = vld [vmem:[%s3 + $0x18] sm:$0xff]
      %v1341 = vld [vmem:[%s3 + $0x20] sm:$0xff]
      %v1342 = vld [vmem:[%s3 + $0x28] sm:$0xff]
      %v1343 = vld [vmem:[%s3 + $0x30] sm:$0xff]
      %v1344 = vld [vmem:[%s3 + $0x38] sm:$0xff]
      %v1345 = vld [vmem:[%s3 + $0x40] sm:$0xff]
      %v1346 = vld [vmem:[%s3 + $0x48] sm:$0xff]
      %v1347 = vld [vmem:[%s3 + $0x50] sm:$0xff]
      %v1348 = vld [vmem:[%s3 + $0x58] sm:$0xff]
      %v1349 = vld [vmem:[%s3 + $0x60] sm:$0xff]
      %v1350 = vld [vmem:[%s3 + $0x68] sm:$0xff]
      %v1351 = vld [vmem:[%s3 + $0x70] sm:$0xff]
      %v1352 = vld [vmem:[%s3 + $0x78] sm:$0xff]
      %v1353 = vld [vmem:[%s3 + $0x80] sm:$0xff]
      %v1354 = vld [vmem:[%s3 + $0x88] sm:$0xff]
      %v1355 = vld [vmem:[%s3 + $0x90] sm:$0xff]
      %v1356 = vld [vmem:[%s3 + $0x98] sm:$0xff]
      %v1357 = vld [vmem:[%s3 + $0xa0] sm:$0xff]
      %v1358 = vld [vmem:[%s3 + $0xa8] sm:$0xff]
      %v1359 = vld [vmem:[%s3 + $0xb0] sm:$0xff]
      %v1360 = vld [vmem:[%s3 + $0xb8] sm:$0xff]
      %v1361 = vld [vmem:[%s3 + $0xc0] sm:$0xff]
      %v1362 = vld [vmem:[%s3 + $0xc8] sm:$0xff]
      %v1363 = vld [vmem:[%s3 + $0xd0] sm:$0xff]
      %v1364 = vld [vmem:[%s3 + $0xd8] sm:$0xff]
      %v1365 = vld [vmem:[%s3 + $0xe0] sm:$0xff]
      %v1366 = vld [vmem:[%s3 + $0xe8] sm:$0xff]
      %v1367 = vld [vmem:[%s3 + $0xf0] sm:$0xff]
      %v1368 = vld [vmem:[%s3 + $0xf8] sm:$0xff]
      %v1401 = vunpack.c.l.b16 %v1337
      %v1402 = vunpack.c.h.b16 %v1337
      %v1403 = vunpack.c.l.b16 %v1338
      %v1404 = vunpack.c.h.b16 %v1338
      %v1405 = vunpack.c.l.b16 %v1339
      %v1406 = vunpack.c.h.b16 %v1339
      %v1407 = vunpack.c.l.b16 %v1340
      %v1408 = vunpack.c.h.b16 %v1340
      %v1409 = vunpack.c.l.b16 %v1341
      %v1410 = vunpack.c.h.b16 %v1341
      %v1411 = vunpack.c.l.b16 %v1342
      %v1412 = vunpack.c.h.b16 %v1342
      %v1413 = vunpack.c.l.b16 %v1343
      %v1414 = vunpack.c.h.b16 %v1343
      %v1415 = vunpack.c.l.b16 %v1344
      %v1416 = vunpack.c.h.b16 %v1344
      %v1417 = vunpack.c.l.b16 %v1345
      %v1418 = vunpack.c.h.b16 %v1345
      %v1419 = vunpack.c.l.b16 %v1346
      %v1420 = vunpack.c.h.b16 %v1346
      %v1421 = vunpack.c.l.b16 %v1347
      %v1422 = vunpack.c.h.b16 %v1347
      %v1423 = vunpack.c.l.b16 %v1348
      %v1424 = vunpack.c.h.b16 %v1348
      %v1425 = vunpack.c.l.b16 %v1349
      %v1426 = vunpack.c.h.b16 %v1349
      %v1427 = vunpack.c.l.b16 %v1350
      %v1428 = vunpack.c.h.b16 %v1350
      %v1429 = vunpack.c.l.b16 %v1351
      %v1430 = vunpack.c.h.b16 %v1351
      %v1431 = vunpack.c.l.b16 %v1352
      %v1432 = vunpack.c.h.b16 %v1352
      %v1433 = vunpack.c.l.b16 %v1353
      %v1434 = vunpack.c.h.b16 %v1353
      %v1435 = vunpack.c.l.b16 %v1354
      %v1436 = vunpack.c.h.b16 %v1354
      %v1437 = vunpack.c.l.b16 %v1355
      %v1438 = vunpack.c.h.b16 %v1355
      %v1439 = vunpack.c.l.b16 %v1356
      %v1440 = vunpack.c.h.b16 %v1356
      %v1441 = vunpack.c.l.b16 %v1357
      %v1442 = vunpack.c.h.b16 %v1357
      %v1443 = vunpack.c.l.b16 %v1358
      %v1444 = vunpack.c.h.b16 %v1358
      %v1445 = vunpack.c.l.b16 %v1359
      %v1446 = vunpack.c.h.b16 %v1359
      %v1447 = vunpack.c.l.b16 %v1360
      %v1448 = vunpack.c.h.b16 %v1360
      %v1449 = vunpack.c.l.b16 %v1361
      %v1450 = vunpack.c.h.b16 %v1361
      %v1451 = vunpack.c.l.b16 %v1362
      %v1452 = vunpack.c.h.b16 %v1362
      %v1453 = vunpack.c.l.b16 %v1363
      %v1454 = vunpack.c.h.b16 %v1363
      %v1455 = vunpack.c.l.b16 %v1364
      %v1456 = vunpack.c.h.b16 %v1364
      %v1457 = vunpack.c.l.b16 %v1365
      %v1458 = vunpack.c.h.b16 %v1365
      %v1459 = vunpack.c.l.b16 %v1366
      %v1460 = vunpack.c.h.b16 %v1366
      %v1461 = vunpack.c.l.b16 %v1367
      %v1462 = vunpack.c.h.b16 %v1367
      %v1463 = vunpack.c.l.b16 %v1368
      %v1464 = vunpack.c.h.b16 %v1368
      %v1465 = vpack.c.b16 %v1405, %v1401
      %v1466 = vpack.c.b16 %v1406, %v1402
      %v1467 = vpack.c.b16 %v1407, %v1403
      %v1468 = vpack.c.b16 %v1408, %v1404
      %v1469 = vpack.c.b16 %v1413, %v1409
      %v1470 = vpack.c.b16 %v1414, %v1410
      %v1471 = vpack.c.b16 %v1415, %v1411
      %v1472 = vpack.c.b16 %v1416, %v1412
      %v1473 = vpack.c.b16 %v1421, %v1417
      %v1474 = vpack.c.b16 %v1422, %v1418
      %v1475 = vpack.c.b16 %v1423, %v1419
      %v1476 = vpack.c.b16 %v1424, %v1420
      %v1477 = vpack.c.b16 %v1429, %v1425
      %v1478 = vpack.c.b16 %v1430, %v1426
      %v1479 = vpack.c.b16 %v1431, %v1427
      %v1480 = vpack.c.b16 %v1432, %v1428
      %v1481 = vpack.c.b16 %v1437, %v1433
      %v1482 = vpack.c.b16 %v1438, %v1434
      %v1483 = vpack.c.b16 %v1439, %v1435
      %v1484 = vpack.c.b16 %v1440, %v1436
      %v1485 = vpack.c.b16 %v1445, %v1441
      %v1486 = vpack.c.b16 %v1446, %v1442
      %v1487 = vpack.c.b16 %v1447, %v1443
      %v1488 = vpack.c.b16 %v1448, %v1444
      %v1489 = vpack.c.b16 %v1453, %v1449
      %v1490 = vpack.c.b16 %v1454, %v1450
      %v1491 = vpack.c.b16 %v1455, %v1451
      %v1492 = vpack.c.b16 %v1456, %v1452
      %v1493 = vpack.c.b16 %v1461, %v1457
      %v1494 = vpack.c.b16 %v1462, %v1458
      %v1495 = vpack.c.b16 %v1463, %v1459
      %v1496 = vpack.c.b16 %v1464, %v1460
      %1529 = vmatpush.bf16.msra.mxu0 %v1493
      %1530 = vmatpush.bf16.msra.mxu0 %v1489
      %1531 = vmatpush.bf16.msra.mxu0 %v1485
      %1532 = vmatpush.bf16.msra.mxu0 %v1481
      %1533 = vmatpush.bf16.msra.mxu0 %v1477
      %1534 = vmatpush.bf16.msra.mxu0 %v1473
      %1535 = vmatpush.bf16.msra.mxu0 %v1469
      %1536 = vmatpush.bf16.msra.mxu0 %v1465
      %1537 = vmatmul.bf16.gmra.mxu0 %v1336
      %v1538 = vpop.f32.mrf.mxu0
      %v1539 = vadd.f32 0.0, %v1538
      %v1540 = vpop.f32.mrf.mxu0
      %v1541 = vadd.f32 0.0, %v1540
      %1542 = vdwg.mxu0
      %1543 = vmatpush.bf16.msra.mxu0 %v1494
      %1544 = vmatpush.bf16.msra.mxu0 %v1490
      %1545 = vmatpush.bf16.msra.mxu0 %v1486
      %1546 = vmatpush.bf16.msra.mxu0 %v1482
      %1547 = vmatpush.bf16.msra.mxu0 %v1478
      %1548 = vmatpush.bf16.msra.mxu0 %v1474
      %1549 = vmatpush.bf16.msra.mxu0 %v1470
      %1550 = vmatpush.bf16.msra.mxu0 %v1466
      %1551 = vmatmul.bf16.gmra.mxu0 %v1336
      %v1552 = vpop.f32.mrf.mxu0
      %v1553 = vadd.f32 0.0, %v1552
      %v1554 = vpop.f32.mrf.mxu0
      %v1555 = vadd.f32 0.0, %v1554
      %1556 = vdwg.mxu0
      %1557 = vmatpush.bf16.msra.mxu0 %v1495
      %1558 = vmatpush.bf16.msra.mxu0 %v1491
      %1559 = vmatpush.bf16.msra.mxu0 %v1487
      %1560 = vmatpush.bf16.msra.mxu0 %v1483
      %1561 = vmatpush.bf16.msra.mxu0 %v1479
      %1562 = vmatpush.bf16.msra.mxu0 %v1475
      %1563 = vmatpush.bf16.msra.mxu0 %v1471
      %1564 = vmatpush.bf16.msra.mxu0 %v1467
      %1565 = vmatmul.bf16.gmra.mxu0 %v1336
      %v1566 = vpop.f32.mrf.mxu0
      %v1567 = vadd.f32 0.0, %v1566
      %v1568 = vpop.f32.mrf.mxu0
      %v1569 = vadd.f32 0.0, %v1568
      %1570 = vdwg.mxu0
      %1571 = vmatpush.bf16.msra.mxu0 %v1496
      %1572 = vmatpush.bf16.msra.mxu0 %v1492
      %1573 = vmatpush.bf16.msra.mxu0 %v1488
      %1574 = vmatpush.bf16.msra.mxu0 %v1484
      %1575 = vmatpush.bf16.msra.mxu0 %v1480
      %1576 = vmatpush.bf16.msra.mxu0 %v1476
      %1577 = vmatpush.bf16.msra.mxu0 %v1472
      %1578 = vmatpush.bf16.msra.mxu0 %v1468
      %1579 = vmatmul.bf16.gmra.mxu0 %v1336
      %v1580 = vpop.f32.mrf.mxu0
      %v1581 = vadd.f32 0.0, %v1580
      %v1582 = vpop.f32.mrf.mxu0
      %v1583 = vadd.f32 0.0, %v1582
      %1584 = vdwg.mxu0
      %v1585 = vld [vmem:[%s6 + $0x10] sm:$0xf]
      %v1586 = vpack.c.bf16 %v1541, %v1539
      %v1587 = vpack.c.bf16 %v1555, %v1553
      %v1588 = vpack.c.bf16 %v1569, %v1567
      %v1589 = vpack.c.bf16 %v1583, %v1581
      %1590 = vrot.lane.b32.xlu0 %v1539, 17
      %v1591 = vpop.permute.xlu0 %1590
      %1592 = vrot.lane.b32.xlu0 %v1541, 17
      %v1593 = vpop.permute.xlu0 %1592
      %1594 = vrot.lane.b32.xlu0 %v1553, 17
      %v1595 = vpop.permute.xlu0 %1594
      %1596 = vrot.lane.b32.xlu0 %v1555, 17
      %v1597 = vpop.permute.xlu0 %1596
      %1598 = vrot.lane.b32.xlu0 %v1567, 17
      %v1599 = vpop.permute.xlu0 %1598
      %1600 = vrot.lane.b32.xlu0 %v1569, 17
      %v1601 = vpop.permute.xlu0 %1600
      %1602 = vrot.lane.b32.xlu0 %v1581, 17
      %v1603 = vpop.permute.xlu0 %1602
      %1604 = vrot.lane.b32.xlu0 %v1583, 17
      %v1605 = vpop.permute.xlu0 %1604
      %v1606 = vsel %vm487, %v1599, %v1603
      %v1607 = vsel %vm487, %v1601, %v1605
      %v1608 = vsel %vm487, %v1595, %v1599
      %v1609 = vsel %vm487, %v1597, %v1601
      %v1610 = vsel %vm487, %v1591, %v1595
      %v1611 = vsel %vm487, %v1593, %v1597
      %v1612 = vsel %vm487, %v1603, %v1591
      %v1613 = vsel %vm487, %v1605, %v1593
      %v1614 = vmul.f32 %v1612, %v492
      %v1615 = vmul.f32 %v1610, %v493
      %v1616 = vmul.f32 %v1608, %v494
      %v1617 = vmul.f32 %v1606, %v495
      %v1618 = vmul.f32 %v1613, %v492
      %v1619 = vmul.f32 %v1611, %v493
      %v1620 = vmul.f32 %v1609, %v494
      %v1621 = vmul.f32 %v1607, %v495
      %v1622 = vld [vmem:[%s6] sm:$0xf]
      %v1623 = vpack.c.bf16 %v1618, %v1614
      %v1624 = vpack.c.bf16 %v1619, %v1615
      %v1625 = vpack.c.bf16 %v1620, %v1616
      %v1626 = vpack.c.bf16 %v1621, %v1617
      %vm1627 = vcmask 130048
      %v1629 = vsel %vm1627, %v1622, 0
      %1631 = vmatpush.bf16.msra.mxu0 0
      %1632 = vmatpush.bf16.msra.mxu0 0
      %1633 = vmatpush.bf16.msra.mxu0 0
      %1634 = vmatpush.bf16.msra.mxu0 0
      %1635 = vmatpush.bf16.msra.mxu0 0
      %1636 = vmatpush.bf16.msra.mxu0 0
      %1637 = vmatpush.bf16.msra.mxu0 0
      %1638 = vmatpush.bf16.msra.mxu0 %v1623
      %1639 = vmatmul.bf16.gmra.mxu0 %v1629
      %v1640 = vpop.f32.mrf.mxu0
      %v1641 = vadd.f32 0.0, %v1640
      %v1642 = vpop.f32.mrf.mxu0
      %1643 = vdwg.mxu0
      %1644 = vmatpush.bf16.msra.mxu0 0
      %1645 = vmatpush.bf16.msra.mxu0 0
      %1646 = vmatpush.bf16.msra.mxu0 0
      %1647 = vmatpush.bf16.msra.mxu0 0
      %1648 = vmatpush.bf16.msra.mxu0 0
      %1649 = vmatpush.bf16.msra.mxu0 0
      %1650 = vmatpush.bf16.msra.mxu0 0
      %1651 = vmatpush.bf16.msra.mxu0 %v1624
      %1652 = vmatmul.bf16.gmra.mxu0 %v1629
      %v1653 = vpop.f32.mrf.mxu0
      %v1654 = vadd.f32 0.0, %v1653
      %v1655 = vpop.f32.mrf.mxu0
      %1656 = vdwg.mxu0
      %1657 = vmatpush.bf16.msra.mxu0 0
      %1658 = vmatpush.bf16.msra.mxu0 0
      %1659 = vmatpush.bf16.msra.mxu0 0
      %1660 = vmatpush.bf16.msra.mxu0 0
      %1661 = vmatpush.bf16.msra.mxu0 0
      %1662 = vmatpush.bf16.msra.mxu0 0
      %1663 = vmatpush.bf16.msra.mxu0 0
      %1664 = vmatpush.bf16.msra.mxu0 %v1625
      %1665 = vmatmul.bf16.gmra.mxu0 %v1629
      %v1666 = vpop.f32.mrf.mxu0
      %v1667 = vadd.f32 0.0, %v1666
      %v1668 = vpop.f32.mrf.mxu0
      %1669 = vdwg.mxu0
      %1670 = vmatpush.bf16.msra.mxu0 0
      %1671 = vmatpush.bf16.msra.mxu0 0
      %1672 = vmatpush.bf16.msra.mxu0 0
      %1673 = vmatpush.bf16.msra.mxu0 0
      %1674 = vmatpush.bf16.msra.mxu0 0
      %1675 = vmatpush.bf16.msra.mxu0 0
      %1676 = vmatpush.bf16.msra.mxu0 0
      %1677 = vmatpush.bf16.msra.mxu0 %v1626
      %1678 = vmatmul.bf16.gmra.mxu0 %v1629
      %v1679 = vpop.f32.mrf.mxu0
      %v1680 = vadd.f32 0.0, %v1679
      %v1681 = vpop.f32.mrf.mxu0
      %1682 = vdwg.mxu0
      %v1684 = vsel %vm1627, %v1585, 0
      %1686 = vmatpush.bf16.msra.mxu0 0
      %1687 = vmatpush.bf16.msra.mxu0 0
      %1688 = vmatpush.bf16.msra.mxu0 0
      %1689 = vmatpush.bf16.msra.mxu0 0
      %1690 = vmatpush.bf16.msra.mxu0 0
      %1691 = vmatpush.bf16.msra.mxu0 0
      %1692 = vmatpush.bf16.msra.mxu0 0
      %1693 = vmatpush.bf16.msra.mxu0 %v1586
      %1694 = vmatmul.bf16.gmra.mxu0 %v1684
      %v1695 = vpop.f32.mrf.mxu0
      %v1696 = vadd.f32 %v1641, %v1695
      %v1697 = vpop.f32.mrf.mxu0
      %1698 = vdwg.mxu0
      %1699 = vmatpush.bf16.msra.mxu0 0
      %1700 = vmatpush.bf16.msra.mxu0 0
      %1701 = vmatpush.bf16.msra.mxu0 0
      %1702 = vmatpush.bf16.msra.mxu0 0
      %1703 = vmatpush.bf16.msra.mxu0 0
      %1704 = vmatpush.bf16.msra.mxu0 0
      %1705 = vmatpush.bf16.msra.mxu0 0
      %1706 = vmatpush.bf16.msra.mxu0 %v1587
      %1707 = vmatmul.bf16.gmra.mxu0 %v1684
      %v1708 = vpop.f32.mrf.mxu0
      %v1709 = vadd.f32 %v1654, %v1708
      %v1710 = vpop.f32.mrf.mxu0
      %1711 = vdwg.mxu0
      %1712 = vmatpush.bf16.msra.mxu0 0
      %1713 = vmatpush.bf16.msra.mxu0 0
      %1714 = vmatpush.bf16.msra.mxu0 0
      %1715 = vmatpush.bf16.msra.mxu0 0
      %1716 = vmatpush.bf16.msra.mxu0 0
      %1717 = vmatpush.bf16.msra.mxu0 0
      %1718 = vmatpush.bf16.msra.mxu0 0
      %1719 = vmatpush.bf16.msra.mxu0 %v1588
      %1720 = vmatmul.bf16.gmra.mxu0 %v1684
      %v1721 = vpop.f32.mrf.mxu0
      %v1722 = vadd.f32 %v1667, %v1721
      %v1723 = vpop.f32.mrf.mxu0
      %1724 = vdwg.mxu0
      %1725 = vmatpush.bf16.msra.mxu0 0
      %1726 = vmatpush.bf16.msra.mxu0 0
      %1727 = vmatpush.bf16.msra.mxu0 0
      %1728 = vmatpush.bf16.msra.mxu0 0
      %1729 = vmatpush.bf16.msra.mxu0 0
      %1730 = vmatpush.bf16.msra.mxu0 0
      %1731 = vmatpush.bf16.msra.mxu0 0
      %1732 = vmatpush.bf16.msra.mxu0 %v1589
      %1733 = vmatmul.bf16.gmra.mxu0 %v1684
      %v1734 = vpop.f32.mrf.mxu0
      %v1735 = vadd.f32 %v1680, %v1734
      %v1736 = vpop.f32.mrf.mxu0
      %1737 = vdwg.mxu0
      %1738 = vrot.lane.b32.xlu0 %v1539, 16
      %v1739 = vpop.permute.xlu0 %1738
      %1740 = vrot.lane.b32.xlu0 %v1541, 16
      %v1741 = vpop.permute.xlu0 %1740
      %1742 = vrot.lane.b32.xlu0 %v1553, 16
      %v1743 = vpop.permute.xlu0 %1742
      %1744 = vrot.lane.b32.xlu0 %v1555, 16
      %v1745 = vpop.permute.xlu0 %1744
      %1746 = vrot.lane.b32.xlu0 %v1567, 16
      %v1747 = vpop.permute.xlu0 %1746
      %1748 = vrot.lane.b32.xlu0 %v1569, 16
      %v1749 = vpop.permute.xlu0 %1748
      %1750 = vrot.lane.b32.xlu0 %v1581, 16
      %v1751 = vpop.permute.xlu0 %1750
      %1752 = vrot.lane.b32.xlu0 %v1583, 16
      %v1753 = vpop.permute.xlu0 %1752
      %v1754 = vsel %vm649, %v1747, %v1751
      %v1755 = vsel %vm649, %v1749, %v1753
      %v1756 = vsel %vm649, %v1743, %v1747
      %v1757 = vsel %vm649, %v1745, %v1749
      %v1758 = vsel %vm649, %v1739, %v1743
      %v1759 = vsel %vm649, %v1741, %v1745
      %v1760 = vsel %vm649, %v1751, %v1739
      %v1761 = vsel %vm649, %v1753, %v1741
      %v1762 = vmul.f32 %v1760, %v654
      %v1763 = vmul.f32 %v1758, %v655
      %v1764 = vmul.f32 %v1756, %v656
      %v1765 = vmul.f32 %v1754, %v657
      %v1766 = vmul.f32 %v1761, %v654
      %v1767 = vmul.f32 %v1759, %v655
      %v1768 = vmul.f32 %v1757, %v656
      %v1769 = vmul.f32 %v1755, %v657
      %v1770 = vld [vmem:[%s6 + $0x4] sm:$0xf]
      %v1771 = vpack.c.bf16 %v1766, %v1762
      %v1772 = vpack.c.bf16 %v1767, %v1763
      %v1773 = vpack.c.bf16 %v1768, %v1764
      %v1774 = vpack.c.bf16 %v1769, %v1765
      %v1776 = vsel %vm1627, %v1770, 0
      %1778 = vmatpush.bf16.msra.mxu0 0
      %1779 = vmatpush.bf16.msra.mxu0 0
      %1780 = vmatpush.bf16.msra.mxu0 0
      %1781 = vmatpush.bf16.msra.mxu0 0
      %1782 = vmatpush.bf16.msra.mxu0 0
      %1783 = vmatpush.bf16.msra.mxu0 0
      %1784 = vmatpush.bf16.msra.mxu0 0
      %1785 = vmatpush.bf16.msra.mxu0 %v1771
      %1786 = vmatmul.bf16.gmra.mxu0 %v1776
      %v1787 = vpop.f32.mrf.mxu0
      %v1788 = vadd.f32 0.0, %v1787
      %v1789 = vpop.f32.mrf.mxu0
      %1790 = vdwg.mxu0
      %1791 = vmatpush.bf16.msra.mxu0 0
      %1792 = vmatpush.bf16.msra.mxu0 0
      %1793 = vmatpush.bf16.msra.mxu0 0
      %1794 = vmatpush.bf16.msra.mxu0 0
      %1795 = vmatpush.bf16.msra.mxu0 0
      %1796 = vmatpush.bf16.msra.mxu0 0
      %1797 = vmatpush.bf16.msra.mxu0 0
      %1798 = vmatpush.bf16.msra.mxu0 %v1772
      %1799 = vmatmul.bf16.gmra.mxu0 %v1776
      %v1800 = vpop.f32.mrf.mxu0
      %v1801 = vadd.f32 0.0, %v1800
      %v1802 = vpop.f32.mrf.mxu0
      %1803 = vdwg.mxu0
      %1804 = vmatpush.bf16.msra.mxu0 0
      %1805 = vmatpush.bf16.msra.mxu0 0
      %1806 = vmatpush.bf16.msra.mxu0 0
      %1807 = vmatpush.bf16.msra.mxu0 0
      %1808 = vmatpush.bf16.msra.mxu0 0
      %1809 = vmatpush.bf16.msra.mxu0 0
      %1810 = vmatpush.bf16.msra.mxu0 0
      %1811 = vmatpush.bf16.msra.mxu0 %v1773
      %1812 = vmatmul.bf16.gmra.mxu0 %v1776
      %v1813 = vpop.f32.mrf.mxu0
      %v1814 = vadd.f32 0.0, %v1813
      %v1815 = vpop.f32.mrf.mxu0
      %1816 = vdwg.mxu0
      %1817 = vmatpush.bf16.msra.mxu0 0
      %1818 = vmatpush.bf16.msra.mxu0 0
      %1819 = vmatpush.bf16.msra.mxu0 0
      %1820 = vmatpush.bf16.msra.mxu0 0
      %1821 = vmatpush.bf16.msra.mxu0 0
      %1822 = vmatpush.bf16.msra.mxu0 0
      %1823 = vmatpush.bf16.msra.mxu0 0
      %1824 = vmatpush.bf16.msra.mxu0 %v1774
      %1825 = vmatmul.bf16.gmra.mxu0 %v1776
      %v1826 = vpop.f32.mrf.mxu0
      %v1827 = vadd.f32 0.0, %v1826
      %v1828 = vpop.f32.mrf.mxu0
      %1829 = vdwg.mxu0
      %v1830 = vadd.f32 %v1696, %v1788
      %v1831 = vadd.f32 %v1709, %v1801
      %v1832 = vadd.f32 %v1722, %v1814
      %v1833 = vadd.f32 %v1735, %v1827
      %1834 = vrot.lane.b32.xlu0 %v1539, 15
      %v1835 = vpop.permute.xlu0 %1834
      %1836 = vrot.lane.b32.xlu0 %v1541, 15
      %v1837 = vpop.permute.xlu0 %1836
      %1838 = vrot.lane.b32.xlu0 %v1553, 15
      %v1839 = vpop.permute.xlu0 %1838
      %1840 = vrot.lane.b32.xlu0 %v1555, 15
      %v1841 = vpop.permute.xlu0 %1840
      %1842 = vrot.lane.b32.xlu0 %v1567, 15
      %v1843 = vpop.permute.xlu0 %1842
      %1844 = vrot.lane.b32.xlu0 %v1569, 15
      %v1845 = vpop.permute.xlu0 %1844
      %1846 = vrot.lane.b32.xlu0 %v1581, 15
      %v1847 = vpop.permute.xlu0 %1846
      %1848 = vrot.lane.b32.xlu0 %v1583, 15
      %v1849 = vpop.permute.xlu0 %1848
      %v1850 = vsel %vm746, %v1843, %v1847
      %v1851 = vsel %vm746, %v1845, %v1849
      %v1852 = vsel %vm746, %v1839, %v1843
      %v1853 = vsel %vm746, %v1841, %v1845
      %v1854 = vsel %vm746, %v1835, %v1839
      %v1855 = vsel %vm746, %v1837, %v1841
      %v1856 = vsel %vm746, %v1847, %v1835
      %v1857 = vsel %vm746, %v1849, %v1837
      %v1858 = vmul.f32 %v1856, %v751
      %v1859 = vmul.f32 %v1854, %v752
      %v1860 = vmul.f32 %v1852, %v753
      %v1861 = vmul.f32 %v1850, %v754
      %v1862 = vmul.f32 %v1857, %v751
      %v1863 = vmul.f32 %v1855, %v752
      %v1864 = vmul.f32 %v1853, %v753
      %v1865 = vmul.f32 %v1851, %v754
      %v1866 = vld [vmem:[%s6 + $0x8] sm:$0xf]
      %v1867 = vpack.c.bf16 %v1862, %v1858
      %v1868 = vpack.c.bf16 %v1863, %v1859
      %v1869 = vpack.c.bf16 %v1864, %v1860
      %v1870 = vpack.c.bf16 %v1865, %v1861
      %v1872 = vsel %vm1627, %v1866, 0
      %1874 = vmatpush.bf16.msra.mxu0 0
      %1875 = vmatpush.bf16.msra.mxu0 0
      %1876 = vmatpush.bf16.msra.mxu0 0
      %1877 = vmatpush.bf16.msra.mxu0 0
      %1878 = vmatpush.bf16.msra.mxu0 0
      %1879 = vmatpush.bf16.msra.mxu0 0
      %1880 = vmatpush.bf16.msra.mxu0 0
      %1881 = vmatpush.bf16.msra.mxu0 %v1867
      %1882 = vmatmul.bf16.gmra.mxu0 %v1872
      %v1883 = vpop.f32.mrf.mxu0
      %v1884 = vadd.f32 0.0, %v1883
      %v1885 = vpop.f32.mrf.mxu0
      %1886 = vdwg.mxu0
      %1887 = vmatpush.bf16.msra.mxu0 0
      %1888 = vmatpush.bf16.msra.mxu0 0
      %1889 = vmatpush.bf16.msra.mxu0 0
      %1890 = vmatpush.bf16.msra.mxu0 0
      %1891 = vmatpush.bf16.msra.mxu0 0
      %1892 = vmatpush.bf16.msra.mxu0 0
      %1893 = vmatpush.bf16.msra.mxu0 0
      %1894 = vmatpush.bf16.msra.mxu0 %v1868
      %1895 = vmatmul.bf16.gmra.mxu0 %v1872
      %v1896 = vpop.f32.mrf.mxu0
      %v1897 = vadd.f32 0.0, %v1896
      %v1898 = vpop.f32.mrf.mxu0
      %1899 = vdwg.mxu0
      %1900 = vmatpush.bf16.msra.mxu0 0
      %1901 = vmatpush.bf16.msra.mxu0 0
      %1902 = vmatpush.bf16.msra.mxu0 0
      %1903 = vmatpush.bf16.msra.mxu0 0
      %1904 = vmatpush.bf16.msra.mxu0 0
      %1905 = vmatpush.bf16.msra.mxu0 0
      %1906 = vmatpush.bf16.msra.mxu0 0
      %1907 = vmatpush.bf16.msra.mxu0 %v1869
      %1908 = vmatmul.bf16.gmra.mxu0 %v1872
      %v1909 = vpop.f32.mrf.mxu0
      %v1910 = vadd.f32 0.0, %v1909
      %v1911 = vpop.f32.mrf.mxu0
      %1912 = vdwg.mxu0
      %1913 = vmatpush.bf16.msra.mxu0 0
      %1914 = vmatpush.bf16.msra.mxu0 0
      %1915 = vmatpush.bf16.msra.mxu0 0
      %1916 = vmatpush.bf16.msra.mxu0 0
      %1917 = vmatpush.bf16.msra.mxu0 0
      %1918 = vmatpush.bf16.msra.mxu0 0
      %1919 = vmatpush.bf16.msra.mxu0 0
      %1920 = vmatpush.bf16.msra.mxu0 %v1870
      %1921 = vmatmul.bf16.gmra.mxu0 %v1872
      %v1922 = vpop.f32.mrf.mxu0
      %v1923 = vadd.f32 0.0, %v1922
      %v1924 = vpop.f32.mrf.mxu0
      %1925 = vdwg.mxu0
      %v1926 = vadd.f32 %v1830, %v1884
      %v1927 = vadd.f32 %v1831, %v1897
      %v1928 = vadd.f32 %v1832, %v1910
      %v1929 = vadd.f32 %v1833, %v1923
      %1930 = vrot.lane.b32.xlu0 %v1539, 1
      %v1931 = vpop.permute.xlu0 %1930
      %1932 = vrot.lane.b32.xlu0 %v1541, 1
      %v1933 = vpop.permute.xlu0 %1932
      %1934 = vrot.lane.b32.xlu0 %v1553, 1
      %v1935 = vpop.permute.xlu0 %1934
      %1936 = vrot.lane.b32.xlu0 %v1555, 1
      %v1937 = vpop.permute.xlu0 %1936
      %1938 = vrot.lane.b32.xlu0 %v1567, 1
      %v1939 = vpop.permute.xlu0 %1938
      %1940 = vrot.lane.b32.xlu0 %v1569, 1
      %v1941 = vpop.permute.xlu0 %1940
      %1942 = vrot.lane.b32.xlu0 %v1581, 1
      %v1943 = vpop.permute.xlu0 %1942
      %1944 = vrot.lane.b32.xlu0 %v1583, 1
      %v1945 = vpop.permute.xlu0 %1944
      %v1946 = vsel %vm843, %v1939, %v1943
      %v1947 = vsel %vm843, %v1941, %v1945
      %v1948 = vsel %vm843, %v1935, %v1939
      %v1949 = vsel %vm843, %v1937, %v1941
      %v1950 = vsel %vm843, %v1931, %v1935
      %v1951 = vsel %vm843, %v1933, %v1937
      %v1952 = vsel %vm843, %v1943, %v1931
      %v1953 = vsel %vm843, %v1945, %v1933
      %v1954 = vmul.f32 %v1952, %v848
      %v1955 = vmul.f32 %v1950, %v849
      %v1956 = vmul.f32 %v1948, %v850
      %v1957 = vmul.f32 %v1946, %v851
      %v1958 = vmul.f32 %v1953, %v848
      %v1959 = vmul.f32 %v1951, %v849
      %v1960 = vmul.f32 %v1949, %v850
      %v1961 = vmul.f32 %v1947, %v851
      %v1962 = vld [vmem:[%s6 + $0xc] sm:$0xf]
      %v1963 = vpack.c.bf16 %v1958, %v1954
      %v1964 = vpack.c.bf16 %v1959, %v1955
      %v1965 = vpack.c.bf16 %v1960, %v1956
      %v1966 = vpack.c.bf16 %v1961, %v1957
      %v1968 = vsel %vm1627, %v1962, 0
      %1970 = vmatpush.bf16.msra.mxu0 0
      %1971 = vmatpush.bf16.msra.mxu0 0
      %1972 = vmatpush.bf16.msra.mxu0 0
      %1973 = vmatpush.bf16.msra.mxu0 0
      %1974 = vmatpush.bf16.msra.mxu0 0
      %1975 = vmatpush.bf16.msra.mxu0 0
      %1976 = vmatpush.bf16.msra.mxu0 0
      %1977 = vmatpush.bf16.msra.mxu0 %v1963
      %1978 = vmatmul.bf16.gmra.mxu0 %v1968
      %v1979 = vpop.f32.mrf.mxu0
      %v1980 = vadd.f32 0.0, %v1979
      %v1981 = vpop.f32.mrf.mxu0
      %1982 = vdwg.mxu0
      %1983 = vmatpush.bf16.msra.mxu0 0
      %1984 = vmatpush.bf16.msra.mxu0 0
      %1985 = vmatpush.bf16.msra.mxu0 0
      %1986 = vmatpush.bf16.msra.mxu0 0
      %1987 = vmatpush.bf16.msra.mxu0 0
      %1988 = vmatpush.bf16.msra.mxu0 0
      %1989 = vmatpush.bf16.msra.mxu0 0
      %1990 = vmatpush.bf16.msra.mxu0 %v1964
      %1991 = vmatmul.bf16.gmra.mxu0 %v1968
      %v1992 = vpop.f32.mrf.mxu0
      %v1993 = vadd.f32 0.0, %v1992
      %v1994 = vpop.f32.mrf.mxu0
      %1995 = vdwg.mxu0
      %1996 = vmatpush.bf16.msra.mxu0 0
      %1997 = vmatpush.bf16.msra.mxu0 0
      %1998 = vmatpush.bf16.msra.mxu0 0
      %1999 = vmatpush.bf16.msra.mxu0 0
      %2000 = vmatpush.bf16.msra.mxu0 0
      %2001 = vmatpush.bf16.msra.mxu0 0
      %2002 = vmatpush.bf16.msra.mxu0 0
      %2003 = vmatpush.bf16.msra.mxu0 %v1965
      %2004 = vmatmul.bf16.gmra.mxu0 %v1968
      %v2005 = vpop.f32.mrf.mxu0
      %v2006 = vadd.f32 0.0, %v2005
      %v2007 = vpop.f32.mrf.mxu0
      %2008 = vdwg.mxu0
      %2009 = vmatpush.bf16.msra.mxu0 0
      %2010 = vmatpush.bf16.msra.mxu0 0
      %2011 = vmatpush.bf16.msra.mxu0 0
      %2012 = vmatpush.bf16.msra.mxu0 0
      %2013 = vmatpush.bf16.msra.mxu0 0
      %2014 = vmatpush.bf16.msra.mxu0 0
      %2015 = vmatpush.bf16.msra.mxu0 0
      %2016 = vmatpush.bf16.msra.mxu0 %v1966
      %2017 = vmatmul.bf16.gmra.mxu0 %v1968
      %v2018 = vpop.f32.mrf.mxu0
      %v2019 = vadd.f32 0.0, %v2018
      %v2020 = vpop.f32.mrf.mxu0
      %2021 = vdwg.mxu0
      %v2022 = vadd.f32 %v1926, %v1980
      %v2023 = vadd.f32 %v1927, %v1993
      %v2024 = vadd.f32 %v1928, %v2006
      %v2025 = vadd.f32 %v1929, %v2019
      %2026 = vrot.lane.b32.xlu0 %v1539, 127
      %v2027 = vpop.permute.xlu0 %2026
      %2028 = vrot.lane.b32.xlu0 %v1541, 127
      %v2029 = vpop.permute.xlu0 %2028
      %2030 = vrot.lane.b32.xlu0 %v1553, 127
      %v2031 = vpop.permute.xlu0 %2030
      %2032 = vrot.lane.b32.xlu0 %v1555, 127
      %v2033 = vpop.permute.xlu0 %2032
      %2034 = vrot.lane.b32.xlu0 %v1567, 127
      %v2035 = vpop.permute.xlu0 %2034
      %2036 = vrot.lane.b32.xlu0 %v1569, 127
      %v2037 = vpop.permute.xlu0 %2036
      %2038 = vrot.lane.b32.xlu0 %v1581, 127
      %v2039 = vpop.permute.xlu0 %2038
      %2040 = vrot.lane.b32.xlu0 %v1583, 127
      %v2041 = vpop.permute.xlu0 %2040
      %v2042 = vsel %vm940, %v2035, %v2039
      %v2043 = vsel %vm940, %v2037, %v2041
      %v2044 = vsel %vm940, %v2031, %v2035
      %v2045 = vsel %vm940, %v2033, %v2037
      %v2046 = vsel %vm940, %v2027, %v2031
      %v2047 = vsel %vm940, %v2029, %v2033
      %v2048 = vsel %vm940, %v2039, %v2027
      %v2049 = vsel %vm940, %v2041, %v2029
      %v2050 = vmul.f32 %v2046, %v945
      %v2051 = vmul.f32 %v2044, %v946
      %v2052 = vmul.f32 %v2042, %v947
      %v2053 = vmul.f32 %v2048, %v948
      %v2054 = vmul.f32 %v2047, %v945
      %v2055 = vmul.f32 %v2045, %v946
      %v2056 = vmul.f32 %v2043, %v947
      %v2057 = vmul.f32 %v2049, %v948
      %v2058 = vld [vmem:[%s6 + $0x14] sm:$0xf]
      %v2059 = vpack.c.bf16 %v2054, %v2050
      %v2060 = vpack.c.bf16 %v2055, %v2051
      %v2061 = vpack.c.bf16 %v2056, %v2052
      %v2062 = vpack.c.bf16 %v2057, %v2053
      %v2064 = vsel %vm1627, %v2058, 0
      %2066 = vmatpush.bf16.msra.mxu0 0
      %2067 = vmatpush.bf16.msra.mxu0 0
      %2068 = vmatpush.bf16.msra.mxu0 0
      %2069 = vmatpush.bf16.msra.mxu0 0
      %2070 = vmatpush.bf16.msra.mxu0 0
      %2071 = vmatpush.bf16.msra.mxu0 0
      %2072 = vmatpush.bf16.msra.mxu0 0
      %2073 = vmatpush.bf16.msra.mxu0 %v2059
      %2074 = vmatmul.bf16.gmra.mxu0 %v2064
      %v2075 = vpop.f32.mrf.mxu0
      %v2076 = vadd.f32 0.0, %v2075
      %v2077 = vpop.f32.mrf.mxu0
      %2078 = vdwg.mxu0
      %2079 = vmatpush.bf16.msra.mxu0 0
      %2080 = vmatpush.bf16.msra.mxu0 0
      %2081 = vmatpush.bf16.msra.mxu0 0
      %2082 = vmatpush.bf16.msra.mxu0 0
      %2083 = vmatpush.bf16.msra.mxu0 0
      %2084 = vmatpush.bf16.msra.mxu0 0
      %2085 = vmatpush.bf16.msra.mxu0 0
      %2086 = vmatpush.bf16.msra.mxu0 %v2060
      %2087 = vmatmul.bf16.gmra.mxu0 %v2064
      %v2088 = vpop.f32.mrf.mxu0
      %v2089 = vadd.f32 0.0, %v2088
      %v2090 = vpop.f32.mrf.mxu0
      %2091 = vdwg.mxu0
      %2092 = vmatpush.bf16.msra.mxu0 0
      %2093 = vmatpush.bf16.msra.mxu0 0
      %2094 = vmatpush.bf16.msra.mxu0 0
      %2095 = vmatpush.bf16.msra.mxu0 0
      %2096 = vmatpush.bf16.msra.mxu0 0
      %2097 = vmatpush.bf16.msra.mxu0 0
      %2098 = vmatpush.bf16.msra.mxu0 0
      %2099 = vmatpush.bf16.msra.mxu0 %v2061
      %2100 = vmatmul.bf16.gmra.mxu0 %v2064
      %v2101 = vpop.f32.mrf.mxu0
      %v2102 = vadd.f32 0.0, %v2101
      %v2103 = vpop.f32.mrf.mxu0
      %2104 = vdwg.mxu0
      %2105 = vmatpush.bf16.msra.mxu0 0
      %2106 = vmatpush.bf16.msra.mxu0 0
      %2107 = vmatpush.bf16.msra.mxu0 0
      %2108 = vmatpush.bf16.msra.mxu0 0
      %2109 = vmatpush.bf16.msra.mxu0 0
      %2110 = vmatpush.bf16.msra.mxu0 0
      %2111 = vmatpush.bf16.msra.mxu0 0
      %2112 = vmatpush.bf16.msra.mxu0 %v2062
      %2113 = vmatmul.bf16.gmra.mxu0 %v2064
      %v2114 = vpop.f32.mrf.mxu0
      %v2115 = vadd.f32 0.0, %v2114
      %v2116 = vpop.f32.mrf.mxu0
      %2117 = vdwg.mxu0
      %v2118 = vadd.f32 %v2022, %v2076
      %v2119 = vadd.f32 %v2023, %v2089
      %v2120 = vadd.f32 %v2024, %v2102
      %v2121 = vadd.f32 %v2025, %v2115
      %2122 = vrot.lane.b32.xlu0 %v1539, 113
      %v2123 = vpop.permute.xlu0 %2122
      %2124 = vrot.lane.b32.xlu0 %v1541, 113
      %v2125 = vpop.permute.xlu0 %2124
      %2126 = vrot.lane.b32.xlu0 %v1553, 113
      %v2127 = vpop.permute.xlu0 %2126
      %2128 = vrot.lane.b32.xlu0 %v1555, 113
      %v2129 = vpop.permute.xlu0 %2128
      %2130 = vrot.lane.b32.xlu0 %v1567, 113
      %v2131 = vpop.permute.xlu0 %2130
      %2132 = vrot.lane.b32.xlu0 %v1569, 113
      %v2133 = vpop.permute.xlu0 %2132
      %2134 = vrot.lane.b32.xlu0 %v1581, 113
      %v2135 = vpop.permute.xlu0 %2134
      %2136 = vrot.lane.b32.xlu0 %v1583, 113
      %v2137 = vpop.permute.xlu0 %2136
      %v2138 = vsel %vm1037, %v2131, %v2135
      %v2139 = vsel %vm1037, %v2133, %v2137
      %v2140 = vsel %vm1037, %v2127, %v2131
      %v2141 = vsel %vm1037, %v2129, %v2133
      %v2142 = vsel %vm1037, %v2123, %v2127
      %v2143 = vsel %vm1037, %v2125, %v2129
      %v2144 = vsel %vm1037, %v2135, %v2123
      %v2145 = vsel %vm1037, %v2137, %v2125
      %v2146 = vmul.f32 %v2142, %v1042
      %v2147 = vmul.f32 %v2140, %v1043
      %v2148 = vmul.f32 %v2138, %v1044
      %v2149 = vmul.f32 %v2144, %v1045
      %v2150 = vmul.f32 %v2143, %v1042
      %v2151 = vmul.f32 %v2141, %v1043
      %v2152 = vmul.f32 %v2139, %v1044
      %v2153 = vmul.f32 %v2145, %v1045
      %v2154 = vld [vmem:[%s6 + $0x18] sm:$0xf]
      %v2155 = vpack.c.bf16 %v2150, %v2146
      %v2156 = vpack.c.bf16 %v2151, %v2147
      %v2157 = vpack.c.bf16 %v2152, %v2148
      %v2158 = vpack.c.bf16 %v2153, %v2149
      %v2160 = vsel %vm1627, %v2154, 0
      %2162 = vmatpush.bf16.msra.mxu0 0
      %2163 = vmatpush.bf16.msra.mxu0 0
      %2164 = vmatpush.bf16.msra.mxu0 0
      %2165 = vmatpush.bf16.msra.mxu0 0
      %2166 = vmatpush.bf16.msra.mxu0 0
      %2167 = vmatpush.bf16.msra.mxu0 0
      %2168 = vmatpush.bf16.msra.mxu0 0
      %2169 = vmatpush.bf16.msra.mxu0 %v2155
      %2170 = vmatmul.bf16.gmra.mxu0 %v2160
      %v2171 = vpop.f32.mrf.mxu0
      %v2172 = vadd.f32 0.0, %v2171
      %v2173 = vpop.f32.mrf.mxu0
      %2174 = vdwg.mxu0
      %2175 = vmatpush.bf16.msra.mxu0 0
      %2176 = vmatpush.bf16.msra.mxu0 0
      %2177 = vmatpush.bf16.msra.mxu0 0
      %2178 = vmatpush.bf16.msra.mxu0 0
      %2179 = vmatpush.bf16.msra.mxu0 0
      %2180 = vmatpush.bf16.msra.mxu0 0
      %2181 = vmatpush.bf16.msra.mxu0 0
      %2182 = vmatpush.bf16.msra.mxu0 %v2156
      %2183 = vmatmul.bf16.gmra.mxu0 %v2160
      %v2184 = vpop.f32.mrf.mxu0
      %v2185 = vadd.f32 0.0, %v2184
      %v2186 = vpop.f32.mrf.mxu0
      %2187 = vdwg.mxu0
      %2188 = vmatpush.bf16.msra.mxu0 0
      %2189 = vmatpush.bf16.msra.mxu0 0
      %2190 = vmatpush.bf16.msra.mxu0 0
      %2191 = vmatpush.bf16.msra.mxu0 0
      %2192 = vmatpush.bf16.msra.mxu0 0
      %2193 = vmatpush.bf16.msra.mxu0 0
      %2194 = vmatpush.bf16.msra.mxu0 0
      %2195 = vmatpush.bf16.msra.mxu0 %v2157
      %2196 = vmatmul.bf16.gmra.mxu0 %v2160
      %v2197 = vpop.f32.mrf.mxu0
      %v2198 = vadd.f32 0.0, %v2197
      %v2199 = vpop.f32.mrf.mxu0
      %2200 = vdwg.mxu0
      %2201 = vmatpush.bf16.msra.mxu0 0
      %2202 = vmatpush.bf16.msra.mxu0 0
      %2203 = vmatpush.bf16.msra.mxu0 0
      %2204 = vmatpush.bf16.msra.mxu0 0
      %2205 = vmatpush.bf16.msra.mxu0 0
      %2206 = vmatpush.bf16.msra.mxu0 0
      %2207 = vmatpush.bf16.msra.mxu0 0
      %2208 = vmatpush.bf16.msra.mxu0 %v2158
      %2209 = vmatmul.bf16.gmra.mxu0 %v2160
      %v2210 = vpop.f32.mrf.mxu0
      %v2211 = vadd.f32 0.0, %v2210
      %v2212 = vpop.f32.mrf.mxu0
      %2213 = vdwg.mxu0
      %v2214 = vadd.f32 %v2118, %v2172
      %v2215 = vadd.f32 %v2119, %v2185
      %v2216 = vadd.f32 %v2120, %v2198
      %v2217 = vadd.f32 %v2121, %v2211
      %2218 = vrot.lane.b32.xlu0 %v1539, 112
      %v2219 = vpop.permute.xlu0 %2218
      %2220 = vrot.lane.b32.xlu0 %v1541, 112
      %v2221 = vpop.permute.xlu0 %2220
      %2222 = vrot.lane.b32.xlu0 %v1553, 112
      %v2223 = vpop.permute.xlu0 %2222
      %2224 = vrot.lane.b32.xlu0 %v1555, 112
      %v2225 = vpop.permute.xlu0 %2224
      %2226 = vrot.lane.b32.xlu0 %v1567, 112
      %v2227 = vpop.permute.xlu0 %2226
      %2228 = vrot.lane.b32.xlu0 %v1569, 112
      %v2229 = vpop.permute.xlu0 %2228
      %2230 = vrot.lane.b32.xlu0 %v1581, 112
      %v2231 = vpop.permute.xlu0 %2230
      %2232 = vrot.lane.b32.xlu0 %v1583, 112
      %v2233 = vpop.permute.xlu0 %2232
      %v2234 = vsel %vm1134, %v2227, %v2231
      %v2235 = vsel %vm1134, %v2229, %v2233
      %v2236 = vsel %vm1134, %v2223, %v2227
      %v2237 = vsel %vm1134, %v2225, %v2229
      %v2238 = vsel %vm1134, %v2219, %v2223
      %v2239 = vsel %vm1134, %v2221, %v2225
      %v2240 = vsel %vm1134, %v2231, %v2219
      %v2241 = vsel %vm1134, %v2233, %v2221
      %v2242 = vmul.f32 %v2238, %v1139
      %v2243 = vmul.f32 %v2236, %v1140
      %v2244 = vmul.f32 %v2234, %v1141
      %v2245 = vmul.f32 %v2240, %v1142
      %v2246 = vmul.f32 %v2239, %v1139
      %v2247 = vmul.f32 %v2237, %v1140
      %v2248 = vmul.f32 %v2235, %v1141
      %v2249 = vmul.f32 %v2241, %v1142
      %v2250 = vld [vmem:[%s6 + $0x1c] sm:$0xf]
      %v2251 = vpack.c.bf16 %v2246, %v2242
      %v2252 = vpack.c.bf16 %v2247, %v2243
      %v2253 = vpack.c.bf16 %v2248, %v2244
      %v2254 = vpack.c.bf16 %v2249, %v2245
      %v2256 = vsel %vm1627, %v2250, 0
      %2258 = vmatpush.bf16.msra.mxu0 0
      %2259 = vmatpush.bf16.msra.mxu0 0
      %2260 = vmatpush.bf16.msra.mxu0 0
      %2261 = vmatpush.bf16.msra.mxu0 0
      %2262 = vmatpush.bf16.msra.mxu0 0
      %2263 = vmatpush.bf16.msra.mxu0 0
      %2264 = vmatpush.bf16.msra.mxu0 0
      %2265 = vmatpush.bf16.msra.mxu0 %v2251
      %2266 = vmatmul.bf16.gmra.mxu0 %v2256
      %v2267 = vpop.f32.mrf.mxu0
      %v2268 = vadd.f32 0.0, %v2267
      %v2269 = vpop.f32.mrf.mxu0
      %2270 = vdwg.mxu0
      %2271 = vmatpush.bf16.msra.mxu0 0
      %2272 = vmatpush.bf16.msra.mxu0 0
      %2273 = vmatpush.bf16.msra.mxu0 0
      %2274 = vmatpush.bf16.msra.mxu0 0
      %2275 = vmatpush.bf16.msra.mxu0 0
      %2276 = vmatpush.bf16.msra.mxu0 0
      %2277 = vmatpush.bf16.msra.mxu0 0
      %2278 = vmatpush.bf16.msra.mxu0 %v2252
      %2279 = vmatmul.bf16.gmra.mxu0 %v2256
      %v2280 = vpop.f32.mrf.mxu0
      %v2281 = vadd.f32 0.0, %v2280
      %v2282 = vpop.f32.mrf.mxu0
      %2283 = vdwg.mxu0
      %2284 = vmatpush.bf16.msra.mxu0 0
      %2285 = vmatpush.bf16.msra.mxu0 0
      %2286 = vmatpush.bf16.msra.mxu0 0
      %2287 = vmatpush.bf16.msra.mxu0 0
      %2288 = vmatpush.bf16.msra.mxu0 0
      %2289 = vmatpush.bf16.msra.mxu0 0
      %2290 = vmatpush.bf16.msra.mxu0 0
      %2291 = vmatpush.bf16.msra.mxu0 %v2253
      %2292 = vmatmul.bf16.gmra.mxu0 %v2256
      %v2293 = vpop.f32.mrf.mxu0
      %v2294 = vadd.f32 0.0, %v2293
      %v2295 = vpop.f32.mrf.mxu0
      %2296 = vdwg.mxu0
      %2297 = vmatpush.bf16.msra.mxu0 0
      %2298 = vmatpush.bf16.msra.mxu0 0
      %2299 = vmatpush.bf16.msra.mxu0 0
      %2300 = vmatpush.bf16.msra.mxu0 0
      %2301 = vmatpush.bf16.msra.mxu0 0
      %2302 = vmatpush.bf16.msra.mxu0 0
      %2303 = vmatpush.bf16.msra.mxu0 0
      %2304 = vmatpush.bf16.msra.mxu0 %v2254
      %2305 = vmatmul.bf16.gmra.mxu0 %v2256
      %v2306 = vpop.f32.mrf.mxu0
      %v2307 = vadd.f32 0.0, %v2306
      %v2308 = vpop.f32.mrf.mxu0
      %2309 = vdwg.mxu0
      %v2310 = vadd.f32 %v2214, %v2268
      %v2311 = vadd.f32 %v2215, %v2281
      %v2312 = vadd.f32 %v2216, %v2294
      %v2313 = vadd.f32 %v2217, %v2307
      %2314 = vrot.lane.b32.xlu0 %v1539, 111
      %v2315 = vpop.permute.xlu0 %2314
      %2316 = vrot.lane.b32.xlu0 %v1541, 111
      %v2317 = vpop.permute.xlu0 %2316
      %2318 = vrot.lane.b32.xlu0 %v1553, 111
      %v2319 = vpop.permute.xlu0 %2318
      %2320 = vrot.lane.b32.xlu0 %v1555, 111
      %v2321 = vpop.permute.xlu0 %2320
      %2322 = vrot.lane.b32.xlu0 %v1567, 111
      %v2323 = vpop.permute.xlu0 %2322
      %2324 = vrot.lane.b32.xlu0 %v1569, 111
      %v2325 = vpop.permute.xlu0 %2324
      %2326 = vrot.lane.b32.xlu0 %v1581, 111
      %v2327 = vpop.permute.xlu0 %2326
      %2328 = vrot.lane.b32.xlu0 %v1583, 111
      %v2329 = vpop.permute.xlu0 %2328
      %v2330 = vsel %vm1231, %v2323, %v2327
      %v2331 = vsel %vm1231, %v2325, %v2329
      %v2332 = vsel %vm1231, %v2319, %v2323
      %v2333 = vsel %vm1231, %v2321, %v2325
      %v2334 = vsel %vm1231, %v2315, %v2319
      %v2335 = vsel %vm1231, %v2317, %v2321
      %v2336 = vsel %vm1231, %v2327, %v2315
      %v2337 = vsel %vm1231, %v2329, %v2317
      %v2338 = vmul.f32 %v2334, %v1236
      %v2339 = vmul.f32 %v2332, %v1237
      %v2340 = vmul.f32 %v2330, %v1238
      %v2341 = vmul.f32 %v2336, %v1239
      %v2342 = vmul.f32 %v2335, %v1236
      %v2343 = vmul.f32 %v2333, %v1237
      %v2344 = vmul.f32 %v2331, %v1238
      %v2345 = vmul.f32 %v2337, %v1239
      %v2346 = vld [vmem:[%s6 + $0x20] sm:$0xf]
      %v2347 = vpack.c.bf16 %v2342, %v2338
      %v2348 = vpack.c.bf16 %v2343, %v2339
      %v2349 = vpack.c.bf16 %v2344, %v2340
      %v2350 = vpack.c.bf16 %v2345, %v2341
      %v2352 = vsel %vm1627, %v2346, 0
      %2354 = vmatpush.bf16.msra.mxu0 0
      %2355 = vmatpush.bf16.msra.mxu0 0
      %2356 = vmatpush.bf16.msra.mxu0 0
      %2357 = vmatpush.bf16.msra.mxu0 0
      %2358 = vmatpush.bf16.msra.mxu0 0
      %2359 = vmatpush.bf16.msra.mxu0 0
      %2360 = vmatpush.bf16.msra.mxu0 0
      %2361 = vmatpush.bf16.msra.mxu0 %v2347
      %2362 = vmatmul.bf16.gmra.mxu0 %v2352
      %v2363 = vpop.f32.mrf.mxu0
      %v2364 = vadd.f32 0.0, %v2363
      %v2365 = vpop.f32.mrf.mxu0
      %2366 = vdwg.mxu0
      %2367 = vmatpush.bf16.msra.mxu0 0
      %2368 = vmatpush.bf16.msra.mxu0 0
      %2369 = vmatpush.bf16.msra.mxu0 0
      %2370 = vmatpush.bf16.msra.mxu0 0
      %2371 = vmatpush.bf16.msra.mxu0 0
      %2372 = vmatpush.bf16.msra.mxu0 0
      %2373 = vmatpush.bf16.msra.mxu0 0
      %2374 = vmatpush.bf16.msra.mxu0 %v2348
      %2375 = vmatmul.bf16.gmra.mxu0 %v2352
      %v2376 = vpop.f32.mrf.mxu0
      %v2377 = vadd.f32 0.0, %v2376
      %v2378 = vpop.f32.mrf.mxu0
      %2379 = vdwg.mxu0
      %2380 = vmatpush.bf16.msra.mxu0 0
      %2381 = vmatpush.bf16.msra.mxu0 0
      %2382 = vmatpush.bf16.msra.mxu0 0
      %2383 = vmatpush.bf16.msra.mxu0 0
      %2384 = vmatpush.bf16.msra.mxu0 0
      %2385 = vmatpush.bf16.msra.mxu0 0
      %2386 = vmatpush.bf16.msra.mxu0 0
      %2387 = vmatpush.bf16.msra.mxu0 %v2349
      %2388 = vmatmul.bf16.gmra.mxu0 %v2352
      %v2389 = vpop.f32.mrf.mxu0
      %v2390 = vadd.f32 0.0, %v2389
      %v2391 = vpop.f32.mrf.mxu0
      %2392 = vdwg.mxu0
      %2393 = vmatpush.bf16.msra.mxu0 0
      %2394 = vmatpush.bf16.msra.mxu0 0
      %2395 = vmatpush.bf16.msra.mxu0 0
      %2396 = vmatpush.bf16.msra.mxu0 0
      %2397 = vmatpush.bf16.msra.mxu0 0
      %2398 = vmatpush.bf16.msra.mxu0 0
      %2399 = vmatpush.bf16.msra.mxu0 0
      %2400 = vmatpush.bf16.msra.mxu0 %v2350
      %2401 = vmatmul.bf16.gmra.mxu0 %v2352
      %v2402 = vpop.f32.mrf.mxu0
      %v2403 = vadd.f32 0.0, %v2402
      %v2404 = vpop.f32.mrf.mxu0
      %2405 = vdwg.mxu0
      %v2406 = vadd.f32 %v2310, %v2364
      %v2407 = vadd.f32 %v2311, %v2377
      %v2408 = vadd.f32 %v2312, %v2390
      %v2409 = vadd.f32 %v2313, %v2403
      %v2410 = vld [vmem:[%s7] sm:$0xff]
      %2412 = vset.pattern.permute.xlu0 0
      %2413 = vperm.xlu0 %2412, %v2410
      %v2414 = vpop.permute.xlu0 %2413
      %v2416 = vadd.f32 %v2406, %v2414
      %v2417 = vadd.f32 %v2407, %v2414
      %v2418 = vadd.f32 %v2408, %v2414
      %v2419 = vadd.f32 %v2409, %v2414
      %v2420 = vmax.f32 %v2416, 0.0
      %v2421 = vmax.f32 %v2417, 0.0
      %v2422 = vmax.f32 %v2418, 0.0
      %v2423 = vmax.f32 %v2419, 0.0
      %v2424 = vld [vmem:[%s8 + $0x10] sm:$0xf]
      %v2425 = vpack.c.bf16 %v1330, %v1330
      %v2426 = vpack.c.bf16 %v1331, %v1331
      %v2427 = vpack.c.bf16 %v1332, %v1332
      %v2428 = vpack.c.bf16 %v1333, %v1333
      %2429 = vrot.lane.b32.xlu0 %v1330, 17
      %v2430 = vpop.permute.xlu0 %2429
      %2431 = vrot.lane.b32.xlu0 %v1331, 17
      %v2432 = vpop.permute.xlu0 %2431
      %2433 = vrot.lane.b32.xlu0 %v1332, 17
      %v2434 = vpop.permute.xlu0 %2433
      %2435 = vrot.lane.b32.xlu0 %v1333, 17
      %v2436 = vpop.permute.xlu0 %2435
      %v2437 = vsel %vm487, %v2434, %v2436
      %v2438 = vsel %vm487, %v2432, %v2434
      %v2439 = vsel %vm487, %v2430, %v2432
      %v2440 = vsel %vm487, %v2436, %v2430
      %v2441 = vmul.f32 %v2440, %v492
      %v2442 = vmul.f32 %v2439, %v493
      %v2443 = vmul.f32 %v2438, %v494
      %v2444 = vmul.f32 %v2437, %v495
      %v2445 = vld [vmem:[%s8] sm:$0xf]
      %v2446 = vpack.c.bf16 %v2441, %v2441
      %v2447 = vpack.c.bf16 %v2442, %v2442
      %v2448 = vpack.c.bf16 %v2443, %v2443
      %v2449 = vpack.c.bf16 %v2444, %v2444
      %v2451 = vsel %vm505, %v2445, 0
      %v2454 = vsel %vm509, %v2446, 0
      %v2457 = vsel %vm509, %v2447, 0
      %v2460 = vsel %vm509, %v2448, 0
      %v2463 = vsel %vm509, %v2449, 0
      %2465 = vmatpush.bf16.msra.mxu0 0
      %2466 = vmatpush.bf16.msra.mxu0 0
      %2467 = vmatpush.bf16.msra.mxu0 0
      %2468 = vmatpush.bf16.msra.mxu0 0
      %2469 = vmatpush.bf16.msra.mxu0 0
      %2470 = vmatpush.bf16.msra.mxu0 0
      %2471 = vmatpush.bf16.msra.mxu0 0
      %2472 = vmatpush.bf16.msra.mxu0 %v2454
      %2473 = vmatmul.bf16.gmra.mxu0 %v2451
      %v2474 = vpop.f32.mrf.mxu0
      %v2475 = vadd.f32 0.0, %v2474
      %v2476 = vpop.f32.mrf.mxu0
      %2477 = vdwg.mxu0
      %2478 = vmatpush.bf16.msra.mxu0 0
      %2479 = vmatpush.bf16.msra.mxu0 0
      %2480 = vmatpush.bf16.msra.mxu0 0
      %2481 = vmatpush.bf16.msra.mxu0 0
      %2482 = vmatpush.bf16.msra.mxu0 0
      %2483 = vmatpush.bf16.msra.mxu0 0
      %2484 = vmatpush.bf16.msra.mxu0 0
      %2485 = vmatpush.bf16.msra.mxu0 %v2457
      %2486 = vmatmul.bf16.gmra.mxu0 %v2451
      %v2487 = vpop.f32.mrf.mxu0
      %v2488 = vadd.f32 0.0, %v2487
      %v2489 = vpop.f32.mrf.mxu0
      %2490 = vdwg.mxu0
      %2491 = vmatpush.bf16.msra.mxu0 0
      %2492 = vmatpush.bf16.msra.mxu0 0
      %2493 = vmatpush.bf16.msra.mxu0 0
      %2494 = vmatpush.bf16.msra.mxu0 0
      %2495 = vmatpush.bf16.msra.mxu0 0
      %2496 = vmatpush.bf16.msra.mxu0 0
      %2497 = vmatpush.bf16.msra.mxu0 0
      %2498 = vmatpush.bf16.msra.mxu0 %v2460
      %2499 = vmatmul.bf16.gmra.mxu0 %v2451
      %v2500 = vpop.f32.mrf.mxu0
      %v2501 = vadd.f32 0.0, %v2500
      %v2502 = vpop.f32.mrf.mxu0
      %2503 = vdwg.mxu0
      %2504 = vmatpush.bf16.msra.mxu0 0
      %2505 = vmatpush.bf16.msra.mxu0 0
      %2506 = vmatpush.bf16.msra.mxu0 0
      %2507 = vmatpush.bf16.msra.mxu0 0
      %2508 = vmatpush.bf16.msra.mxu0 0
      %2509 = vmatpush.bf16.msra.mxu0 0
      %2510 = vmatpush.bf16.msra.mxu0 0
      %2511 = vmatpush.bf16.msra.mxu0 %v2463
      %2512 = vmatmul.bf16.gmra.mxu0 %v2451
      %v2513 = vpop.f32.mrf.mxu0
      %v2514 = vadd.f32 0.0, %v2513
      %v2515 = vpop.f32.mrf.mxu0
      %2516 = vdwg.mxu0
      %v2518 = vsel %vm505, %v2424, 0
      %v2521 = vsel %vm509, %v2425, 0
      %v2524 = vsel %vm509, %v2426, 0
      %v2527 = vsel %vm509, %v2427, 0
      %v2530 = vsel %vm509, %v2428, 0
      %2532 = vmatpush.bf16.msra.mxu0 0
      %2533 = vmatpush.bf16.msra.mxu0 0
      %2534 = vmatpush.bf16.msra.mxu0 0
      %2535 = vmatpush.bf16.msra.mxu0 0
      %2536 = vmatpush.bf16.msra.mxu0 0
      %2537 = vmatpush.bf16.msra.mxu0 0
      %2538 = vmatpush.bf16.msra.mxu0 0
      %2539 = vmatpush.bf16.msra.mxu0 %v2521
      %2540 = vmatmul.bf16.gmra.mxu0 %v2518
      %v2541 = vpop.f32.mrf.mxu0
      %v2542 = vadd.f32 %v2475, %v2541
      %v2543 = vpop.f32.mrf.mxu0
      %2544 = vdwg.mxu0
      %2545 = vmatpush.bf16.msra.mxu0 0
      %2546 = vmatpush.bf16.msra.mxu0 0
      %2547 = vmatpush.bf16.msra.mxu0 0
      %2548 = vmatpush.bf16.msra.mxu0 0
      %2549 = vmatpush.bf16.msra.mxu0 0
      %2550 = vmatpush.bf16.msra.mxu0 0
      %2551 = vmatpush.bf16.msra.mxu0 0
      %2552 = vmatpush.bf16.msra.mxu0 %v2524
      %2553 = vmatmul.bf16.gmra.mxu0 %v2518
      %v2554 = vpop.f32.mrf.mxu0
      %v2555 = vadd.f32 %v2488, %v2554
      %v2556 = vpop.f32.mrf.mxu0
      %2557 = vdwg.mxu0
      %2558 = vmatpush.bf16.msra.mxu0 0
      %2559 = vmatpush.bf16.msra.mxu0 0
      %2560 = vmatpush.bf16.msra.mxu0 0
      %2561 = vmatpush.bf16.msra.mxu0 0
      %2562 = vmatpush.bf16.msra.mxu0 0
      %2563 = vmatpush.bf16.msra.mxu0 0
      %2564 = vmatpush.bf16.msra.mxu0 0
      %2565 = vmatpush.bf16.msra.mxu0 %v2527
      %2566 = vmatmul.bf16.gmra.mxu0 %v2518
      %v2567 = vpop.f32.mrf.mxu0
      %v2568 = vadd.f32 %v2501, %v2567
      %v2569 = vpop.f32.mrf.mxu0
      %2570 = vdwg.mxu0
      %2571 = vmatpush.bf16.msra.mxu0 0
      %2572 = vmatpush.bf16.msra.mxu0 0
      %2573 = vmatpush.bf16.msra.mxu0 0
      %2574 = vmatpush.bf16.msra.mxu0 0
      %2575 = vmatpush.bf16.msra.mxu0 0
      %2576 = vmatpush.bf16.msra.mxu0 0
      %2577 = vmatpush.bf16.msra.mxu0 0
      %2578 = vmatpush.bf16.msra.mxu0 %v2530
      %2579 = vmatmul.bf16.gmra.mxu0 %v2518
      %v2580 = vpop.f32.mrf.mxu0
      %v2581 = vadd.f32 %v2514, %v2580
      %v2582 = vpop.f32.mrf.mxu0
      %2583 = vdwg.mxu0
      %2584 = vrot.lane.b32.xlu0 %v1330, 16
      %v2585 = vpop.permute.xlu0 %2584
      %2586 = vrot.lane.b32.xlu0 %v1331, 16
      %v2587 = vpop.permute.xlu0 %2586
      %2588 = vrot.lane.b32.xlu0 %v1332, 16
      %v2589 = vpop.permute.xlu0 %2588
      %2590 = vrot.lane.b32.xlu0 %v1333, 16
      %v2591 = vpop.permute.xlu0 %2590
      %v2592 = vsel %vm649, %v2589, %v2591
      %v2593 = vsel %vm649, %v2587, %v2589
      %v2594 = vsel %vm649, %v2585, %v2587
      %v2595 = vsel %vm649, %v2591, %v2585
      %v2596 = vmul.f32 %v2595, %v654
      %v2597 = vmul.f32 %v2594, %v655
      %v2598 = vmul.f32 %v2593, %v656
      %v2599 = vmul.f32 %v2592, %v657
      %v2600 = vld [vmem:[%s8 + $0x4] sm:$0xf]
      %v2601 = vpack.c.bf16 %v2596, %v2596
      %v2602 = vpack.c.bf16 %v2597, %v2597
      %v2603 = vpack.c.bf16 %v2598, %v2598
      %v2604 = vpack.c.bf16 %v2599, %v2599
      %v2606 = vsel %vm505, %v2600, 0
      %v2609 = vsel %vm509, %v2601, 0
      %v2612 = vsel %vm509, %v2602, 0
      %v2615 = vsel %vm509, %v2603, 0
      %v2618 = vsel %vm509, %v2604, 0
      %2620 = vmatpush.bf16.msra.mxu0 0
      %2621 = vmatpush.bf16.msra.mxu0 0
      %2622 = vmatpush.bf16.msra.mxu0 0
      %2623 = vmatpush.bf16.msra.mxu0 0
      %2624 = vmatpush.bf16.msra.mxu0 0
      %2625 = vmatpush.bf16.msra.mxu0 0
      %2626 = vmatpush.bf16.msra.mxu0 0
      %2627 = vmatpush.bf16.msra.mxu0 %v2609
      %2628 = vmatmul.bf16.gmra.mxu0 %v2606
      %v2629 = vpop.f32.mrf.mxu0
      %v2630 = vadd.f32 0.0, %v2629
      %v2631 = vpop.f32.mrf.mxu0
      %2632 = vdwg.mxu0
      %2633 = vmatpush.bf16.msra.mxu0 0
      %2634 = vmatpush.bf16.msra.mxu0 0
      %2635 = vmatpush.bf16.msra.mxu0 0
      %2636 = vmatpush.bf16.msra.mxu0 0
      %2637 = vmatpush.bf16.msra.mxu0 0
      %2638 = vmatpush.bf16.msra.mxu0 0
      %2639 = vmatpush.bf16.msra.mxu0 0
      %2640 = vmatpush.bf16.msra.mxu0 %v2612
      %2641 = vmatmul.bf16.gmra.mxu0 %v2606
      %v2642 = vpop.f32.mrf.mxu0
      %v2643 = vadd.f32 0.0, %v2642
      %v2644 = vpop.f32.mrf.mxu0
      %2645 = vdwg.mxu0
      %2646 = vmatpush.bf16.msra.mxu0 0
      %2647 = vmatpush.bf16.msra.mxu0 0
      %2648 = vmatpush.bf16.msra.mxu0 0
      %2649 = vmatpush.bf16.msra.mxu0 0
      %2650 = vmatpush.bf16.msra.mxu0 0
      %2651 = vmatpush.bf16.msra.mxu0 0
      %2652 = vmatpush.bf16.msra.mxu0 0
      %2653 = vmatpush.bf16.msra.mxu0 %v2615
      %2654 = vmatmul.bf16.gmra.mxu0 %v2606
      %v2655 = vpop.f32.mrf.mxu0
      %v2656 = vadd.f32 0.0, %v2655
      %v2657 = vpop.f32.mrf.mxu0
      %2658 = vdwg.mxu0
      %2659 = vmatpush.bf16.msra.mxu0 0
      %2660 = vmatpush.bf16.msra.mxu0 0
      %2661 = vmatpush.bf16.msra.mxu0 0
      %2662 = vmatpush.bf16.msra.mxu0 0
      %2663 = vmatpush.bf16.msra.mxu0 0
      %2664 = vmatpush.bf16.msra.mxu0 0
      %2665 = vmatpush.bf16.msra.mxu0 0
      %2666 = vmatpush.bf16.msra.mxu0 %v2618
      %2667 = vmatmul.bf16.gmra.mxu0 %v2606
      %v2668 = vpop.f32.mrf.mxu0
      %v2669 = vadd.f32 0.0, %v2668
      %v2670 = vpop.f32.mrf.mxu0
      %2671 = vdwg.mxu0
      %v2672 = vadd.f32 %v2542, %v2630
      %v2673 = vadd.f32 %v2555, %v2643
      %v2674 = vadd.f32 %v2568, %v2656
      %v2675 = vadd.f32 %v2581, %v2669
      %2676 = vrot.lane.b32.xlu0 %v1330, 15
      %v2677 = vpop.permute.xlu0 %2676
      %2678 = vrot.lane.b32.xlu0 %v1331, 15
      %v2679 = vpop.permute.xlu0 %2678
      %2680 = vrot.lane.b32.xlu0 %v1332, 15
      %v2681 = vpop.permute.xlu0 %2680
      %2682 = vrot.lane.b32.xlu0 %v1333, 15
      %v2683 = vpop.permute.xlu0 %2682
      %v2684 = vsel %vm746, %v2681, %v2683
      %v2685 = vsel %vm746, %v2679, %v2681
      %v2686 = vsel %vm746, %v2677, %v2679
      %v2687 = vsel %vm746, %v2683, %v2677
      %v2688 = vmul.f32 %v2687, %v751
      %v2689 = vmul.f32 %v2686, %v752
      %v2690 = vmul.f32 %v2685, %v753
      %v2691 = vmul.f32 %v2684, %v754
      %v2692 = vld [vmem:[%s8 + $0x8] sm:$0xf]
      %v2693 = vpack.c.bf16 %v2688, %v2688
      %v2694 = vpack.c.bf16 %v2689, %v2689
      %v2695 = vpack.c.bf16 %v2690, %v2690
      %v2696 = vpack.c.bf16 %v2691, %v2691
      %v2698 = vsel %vm505, %v2692, 0
      %v2701 = vsel %vm509, %v2693, 0
      %v2704 = vsel %vm509, %v2694, 0
      %v2707 = vsel %vm509, %v2695, 0
      %v2710 = vsel %vm509, %v2696, 0
      %2712 = vmatpush.bf16.msra.mxu0 0
      %2713 = vmatpush.bf16.msra.mxu0 0
      %2714 = vmatpush.bf16.msra.mxu0 0
      %2715 = vmatpush.bf16.msra.mxu0 0
      %2716 = vmatpush.bf16.msra.mxu0 0
      %2717 = vmatpush.bf16.msra.mxu0 0
      %2718 = vmatpush.bf16.msra.mxu0 0
      %2719 = vmatpush.bf16.msra.mxu0 %v2701
      %2720 = vmatmul.bf16.gmra.mxu0 %v2698
      %v2721 = vpop.f32.mrf.mxu0
      %v2722 = vadd.f32 0.0, %v2721
      %v2723 = vpop.f32.mrf.mxu0
      %2724 = vdwg.mxu0
      %2725 = vmatpush.bf16.msra.mxu0 0
      %2726 = vmatpush.bf16.msra.mxu0 0
      %2727 = vmatpush.bf16.msra.mxu0 0
      %2728 = vmatpush.bf16.msra.mxu0 0
      %2729 = vmatpush.bf16.msra.mxu0 0
      %2730 = vmatpush.bf16.msra.mxu0 0
      %2731 = vmatpush.bf16.msra.mxu0 0
      %2732 = vmatpush.bf16.msra.mxu0 %v2704
      %2733 = vmatmul.bf16.gmra.mxu0 %v2698
      %v2734 = vpop.f32.mrf.mxu0
      %v2735 = vadd.f32 0.0, %v2734
      %v2736 = vpop.f32.mrf.mxu0
      %2737 = vdwg.mxu0
      %2738 = vmatpush.bf16.msra.mxu0 0
      %2739 = vmatpush.bf16.msra.mxu0 0
      %2740 = vmatpush.bf16.msra.mxu0 0
      %2741 = vmatpush.bf16.msra.mxu0 0
      %2742 = vmatpush.bf16.msra.mxu0 0
      %2743 = vmatpush.bf16.msra.mxu0 0
      %2744 = vmatpush.bf16.msra.mxu0 0
      %2745 = vmatpush.bf16.msra.mxu0 %v2707
      %2746 = vmatmul.bf16.gmra.mxu0 %v2698
      %v2747 = vpop.f32.mrf.mxu0
      %v2748 = vadd.f32 0.0, %v2747
      %v2749 = vpop.f32.mrf.mxu0
      %2750 = vdwg.mxu0
      %2751 = vmatpush.bf16.msra.mxu0 0
      %2752 = vmatpush.bf16.msra.mxu0 0
      %2753 = vmatpush.bf16.msra.mxu0 0
      %2754 = vmatpush.bf16.msra.mxu0 0
      %2755 = vmatpush.bf16.msra.mxu0 0
      %2756 = vmatpush.bf16.msra.mxu0 0
      %2757 = vmatpush.bf16.msra.mxu0 0
      %2758 = vmatpush.bf16.msra.mxu0 %v2710
      %2759 = vmatmul.bf16.gmra.mxu0 %v2698
      %v2760 = vpop.f32.mrf.mxu0
      %v2761 = vadd.f32 0.0, %v2760
      %v2762 = vpop.f32.mrf.mxu0
      %2763 = vdwg.mxu0
      %v2764 = vadd.f32 %v2672, %v2722
      %v2765 = vadd.f32 %v2673, %v2735
      %v2766 = vadd.f32 %v2674, %v2748
      %v2767 = vadd.f32 %v2675, %v2761
      %2768 = vrot.lane.b32.xlu0 %v1330, 1
      %v2769 = vpop.permute.xlu0 %2768
      %2770 = vrot.lane.b32.xlu0 %v1331, 1
      %v2771 = vpop.permute.xlu0 %2770
      %2772 = vrot.lane.b32.xlu0 %v1332, 1
      %v2773 = vpop.permute.xlu0 %2772
      %2774 = vrot.lane.b32.xlu0 %v1333, 1
      %v2775 = vpop.permute.xlu0 %2774
      %v2776 = vsel %vm843, %v2773, %v2775
      %v2777 = vsel %vm843, %v2771, %v2773
      %v2778 = vsel %vm843, %v2769, %v2771
      %v2779 = vsel %vm843, %v2775, %v2769
      %v2780 = vmul.f32 %v2779, %v848
      %v2781 = vmul.f32 %v2778, %v849
      %v2782 = vmul.f32 %v2777, %v850
      %v2783 = vmul.f32 %v2776, %v851
      %v2784 = vld [vmem:[%s8 + $0xc] sm:$0xf]
      %v2785 = vpack.c.bf16 %v2780, %v2780
      %v2786 = vpack.c.bf16 %v2781, %v2781
      %v2787 = vpack.c.bf16 %v2782, %v2782
      %v2788 = vpack.c.bf16 %v2783, %v2783
      %v2790 = vsel %vm505, %v2784, 0
      %v2793 = vsel %vm509, %v2785, 0
      %v2796 = vsel %vm509, %v2786, 0
      %v2799 = vsel %vm509, %v2787, 0
      %v2802 = vsel %vm509, %v2788, 0
      %2804 = vmatpush.bf16.msra.mxu0 0
      %2805 = vmatpush.bf16.msra.mxu0 0
      %2806 = vmatpush.bf16.msra.mxu0 0
      %2807 = vmatpush.bf16.msra.mxu0 0
      %2808 = vmatpush.bf16.msra.mxu0 0
      %2809 = vmatpush.bf16.msra.mxu0 0
      %2810 = vmatpush.bf16.msra.mxu0 0
      %2811 = vmatpush.bf16.msra.mxu0 %v2793
      %2812 = vmatmul.bf16.gmra.mxu0 %v2790
      %v2813 = vpop.f32.mrf.mxu0
      %v2814 = vadd.f32 0.0, %v2813
      %v2815 = vpop.f32.mrf.mxu0
      %2816 = vdwg.mxu0
      %2817 = vmatpush.bf16.msra.mxu0 0
      %2818 = vmatpush.bf16.msra.mxu0 0
      %2819 = vmatpush.bf16.msra.mxu0 0
      %2820 = vmatpush.bf16.msra.mxu0 0
      %2821 = vmatpush.bf16.msra.mxu0 0
      %2822 = vmatpush.bf16.msra.mxu0 0
      %2823 = vmatpush.bf16.msra.mxu0 0
      %2824 = vmatpush.bf16.msra.mxu0 %v2796
      %2825 = vmatmul.bf16.gmra.mxu0 %v2790
      %v2826 = vpop.f32.mrf.mxu0
      %v2827 = vadd.f32 0.0, %v2826
      %v2828 = vpop.f32.mrf.mxu0
      %2829 = vdwg.mxu0
      %2830 = vmatpush.bf16.msra.mxu0 0
      %2831 = vmatpush.bf16.msra.mxu0 0
      %2832 = vmatpush.bf16.msra.mxu0 0
      %2833 = vmatpush.bf16.msra.mxu0 0
      %2834 = vmatpush.bf16.msra.mxu0 0
      %2835 = vmatpush.bf16.msra.mxu0 0
      %2836 = vmatpush.bf16.msra.mxu0 0
      %2837 = vmatpush.bf16.msra.mxu0 %v2799
      %2838 = vmatmul.bf16.gmra.mxu0 %v2790
      %v2839 = vpop.f32.mrf.mxu0
      %v2840 = vadd.f32 0.0, %v2839
      %v2841 = vpop.f32.mrf.mxu0
      %2842 = vdwg.mxu0
      %2843 = vmatpush.bf16.msra.mxu0 0
      %2844 = vmatpush.bf16.msra.mxu0 0
      %2845 = vmatpush.bf16.msra.mxu0 0
      %2846 = vmatpush.bf16.msra.mxu0 0
      %2847 = vmatpush.bf16.msra.mxu0 0
      %2848 = vmatpush.bf16.msra.mxu0 0
      %2849 = vmatpush.bf16.msra.mxu0 0
      %2850 = vmatpush.bf16.msra.mxu0 %v2802
      %2851 = vmatmul.bf16.gmra.mxu0 %v2790
      %v2852 = vpop.f32.mrf.mxu0
      %v2853 = vadd.f32 0.0, %v2852
      %v2854 = vpop.f32.mrf.mxu0
      %2855 = vdwg.mxu0
      %v2856 = vadd.f32 %v2764, %v2814
      %v2857 = vadd.f32 %v2765, %v2827
      %v2858 = vadd.f32 %v2766, %v2840
      %v2859 = vadd.f32 %v2767, %v2853
      %2860 = vrot.lane.b32.xlu0 %v1330, 127
      %v2861 = vpop.permute.xlu0 %2860
      %2862 = vrot.lane.b32.xlu0 %v1331, 127
      %v2863 = vpop.permute.xlu0 %2862
      %2864 = vrot.lane.b32.xlu0 %v1332, 127
      %v2865 = vpop.permute.xlu0 %2864
      %2866 = vrot.lane.b32.xlu0 %v1333, 127
      %v2867 = vpop.permute.xlu0 %2866
      %v2868 = vsel %vm940, %v2865, %v2867
      %v2869 = vsel %vm940, %v2863, %v2865
      %v2870 = vsel %vm940, %v2861, %v2863
      %v2871 = vsel %vm940, %v2867, %v2861
      %v2872 = vmul.f32 %v2870, %v945
      %v2873 = vmul.f32 %v2869, %v946
      %v2874 = vmul.f32 %v2868, %v947
      %v2875 = vmul.f32 %v2871, %v948
      %v2876 = vld [vmem:[%s8 + $0x14] sm:$0xf]
      %v2877 = vpack.c.bf16 %v2872, %v2872
      %v2878 = vpack.c.bf16 %v2873, %v2873
      %v2879 = vpack.c.bf16 %v2874, %v2874
      %v2880 = vpack.c.bf16 %v2875, %v2875
      %v2882 = vsel %vm505, %v2876, 0
      %v2885 = vsel %vm509, %v2877, 0
      %v2888 = vsel %vm509, %v2878, 0
      %v2891 = vsel %vm509, %v2879, 0
      %v2894 = vsel %vm509, %v2880, 0
      %2896 = vmatpush.bf16.msra.mxu0 0
      %2897 = vmatpush.bf16.msra.mxu0 0
      %2898 = vmatpush.bf16.msra.mxu0 0
      %2899 = vmatpush.bf16.msra.mxu0 0
      %2900 = vmatpush.bf16.msra.mxu0 0
      %2901 = vmatpush.bf16.msra.mxu0 0
      %2902 = vmatpush.bf16.msra.mxu0 0
      %2903 = vmatpush.bf16.msra.mxu0 %v2885
      %2904 = vmatmul.bf16.gmra.mxu0 %v2882
      %v2905 = vpop.f32.mrf.mxu0
      %v2906 = vadd.f32 0.0, %v2905
      %v2907 = vpop.f32.mrf.mxu0
      %2908 = vdwg.mxu0
      %2909 = vmatpush.bf16.msra.mxu0 0
      %2910 = vmatpush.bf16.msra.mxu0 0
      %2911 = vmatpush.bf16.msra.mxu0 0
      %2912 = vmatpush.bf16.msra.mxu0 0
      %2913 = vmatpush.bf16.msra.mxu0 0
      %2914 = vmatpush.bf16.msra.mxu0 0
      %2915 = vmatpush.bf16.msra.mxu0 0
      %2916 = vmatpush.bf16.msra.mxu0 %v2888
      %2917 = vmatmul.bf16.gmra.mxu0 %v2882
      %v2918 = vpop.f32.mrf.mxu0
      %v2919 = vadd.f32 0.0, %v2918
      %v2920 = vpop.f32.mrf.mxu0
      %2921 = vdwg.mxu0
      %2922 = vmatpush.bf16.msra.mxu0 0
      %2923 = vmatpush.bf16.msra.mxu0 0
      %2924 = vmatpush.bf16.msra.mxu0 0
      %2925 = vmatpush.bf16.msra.mxu0 0
      %2926 = vmatpush.bf16.msra.mxu0 0
      %2927 = vmatpush.bf16.msra.mxu0 0
      %2928 = vmatpush.bf16.msra.mxu0 0
      %2929 = vmatpush.bf16.msra.mxu0 %v2891
      %2930 = vmatmul.bf16.gmra.mxu0 %v2882
      %v2931 = vpop.f32.mrf.mxu0
      %v2932 = vadd.f32 0.0, %v2931
      %v2933 = vpop.f32.mrf.mxu0
      %2934 = vdwg.mxu0
      %2935 = vmatpush.bf16.msra.mxu0 0
      %2936 = vmatpush.bf16.msra.mxu0 0
      %2937 = vmatpush.bf16.msra.mxu0 0
      %2938 = vmatpush.bf16.msra.mxu0 0
      %2939 = vmatpush.bf16.msra.mxu0 0
      %2940 = vmatpush.bf16.msra.mxu0 0
      %2941 = vmatpush.bf16.msra.mxu0 0
      %2942 = vmatpush.bf16.msra.mxu0 %v2894
      %2943 = vmatmul.bf16.gmra.mxu0 %v2882
      %v2944 = vpop.f32.mrf.mxu0
      %v2945 = vadd.f32 0.0, %v2944
      %v2946 = vpop.f32.mrf.mxu0
      %2947 = vdwg.mxu0
      %v2948 = vadd.f32 %v2856, %v2906
      %v2949 = vadd.f32 %v2857, %v2919
      %v2950 = vadd.f32 %v2858, %v2932
      %v2951 = vadd.f32 %v2859, %v2945
      %2952 = vrot.lane.b32.xlu0 %v1330, 113
      %v2953 = vpop.permute.xlu0 %2952
      %2954 = vrot.lane.b32.xlu0 %v1331, 113
      %v2955 = vpop.permute.xlu0 %2954
      %2956 = vrot.lane.b32.xlu0 %v1332, 113
      %v2957 = vpop.permute.xlu0 %2956
      %2958 = vrot.lane.b32.xlu0 %v1333, 113
      %v2959 = vpop.permute.xlu0 %2958
      %v2960 = vsel %vm1037, %v2957, %v2959
      %v2961 = vsel %vm1037, %v2955, %v2957
      %v2962 = vsel %vm1037, %v2953, %v2955
      %v2963 = vsel %vm1037, %v2959, %v2953
      %v2964 = vmul.f32 %v2962, %v1042
      %v2965 = vmul.f32 %v2961, %v1043
      %v2966 = vmul.f32 %v2960, %v1044
      %v2967 = vmul.f32 %v2963, %v1045
      %v2968 = vld [vmem:[%s8 + $0x18] sm:$0xf]
      %v2969 = vpack.c.bf16 %v2964, %v2964
      %v2970 = vpack.c.bf16 %v2965, %v2965
      %v2971 = vpack.c.bf16 %v2966, %v2966
      %v2972 = vpack.c.bf16 %v2967, %v2967
      %v2974 = vsel %vm505, %v2968, 0
      %v2977 = vsel %vm509, %v2969, 0
      %v2980 = vsel %vm509, %v2970, 0
      %v2983 = vsel %vm509, %v2971, 0
      %v2986 = vsel %vm509, %v2972, 0
      %2988 = vmatpush.bf16.msra.mxu0 0
      %2989 = vmatpush.bf16.msra.mxu0 0
      %2990 = vmatpush.bf16.msra.mxu0 0
      %2991 = vmatpush.bf16.msra.mxu0 0
      %2992 = vmatpush.bf16.msra.mxu0 0
      %2993 = vmatpush.bf16.msra.mxu0 0
      %2994 = vmatpush.bf16.msra.mxu0 0
      %2995 = vmatpush.bf16.msra.mxu0 %v2977
      %2996 = vmatmul.bf16.gmra.mxu0 %v2974
      %v2997 = vpop.f32.mrf.mxu0
      %v2998 = vadd.f32 0.0, %v2997
      %v2999 = vpop.f32.mrf.mxu0
      %3000 = vdwg.mxu0
      %3001 = vmatpush.bf16.msra.mxu0 0
      %3002 = vmatpush.bf16.msra.mxu0 0
      %3003 = vmatpush.bf16.msra.mxu0 0
      %3004 = vmatpush.bf16.msra.mxu0 0
      %3005 = vmatpush.bf16.msra.mxu0 0
      %3006 = vmatpush.bf16.msra.mxu0 0
      %3007 = vmatpush.bf16.msra.mxu0 0
      %3008 = vmatpush.bf16.msra.mxu0 %v2980
      %3009 = vmatmul.bf16.gmra.mxu0 %v2974
      %v3010 = vpop.f32.mrf.mxu0
      %v3011 = vadd.f32 0.0, %v3010
      %v3012 = vpop.f32.mrf.mxu0
      %3013 = vdwg.mxu0
      %3014 = vmatpush.bf16.msra.mxu0 0
      %3015 = vmatpush.bf16.msra.mxu0 0
      %3016 = vmatpush.bf16.msra.mxu0 0
      %3017 = vmatpush.bf16.msra.mxu0 0
      %3018 = vmatpush.bf16.msra.mxu0 0
      %3019 = vmatpush.bf16.msra.mxu0 0
      %3020 = vmatpush.bf16.msra.mxu0 0
      %3021 = vmatpush.bf16.msra.mxu0 %v2983
      %3022 = vmatmul.bf16.gmra.mxu0 %v2974
      %v3023 = vpop.f32.mrf.mxu0
      %v3024 = vadd.f32 0.0, %v3023
      %v3025 = vpop.f32.mrf.mxu0
      %3026 = vdwg.mxu0
      %3027 = vmatpush.bf16.msra.mxu0 0
      %3028 = vmatpush.bf16.msra.mxu0 0
      %3029 = vmatpush.bf16.msra.mxu0 0
      %3030 = vmatpush.bf16.msra.mxu0 0
      %3031 = vmatpush.bf16.msra.mxu0 0
      %3032 = vmatpush.bf16.msra.mxu0 0
      %3033 = vmatpush.bf16.msra.mxu0 0
      %3034 = vmatpush.bf16.msra.mxu0 %v2986
      %3035 = vmatmul.bf16.gmra.mxu0 %v2974
      %v3036 = vpop.f32.mrf.mxu0
      %v3037 = vadd.f32 0.0, %v3036
      %v3038 = vpop.f32.mrf.mxu0
      %3039 = vdwg.mxu0
      %v3040 = vadd.f32 %v2948, %v2998
      %v3041 = vadd.f32 %v2949, %v3011
      %v3042 = vadd.f32 %v2950, %v3024
      %v3043 = vadd.f32 %v2951, %v3037
      %3044 = vrot.lane.b32.xlu0 %v1330, 112
      %v3045 = vpop.permute.xlu0 %3044
      %3046 = vrot.lane.b32.xlu0 %v1331, 112
      %v3047 = vpop.permute.xlu0 %3046
      %3048 = vrot.lane.b32.xlu0 %v1332, 112
      %v3049 = vpop.permute.xlu0 %3048
      %3050 = vrot.lane.b32.xlu0 %v1333, 112
      %v3051 = vpop.permute.xlu0 %3050
      %v3052 = vsel %vm1134, %v3049, %v3051
      %v3053 = vsel %vm1134, %v3047, %v3049
      %v3054 = vsel %vm1134, %v3045, %v3047
      %v3055 = vsel %vm1134, %v3051, %v3045
      %v3056 = vmul.f32 %v3054, %v1139
      %v3057 = vmul.f32 %v3053, %v1140
      %v3058 = vmul.f32 %v3052, %v1141
      %v3059 = vmul.f32 %v3055, %v1142
      %v3060 = vld [vmem:[%s8 + $0x1c] sm:$0xf]
      %v3061 = vpack.c.bf16 %v3056, %v3056
      %v3062 = vpack.c.bf16 %v3057, %v3057
      %v3063 = vpack.c.bf16 %v3058, %v3058
      %v3064 = vpack.c.bf16 %v3059, %v3059
      %v3066 = vsel %vm505, %v3060, 0
      %v3069 = vsel %vm509, %v3061, 0
      %v3072 = vsel %vm509, %v3062, 0
      %v3075 = vsel %vm509, %v3063, 0
      %v3078 = vsel %vm509, %v3064, 0
      %3080 = vmatpush.bf16.msra.mxu0 0
      %3081 = vmatpush.bf16.msra.mxu0 0
      %3082 = vmatpush.bf16.msra.mxu0 0
      %3083 = vmatpush.bf16.msra.mxu0 0
      %3084 = vmatpush.bf16.msra.mxu0 0
      %3085 = vmatpush.bf16.msra.mxu0 0
      %3086 = vmatpush.bf16.msra.mxu0 0
      %3087 = vmatpush.bf16.msra.mxu0 %v3069
      %3088 = vmatmul.bf16.gmra.mxu0 %v3066
      %v3089 = vpop.f32.mrf.mxu0
      %v3090 = vadd.f32 0.0, %v3089
      %v3091 = vpop.f32.mrf.mxu0
      %3092 = vdwg.mxu0
      %3093 = vmatpush.bf16.msra.mxu0 0
      %3094 = vmatpush.bf16.msra.mxu0 0
      %3095 = vmatpush.bf16.msra.mxu0 0
      %3096 = vmatpush.bf16.msra.mxu0 0
      %3097 = vmatpush.bf16.msra.mxu0 0
      %3098 = vmatpush.bf16.msra.mxu0 0
      %3099 = vmatpush.bf16.msra.mxu0 0
      %3100 = vmatpush.bf16.msra.mxu0 %v3072
      %3101 = vmatmul.bf16.gmra.mxu0 %v3066
      %v3102 = vpop.f32.mrf.mxu0
      %v3103 = vadd.f32 0.0, %v3102
      %v3104 = vpop.f32.mrf.mxu0
      %3105 = vdwg.mxu0
      %3106 = vmatpush.bf16.msra.mxu0 0
      %3107 = vmatpush.bf16.msra.mxu0 0
      %3108 = vmatpush.bf16.msra.mxu0 0
      %3109 = vmatpush.bf16.msra.mxu0 0
      %3110 = vmatpush.bf16.msra.mxu0 0
      %3111 = vmatpush.bf16.msra.mxu0 0
      %3112 = vmatpush.bf16.msra.mxu0 0
      %3113 = vmatpush.bf16.msra.mxu0 %v3075
      %3114 = vmatmul.bf16.gmra.mxu0 %v3066
      %v3115 = vpop.f32.mrf.mxu0
      %v3116 = vadd.f32 0.0, %v3115
      %v3117 = vpop.f32.mrf.mxu0
      %3118 = vdwg.mxu0
      %3119 = vmatpush.bf16.msra.mxu0 0
      %3120 = vmatpush.bf16.msra.mxu0 0
      %3121 = vmatpush.bf16.msra.mxu0 0
      %3122 = vmatpush.bf16.msra.mxu0 0
      %3123 = vmatpush.bf16.msra.mxu0 0
      %3124 = vmatpush.bf16.msra.mxu0 0
      %3125 = vmatpush.bf16.msra.mxu0 0
      %3126 = vmatpush.bf16.msra.mxu0 %v3078
      %3127 = vmatmul.bf16.gmra.mxu0 %v3066
      %v3128 = vpop.f32.mrf.mxu0
      %v3129 = vadd.f32 0.0, %v3128
      %v3130 = vpop.f32.mrf.mxu0
      %3131 = vdwg.mxu0
      %v3132 = vadd.f32 %v3040, %v3090
      %v3133 = vadd.f32 %v3041, %v3103
      %v3134 = vadd.f32 %v3042, %v3116
      %v3135 = vadd.f32 %v3043, %v3129
      %3136 = vrot.lane.b32.xlu0 %v1330, 111
      %v3137 = vpop.permute.xlu0 %3136
      %3138 = vrot.lane.b32.xlu0 %v1331, 111
      %v3139 = vpop.permute.xlu0 %3138
      %3140 = vrot.lane.b32.xlu0 %v1332, 111
      %v3141 = vpop.permute.xlu0 %3140
      %3142 = vrot.lane.b32.xlu0 %v1333, 111
      %v3143 = vpop.permute.xlu0 %3142
      %v3144 = vsel %vm1231, %v3141, %v3143
      %v3145 = vsel %vm1231, %v3139, %v3141
      %v3146 = vsel %vm1231, %v3137, %v3139
      %v3147 = vsel %vm1231, %v3143, %v3137
      %v3148 = vmul.f32 %v3146, %v1236
      %v3149 = vmul.f32 %v3145, %v1237
      %v3150 = vmul.f32 %v3144, %v1238
      %v3151 = vmul.f32 %v3147, %v1239
      %v3152 = vld [vmem:[%s8 + $0x20] sm:$0xf]
      %v3153 = vpack.c.bf16 %v3148, %v3148
      %v3154 = vpack.c.bf16 %v3149, %v3149
      %v3155 = vpack.c.bf16 %v3150, %v3150
      %v3156 = vpack.c.bf16 %v3151, %v3151
      %v3158 = vsel %vm505, %v3152, 0
      %v3161 = vsel %vm509, %v3153, 0
      %v3164 = vsel %vm509, %v3154, 0
      %v3167 = vsel %vm509, %v3155, 0
      %v3170 = vsel %vm509, %v3156, 0
      %3172 = vmatpush.bf16.msra.mxu0 0
      %3173 = vmatpush.bf16.msra.mxu0 0
      %3174 = vmatpush.bf16.msra.mxu0 0
      %3175 = vmatpush.bf16.msra.mxu0 0
      %3176 = vmatpush.bf16.msra.mxu0 0
      %3177 = vmatpush.bf16.msra.mxu0 0
      %3178 = vmatpush.bf16.msra.mxu0 0
      %3179 = vmatpush.bf16.msra.mxu0 %v3161
      %3180 = vmatmul.bf16.gmra.mxu0 %v3158
      %v3181 = vpop.f32.mrf.mxu0
      %v3182 = vadd.f32 0.0, %v3181
      %v3183 = vpop.f32.mrf.mxu0
      %3184 = vdwg.mxu0
      %3185 = vmatpush.bf16.msra.mxu0 0
      %3186 = vmatpush.bf16.msra.mxu0 0
      %3187 = vmatpush.bf16.msra.mxu0 0
      %3188 = vmatpush.bf16.msra.mxu0 0
      %3189 = vmatpush.bf16.msra.mxu0 0
      %3190 = vmatpush.bf16.msra.mxu0 0
      %3191 = vmatpush.bf16.msra.mxu0 0
      %3192 = vmatpush.bf16.msra.mxu0 %v3164
      %3193 = vmatmul.bf16.gmra.mxu0 %v3158
      %v3194 = vpop.f32.mrf.mxu0
      %v3195 = vadd.f32 0.0, %v3194
      %v3196 = vpop.f32.mrf.mxu0
      %3197 = vdwg.mxu0
      %3198 = vmatpush.bf16.msra.mxu0 0
      %3199 = vmatpush.bf16.msra.mxu0 0
      %3200 = vmatpush.bf16.msra.mxu0 0
      %3201 = vmatpush.bf16.msra.mxu0 0
      %3202 = vmatpush.bf16.msra.mxu0 0
      %3203 = vmatpush.bf16.msra.mxu0 0
      %3204 = vmatpush.bf16.msra.mxu0 0
      %3205 = vmatpush.bf16.msra.mxu0 %v3167
      %3206 = vmatmul.bf16.gmra.mxu0 %v3158
      %v3207 = vpop.f32.mrf.mxu0
      %v3208 = vadd.f32 0.0, %v3207
      %v3209 = vpop.f32.mrf.mxu0
      %3210 = vdwg.mxu0
      %3211 = vmatpush.bf16.msra.mxu0 0
      %3212 = vmatpush.bf16.msra.mxu0 0
      %3213 = vmatpush.bf16.msra.mxu0 0
      %3214 = vmatpush.bf16.msra.mxu0 0
      %3215 = vmatpush.bf16.msra.mxu0 0
      %3216 = vmatpush.bf16.msra.mxu0 0
      %3217 = vmatpush.bf16.msra.mxu0 0
      %3218 = vmatpush.bf16.msra.mxu0 %v3170
      %3219 = vmatmul.bf16.gmra.mxu0 %v3158
      %v3220 = vpop.f32.mrf.mxu0
      %v3221 = vadd.f32 0.0, %v3220
      %v3222 = vpop.f32.mrf.mxu0
      %3223 = vdwg.mxu0
      %v3224 = vadd.f32 %v3132, %v3182
      %v3225 = vadd.f32 %v3133, %v3195
      %v3226 = vadd.f32 %v3134, %v3208
      %v3227 = vadd.f32 %v3135, %v3221
      %v3228 = vld [vmem:[%s9 + $0x10] sm:$0xf]
      %v3229 = vpack.c.bf16 %v2420, %v2420
      %v3230 = vpack.c.bf16 %v2421, %v2421
      %v3231 = vpack.c.bf16 %v2422, %v2422
      %v3232 = vpack.c.bf16 %v2423, %v2423
      %3233 = vrot.lane.b32.xlu0 %v2420, 17
      %v3234 = vpop.permute.xlu0 %3233
      %3235 = vrot.lane.b32.xlu0 %v2421, 17
      %v3236 = vpop.permute.xlu0 %3235
      %3237 = vrot.lane.b32.xlu0 %v2422, 17
      %v3238 = vpop.permute.xlu0 %3237
      %3239 = vrot.lane.b32.xlu0 %v2423, 17
      %v3240 = vpop.permute.xlu0 %3239
      %v3241 = vsel %vm487, %v3238, %v3240
      %v3242 = vsel %vm487, %v3236, %v3238
      %v3243 = vsel %vm487, %v3234, %v3236
      %v3244 = vsel %vm487, %v3240, %v3234
      %v3245 = vmul.f32 %v3244, %v492
      %v3246 = vmul.f32 %v3243, %v493
      %v3247 = vmul.f32 %v3242, %v494
      %v3248 = vmul.f32 %v3241, %v495
      %v3249 = vld [vmem:[%s9] sm:$0xf]
      %v3250 = vpack.c.bf16 %v3245, %v3245
      %v3251 = vpack.c.bf16 %v3246, %v3246
      %v3252 = vpack.c.bf16 %v3247, %v3247
      %v3253 = vpack.c.bf16 %v3248, %v3248
      %v3255 = vsel %vm505, %v3249, 0
      %v3258 = vsel %vm509, %v3250, 0
      %v3261 = vsel %vm509, %v3251, 0
      %v3264 = vsel %vm509, %v3252, 0
      %v3267 = vsel %vm509, %v3253, 0
      %3269 = vmatpush.bf16.msra.mxu0 0
      %3270 = vmatpush.bf16.msra.mxu0 0
      %3271 = vmatpush.bf16.msra.mxu0 0
      %3272 = vmatpush.bf16.msra.mxu0 0
      %3273 = vmatpush.bf16.msra.mxu0 0
      %3274 = vmatpush.bf16.msra.mxu0 0
      %3275 = vmatpush.bf16.msra.mxu0 0
      %3276 = vmatpush.bf16.msra.mxu0 %v3258
      %3277 = vmatmul.bf16.gmra.mxu0 %v3255
      %v3278 = vpop.f32.mrf.mxu0
      %v3279 = vadd.f32 0.0, %v3278
      %v3280 = vpop.f32.mrf.mxu0
      %3281 = vdwg.mxu0
      %3282 = vmatpush.bf16.msra.mxu0 0
      %3283 = vmatpush.bf16.msra.mxu0 0
      %3284 = vmatpush.bf16.msra.mxu0 0
      %3285 = vmatpush.bf16.msra.mxu0 0
      %3286 = vmatpush.bf16.msra.mxu0 0
      %3287 = vmatpush.bf16.msra.mxu0 0
      %3288 = vmatpush.bf16.msra.mxu0 0
      %3289 = vmatpush.bf16.msra.mxu0 %v3261
      %3290 = vmatmul.bf16.gmra.mxu0 %v3255
      %v3291 = vpop.f32.mrf.mxu0
      %v3292 = vadd.f32 0.0, %v3291
      %v3293 = vpop.f32.mrf.mxu0
      %3294 = vdwg.mxu0
      %3295 = vmatpush.bf16.msra.mxu0 0
      %3296 = vmatpush.bf16.msra.mxu0 0
      %3297 = vmatpush.bf16.msra.mxu0 0
      %3298 = vmatpush.bf16.msra.mxu0 0
      %3299 = vmatpush.bf16.msra.mxu0 0
      %3300 = vmatpush.bf16.msra.mxu0 0
      %3301 = vmatpush.bf16.msra.mxu0 0
      %3302 = vmatpush.bf16.msra.mxu0 %v3264
      %3303 = vmatmul.bf16.gmra.mxu0 %v3255
      %v3304 = vpop.f32.mrf.mxu0
      %v3305 = vadd.f32 0.0, %v3304
      %v3306 = vpop.f32.mrf.mxu0
      %3307 = vdwg.mxu0
      %3308 = vmatpush.bf16.msra.mxu0 0
      %3309 = vmatpush.bf16.msra.mxu0 0
      %3310 = vmatpush.bf16.msra.mxu0 0
      %3311 = vmatpush.bf16.msra.mxu0 0
      %3312 = vmatpush.bf16.msra.mxu0 0
      %3313 = vmatpush.bf16.msra.mxu0 0
      %3314 = vmatpush.bf16.msra.mxu0 0
      %3315 = vmatpush.bf16.msra.mxu0 %v3267
      %3316 = vmatmul.bf16.gmra.mxu0 %v3255
      %v3317 = vpop.f32.mrf.mxu0
      %v3318 = vadd.f32 0.0, %v3317
      %v3319 = vpop.f32.mrf.mxu0
      %3320 = vdwg.mxu0
      %v3322 = vsel %vm505, %v3228, 0
      %v3325 = vsel %vm509, %v3229, 0
      %v3328 = vsel %vm509, %v3230, 0
      %v3331 = vsel %vm509, %v3231, 0
      %v3334 = vsel %vm509, %v3232, 0
      %3336 = vmatpush.bf16.msra.mxu0 0
      %3337 = vmatpush.bf16.msra.mxu0 0
      %3338 = vmatpush.bf16.msra.mxu0 0
      %3339 = vmatpush.bf16.msra.mxu0 0
      %3340 = vmatpush.bf16.msra.mxu0 0
      %3341 = vmatpush.bf16.msra.mxu0 0
      %3342 = vmatpush.bf16.msra.mxu0 0
      %3343 = vmatpush.bf16.msra.mxu0 %v3325
      %3344 = vmatmul.bf16.gmra.mxu0 %v3322
      %v3345 = vpop.f32.mrf.mxu0
      %v3346 = vadd.f32 %v3279, %v3345
      %v3347 = vpop.f32.mrf.mxu0
      %3348 = vdwg.mxu0
      %3349 = vmatpush.bf16.msra.mxu0 0
      %3350 = vmatpush.bf16.msra.mxu0 0
      %3351 = vmatpush.bf16.msra.mxu0 0
      %3352 = vmatpush.bf16.msra.mxu0 0
      %3353 = vmatpush.bf16.msra.mxu0 0
      %3354 = vmatpush.bf16.msra.mxu0 0
      %3355 = vmatpush.bf16.msra.mxu0 0
      %3356 = vmatpush.bf16.msra.mxu0 %v3328
      %3357 = vmatmul.bf16.gmra.mxu0 %v3322
      %v3358 = vpop.f32.mrf.mxu0
      %v3359 = vadd.f32 %v3292, %v3358
      %v3360 = vpop.f32.mrf.mxu0
      %3361 = vdwg.mxu0
      %3362 = vmatpush.bf16.msra.mxu0 0
      %3363 = vmatpush.bf16.msra.mxu0 0
      %3364 = vmatpush.bf16.msra.mxu0 0
      %3365 = vmatpush.bf16.msra.mxu0 0
      %3366 = vmatpush.bf16.msra.mxu0 0
      %3367 = vmatpush.bf16.msra.mxu0 0
      %3368 = vmatpush.bf16.msra.mxu0 0
      %3369 = vmatpush.bf16.msra.mxu0 %v3331
      %3370 = vmatmul.bf16.gmra.mxu0 %v3322
      %v3371 = vpop.f32.mrf.mxu0
      %v3372 = vadd.f32 %v3305, %v3371
      %v3373 = vpop.f32.mrf.mxu0
      %3374 = vdwg.mxu0
      %3375 = vmatpush.bf16.msra.mxu0 0
      %3376 = vmatpush.bf16.msra.mxu0 0
      %3377 = vmatpush.bf16.msra.mxu0 0
      %3378 = vmatpush.bf16.msra.mxu0 0
      %3379 = vmatpush.bf16.msra.mxu0 0
      %3380 = vmatpush.bf16.msra.mxu0 0
      %3381 = vmatpush.bf16.msra.mxu0 0
      %3382 = vmatpush.bf16.msra.mxu0 %v3334
      %3383 = vmatmul.bf16.gmra.mxu0 %v3322
      %v3384 = vpop.f32.mrf.mxu0
      %v3385 = vadd.f32 %v3318, %v3384
      %v3386 = vpop.f32.mrf.mxu0
      %3387 = vdwg.mxu0
      %3388 = vrot.lane.b32.xlu0 %v2420, 16
      %v3389 = vpop.permute.xlu0 %3388
      %3390 = vrot.lane.b32.xlu0 %v2421, 16
      %v3391 = vpop.permute.xlu0 %3390
      %3392 = vrot.lane.b32.xlu0 %v2422, 16
      %v3393 = vpop.permute.xlu0 %3392
      %3394 = vrot.lane.b32.xlu0 %v2423, 16
      %v3395 = vpop.permute.xlu0 %3394
      %v3396 = vsel %vm649, %v3393, %v3395
      %v3397 = vsel %vm649, %v3391, %v3393
      %v3398 = vsel %vm649, %v3389, %v3391
      %v3399 = vsel %vm649, %v3395, %v3389
      %v3400 = vmul.f32 %v3399, %v654
      %v3401 = vmul.f32 %v3398, %v655
      %v3402 = vmul.f32 %v3397, %v656
      %v3403 = vmul.f32 %v3396, %v657
      %v3404 = vld [vmem:[%s9 + $0x4] sm:$0xf]
      %v3405 = vpack.c.bf16 %v3400, %v3400
      %v3406 = vpack.c.bf16 %v3401, %v3401
      %v3407 = vpack.c.bf16 %v3402, %v3402
      %v3408 = vpack.c.bf16 %v3403, %v3403
      %v3410 = vsel %vm505, %v3404, 0
      %v3413 = vsel %vm509, %v3405, 0
      %v3416 = vsel %vm509, %v3406, 0
      %v3419 = vsel %vm509, %v3407, 0
      %v3422 = vsel %vm509, %v3408, 0
      %3424 = vmatpush.bf16.msra.mxu0 0
      %3425 = vmatpush.bf16.msra.mxu0 0
      %3426 = vmatpush.bf16.msra.mxu0 0
      %3427 = vmatpush.bf16.msra.mxu0 0
      %3428 = vmatpush.bf16.msra.mxu0 0
      %3429 = vmatpush.bf16.msra.mxu0 0
      %3430 = vmatpush.bf16.msra.mxu0 0
      %3431 = vmatpush.bf16.msra.mxu0 %v3413
      %3432 = vmatmul.bf16.gmra.mxu0 %v3410
      %v3433 = vpop.f32.mrf.mxu0
      %v3434 = vadd.f32 0.0, %v3433
      %v3435 = vpop.f32.mrf.mxu0
      %3436 = vdwg.mxu0
      %3437 = vmatpush.bf16.msra.mxu0 0
      %3438 = vmatpush.bf16.msra.mxu0 0
      %3439 = vmatpush.bf16.msra.mxu0 0
      %3440 = vmatpush.bf16.msra.mxu0 0
      %3441 = vmatpush.bf16.msra.mxu0 0
      %3442 = vmatpush.bf16.msra.mxu0 0
      %3443 = vmatpush.bf16.msra.mxu0 0
      %3444 = vmatpush.bf16.msra.mxu0 %v3416
      %3445 = vmatmul.bf16.gmra.mxu0 %v3410
      %v3446 = vpop.f32.mrf.mxu0
      %v3447 = vadd.f32 0.0, %v3446
      %v3448 = vpop.f32.mrf.mxu0
      %3449 = vdwg.mxu0
      %3450 = vmatpush.bf16.msra.mxu0 0
      %3451 = vmatpush.bf16.msra.mxu0 0
      %3452 = vmatpush.bf16.msra.mxu0 0
      %3453 = vmatpush.bf16.msra.mxu0 0
      %3454 = vmatpush.bf16.msra.mxu0 0
      %3455 = vmatpush.bf16.msra.mxu0 0
      %3456 = vmatpush.bf16.msra.mxu0 0
      %3457 = vmatpush.bf16.msra.mxu0 %v3419
      %3458 = vmatmul.bf16.gmra.mxu0 %v3410
      %v3459 = vpop.f32.mrf.mxu0
      %v3460 = vadd.f32 0.0, %v3459
      %v3461 = vpop.f32.mrf.mxu0
      %3462 = vdwg.mxu0
      %3463 = vmatpush.bf16.msra.mxu0 0
      %3464 = vmatpush.bf16.msra.mxu0 0
      %3465 = vmatpush.bf16.msra.mxu0 0
      %3466 = vmatpush.bf16.msra.mxu0 0
      %3467 = vmatpush.bf16.msra.mxu0 0
      %3468 = vmatpush.bf16.msra.mxu0 0
      %3469 = vmatpush.bf16.msra.mxu0 0
      %3470 = vmatpush.bf16.msra.mxu0 %v3422
      %3471 = vmatmul.bf16.gmra.mxu0 %v3410
      %v3472 = vpop.f32.mrf.mxu0
      %v3473 = vadd.f32 0.0, %v3472
      %v3474 = vpop.f32.mrf.mxu0
      %3475 = vdwg.mxu0
      %v3476 = vadd.f32 %v3346, %v3434
      %v3477 = vadd.f32 %v3359, %v3447
      %v3478 = vadd.f32 %v3372, %v3460
      %v3479 = vadd.f32 %v3385, %v3473
      %3480 = vrot.lane.b32.xlu0 %v2420, 15
      %v3481 = vpop.permute.xlu0 %3480
      %3482 = vrot.lane.b32.xlu0 %v2421, 15
      %v3483 = vpop.permute.xlu0 %3482
      %3484 = vrot.lane.b32.xlu0 %v2422, 15
      %v3485 = vpop.permute.xlu0 %3484
      %3486 = vrot.lane.b32.xlu0 %v2423, 15
      %v3487 = vpop.permute.xlu0 %3486
      %v3488 = vsel %vm746, %v3485, %v3487
      %v3489 = vsel %vm746, %v3483, %v3485
      %v3490 = vsel %vm746, %v3481, %v3483
      %v3491 = vsel %vm746, %v3487, %v3481
      %v3492 = vmul.f32 %v3491, %v751
      %v3493 = vmul.f32 %v3490, %v752
      %v3494 = vmul.f32 %v3489, %v753
      %v3495 = vmul.f32 %v3488, %v754
      %v3496 = vld [vmem:[%s9 + $0x8] sm:$0xf]
      %v3497 = vpack.c.bf16 %v3492, %v3492
      %v3498 = vpack.c.bf16 %v3493, %v3493
      %v3499 = vpack.c.bf16 %v3494, %v3494
      %v3500 = vpack.c.bf16 %v3495, %v3495
      %v3502 = vsel %vm505, %v3496, 0
      %v3505 = vsel %vm509, %v3497, 0
      %v3508 = vsel %vm509, %v3498, 0
      %v3511 = vsel %vm509, %v3499, 0
      %v3514 = vsel %vm509, %v3500, 0
      %3516 = vmatpush.bf16.msra.mxu0 0
      %3517 = vmatpush.bf16.msra.mxu0 0
      %3518 = vmatpush.bf16.msra.mxu0 0
      %3519 = vmatpush.bf16.msra.mxu0 0
      %3520 = vmatpush.bf16.msra.mxu0 0
      %3521 = vmatpush.bf16.msra.mxu0 0
      %3522 = vmatpush.bf16.msra.mxu0 0
      %3523 = vmatpush.bf16.msra.mxu0 %v3505
      %3524 = vmatmul.bf16.gmra.mxu0 %v3502
      %v3525 = vpop.f32.mrf.mxu0
      %v3526 = vadd.f32 0.0, %v3525
      %v3527 = vpop.f32.mrf.mxu0
      %3528 = vdwg.mxu0
      %3529 = vmatpush.bf16.msra.mxu0 0
      %3530 = vmatpush.bf16.msra.mxu0 0
      %3531 = vmatpush.bf16.msra.mxu0 0
      %3532 = vmatpush.bf16.msra.mxu0 0
      %3533 = vmatpush.bf16.msra.mxu0 0
      %3534 = vmatpush.bf16.msra.mxu0 0
      %3535 = vmatpush.bf16.msra.mxu0 0
      %3536 = vmatpush.bf16.msra.mxu0 %v3508
      %3537 = vmatmul.bf16.gmra.mxu0 %v3502
      %v3538 = vpop.f32.mrf.mxu0
      %v3539 = vadd.f32 0.0, %v3538
      %v3540 = vpop.f32.mrf.mxu0
      %3541 = vdwg.mxu0
      %3542 = vmatpush.bf16.msra.mxu0 0
      %3543 = vmatpush.bf16.msra.mxu0 0
      %3544 = vmatpush.bf16.msra.mxu0 0
      %3545 = vmatpush.bf16.msra.mxu0 0
      %3546 = vmatpush.bf16.msra.mxu0 0
      %3547 = vmatpush.bf16.msra.mxu0 0
      %3548 = vmatpush.bf16.msra.mxu0 0
      %3549 = vmatpush.bf16.msra.mxu0 %v3511
      %3550 = vmatmul.bf16.gmra.mxu0 %v3502
      %v3551 = vpop.f32.mrf.mxu0
      %v3552 = vadd.f32 0.0, %v3551
      %v3553 = vpop.f32.mrf.mxu0
      %3554 = vdwg.mxu0
      %3555 = vmatpush.bf16.msra.mxu0 0
      %3556 = vmatpush.bf16.msra.mxu0 0
      %3557 = vmatpush.bf16.msra.mxu0 0
      %3558 = vmatpush.bf16.msra.mxu0 0
      %3559 = vmatpush.bf16.msra.mxu0 0
      %3560 = vmatpush.bf16.msra.mxu0 0
      %3561 = vmatpush.bf16.msra.mxu0 0
      %3562 = vmatpush.bf16.msra.mxu0 %v3514
      %3563 = vmatmul.bf16.gmra.mxu0 %v3502
      %v3564 = vpop.f32.mrf.mxu0
      %v3565 = vadd.f32 0.0, %v3564
      %v3566 = vpop.f32.mrf.mxu0
      %3567 = vdwg.mxu0
      %v3568 = vadd.f32 %v3476, %v3526
      %v3569 = vadd.f32 %v3477, %v3539
      %v3570 = vadd.f32 %v3478, %v3552
      %v3571 = vadd.f32 %v3479, %v3565
      %3572 = vrot.lane.b32.xlu0 %v2420, 1
      %v3573 = vpop.permute.xlu0 %3572
      %3574 = vrot.lane.b32.xlu0 %v2421, 1
      %v3575 = vpop.permute.xlu0 %3574
      %3576 = vrot.lane.b32.xlu0 %v2422, 1
      %v3577 = vpop.permute.xlu0 %3576
      %3578 = vrot.lane.b32.xlu0 %v2423, 1
      %v3579 = vpop.permute.xlu0 %3578
      %v3580 = vsel %vm843, %v3577, %v3579
      %v3581 = vsel %vm843, %v3575, %v3577
      %v3582 = vsel %vm843, %v3573, %v3575
      %v3583 = vsel %vm843, %v3579, %v3573
      %v3584 = vmul.f32 %v3583, %v848
      %v3585 = vmul.f32 %v3582, %v849
      %v3586 = vmul.f32 %v3581, %v850
      %v3587 = vmul.f32 %v3580, %v851
      %v3588 = vld [vmem:[%s9 + $0xc] sm:$0xf]
      %v3589 = vpack.c.bf16 %v3584, %v3584
      %v3590 = vpack.c.bf16 %v3585, %v3585
      %v3591 = vpack.c.bf16 %v3586, %v3586
      %v3592 = vpack.c.bf16 %v3587, %v3587
      %v3594 = vsel %vm505, %v3588, 0
      %v3597 = vsel %vm509, %v3589, 0
      %v3600 = vsel %vm509, %v3590, 0
      %v3603 = vsel %vm509, %v3591, 0
      %v3606 = vsel %vm509, %v3592, 0
      %3608 = vmatpush.bf16.msra.mxu0 0
      %3609 = vmatpush.bf16.msra.mxu0 0
      %3610 = vmatpush.bf16.msra.mxu0 0
      %3611 = vmatpush.bf16.msra.mxu0 0
      %3612 = vmatpush.bf16.msra.mxu0 0
      %3613 = vmatpush.bf16.msra.mxu0 0
      %3614 = vmatpush.bf16.msra.mxu0 0
      %3615 = vmatpush.bf16.msra.mxu0 %v3597
      %3616 = vmatmul.bf16.gmra.mxu0 %v3594
      %v3617 = vpop.f32.mrf.mxu0
      %v3618 = vadd.f32 0.0, %v3617
      %v3619 = vpop.f32.mrf.mxu0
      %3620 = vdwg.mxu0
      %3621 = vmatpush.bf16.msra.mxu0 0
      %3622 = vmatpush.bf16.msra.mxu0 0
      %3623 = vmatpush.bf16.msra.mxu0 0
      %3624 = vmatpush.bf16.msra.mxu0 0
      %3625 = vmatpush.bf16.msra.mxu0 0
      %3626 = vmatpush.bf16.msra.mxu0 0
      %3627 = vmatpush.bf16.msra.mxu0 0
      %3628 = vmatpush.bf16.msra.mxu0 %v3600
      %3629 = vmatmul.bf16.gmra.mxu0 %v3594
      %v3630 = vpop.f32.mrf.mxu0
      %v3631 = vadd.f32 0.0, %v3630
      %v3632 = vpop.f32.mrf.mxu0
      %3633 = vdwg.mxu0
      %3634 = vmatpush.bf16.msra.mxu0 0
      %3635 = vmatpush.bf16.msra.mxu0 0
      %3636 = vmatpush.bf16.msra.mxu0 0
      %3637 = vmatpush.bf16.msra.mxu0 0
      %3638 = vmatpush.bf16.msra.mxu0 0
      %3639 = vmatpush.bf16.msra.mxu0 0
      %3640 = vmatpush.bf16.msra.mxu0 0
      %3641 = vmatpush.bf16.msra.mxu0 %v3603
      %3642 = vmatmul.bf16.gmra.mxu0 %v3594
      %v3643 = vpop.f32.mrf.mxu0
      %v3644 = vadd.f32 0.0, %v3643
      %v3645 = vpop.f32.mrf.mxu0
      %3646 = vdwg.mxu0
      %3647 = vmatpush.bf16.msra.mxu0 0
      %3648 = vmatpush.bf16.msra.mxu0 0
      %3649 = vmatpush.bf16.msra.mxu0 0
      %3650 = vmatpush.bf16.msra.mxu0 0
      %3651 = vmatpush.bf16.msra.mxu0 0
      %3652 = vmatpush.bf16.msra.mxu0 0
      %3653 = vmatpush.bf16.msra.mxu0 0
      %3654 = vmatpush.bf16.msra.mxu0 %v3606
      %3655 = vmatmul.bf16.gmra.mxu0 %v3594
      %v3656 = vpop.f32.mrf.mxu0
      %v3657 = vadd.f32 0.0, %v3656
      %v3658 = vpop.f32.mrf.mxu0
      %3659 = vdwg.mxu0
      %v3660 = vadd.f32 %v3568, %v3618
      %v3661 = vadd.f32 %v3569, %v3631
      %v3662 = vadd.f32 %v3570, %v3644
      %v3663 = vadd.f32 %v3571, %v3657
      %3664 = vrot.lane.b32.xlu0 %v2420, 127
      %v3665 = vpop.permute.xlu0 %3664
      %3666 = vrot.lane.b32.xlu0 %v2421, 127
      %v3667 = vpop.permute.xlu0 %3666
      %3668 = vrot.lane.b32.xlu0 %v2422, 127
      %v3669 = vpop.permute.xlu0 %3668
      %3670 = vrot.lane.b32.xlu0 %v2423, 127
      %v3671 = vpop.permute.xlu0 %3670
      %v3672 = vsel %vm940, %v3669, %v3671
      %v3673 = vsel %vm940, %v3667, %v3669
      %v3674 = vsel %vm940, %v3665, %v3667
      %v3675 = vsel %vm940, %v3671, %v3665
      %v3676 = vmul.f32 %v3674, %v945
      %v3677 = vmul.f32 %v3673, %v946
      %v3678 = vmul.f32 %v3672, %v947
      %v3679 = vmul.f32 %v3675, %v948
      %v3680 = vld [vmem:[%s9 + $0x14] sm:$0xf]
      %v3681 = vpack.c.bf16 %v3676, %v3676
      %v3682 = vpack.c.bf16 %v3677, %v3677
      %v3683 = vpack.c.bf16 %v3678, %v3678
      %v3684 = vpack.c.bf16 %v3679, %v3679
      %v3686 = vsel %vm505, %v3680, 0
      %v3689 = vsel %vm509, %v3681, 0
      %v3692 = vsel %vm509, %v3682, 0
      %v3695 = vsel %vm509, %v3683, 0
      %v3698 = vsel %vm509, %v3684, 0
      %3700 = vmatpush.bf16.msra.mxu0 0
      %3701 = vmatpush.bf16.msra.mxu0 0
      %3702 = vmatpush.bf16.msra.mxu0 0
      %3703 = vmatpush.bf16.msra.mxu0 0
      %3704 = vmatpush.bf16.msra.mxu0 0
      %3705 = vmatpush.bf16.msra.mxu0 0
      %3706 = vmatpush.bf16.msra.mxu0 0
      %3707 = vmatpush.bf16.msra.mxu0 %v3689
      %3708 = vmatmul.bf16.gmra.mxu0 %v3686
      %v3709 = vpop.f32.mrf.mxu0
      %v3710 = vadd.f32 0.0, %v3709
      %v3711 = vpop.f32.mrf.mxu0
      %3712 = vdwg.mxu0
      %3713 = vmatpush.bf16.msra.mxu0 0
      %3714 = vmatpush.bf16.msra.mxu0 0
      %3715 = vmatpush.bf16.msra.mxu0 0
      %3716 = vmatpush.bf16.msra.mxu0 0
      %3717 = vmatpush.bf16.msra.mxu0 0
      %3718 = vmatpush.bf16.msra.mxu0 0
      %3719 = vmatpush.bf16.msra.mxu0 0
      %3720 = vmatpush.bf16.msra.mxu0 %v3692
      %3721 = vmatmul.bf16.gmra.mxu0 %v3686
      %v3722 = vpop.f32.mrf.mxu0
      %v3723 = vadd.f32 0.0, %v3722
      %v3724 = vpop.f32.mrf.mxu0
      %3725 = vdwg.mxu0
      %3726 = vmatpush.bf16.msra.mxu0 0
      %3727 = vmatpush.bf16.msra.mxu0 0
      %3728 = vmatpush.bf16.msra.mxu0 0
      %3729 = vmatpush.bf16.msra.mxu0 0
      %3730 = vmatpush.bf16.msra.mxu0 0
      %3731 = vmatpush.bf16.msra.mxu0 0
      %3732 = vmatpush.bf16.msra.mxu0 0
      %3733 = vmatpush.bf16.msra.mxu0 %v3695
      %3734 = vmatmul.bf16.gmra.mxu0 %v3686
      %v3735 = vpop.f32.mrf.mxu0
      %v3736 = vadd.f32 0.0, %v3735
      %v3737 = vpop.f32.mrf.mxu0
      %3738 = vdwg.mxu0
      %3739 = vmatpush.bf16.msra.mxu0 0
      %3740 = vmatpush.bf16.msra.mxu0 0
      %3741 = vmatpush.bf16.msra.mxu0 0
      %3742 = vmatpush.bf16.msra.mxu0 0
      %3743 = vmatpush.bf16.msra.mxu0 0
      %3744 = vmatpush.bf16.msra.mxu0 0
      %3745 = vmatpush.bf16.msra.mxu0 0
      %3746 = vmatpush.bf16.msra.mxu0 %v3698
      %3747 = vmatmul.bf16.gmra.mxu0 %v3686
      %v3748 = vpop.f32.mrf.mxu0
      %v3749 = vadd.f32 0.0, %v3748
      %v3750 = vpop.f32.mrf.mxu0
      %3751 = vdwg.mxu0
      %v3752 = vadd.f32 %v3660, %v3710
      %v3753 = vadd.f32 %v3661, %v3723
      %v3754 = vadd.f32 %v3662, %v3736
      %v3755 = vadd.f32 %v3663, %v3749
      %3756 = vrot.lane.b32.xlu0 %v2420, 113
      %v3757 = vpop.permute.xlu0 %3756
      %3758 = vrot.lane.b32.xlu0 %v2421, 113
      %v3759 = vpop.permute.xlu0 %3758
      %3760 = vrot.lane.b32.xlu0 %v2422, 113
      %v3761 = vpop.permute.xlu0 %3760
      %3762 = vrot.lane.b32.xlu0 %v2423, 113
      %v3763 = vpop.permute.xlu0 %3762
      %v3764 = vsel %vm1037, %v3761, %v3763
      %v3765 = vsel %vm1037, %v3759, %v3761
      %v3766 = vsel %vm1037, %v3757, %v3759
      %v3767 = vsel %vm1037, %v3763, %v3757
      %v3768 = vmul.f32 %v3766, %v1042
      %v3769 = vmul.f32 %v3765, %v1043
      %v3770 = vmul.f32 %v3764, %v1044
      %v3771 = vmul.f32 %v3767, %v1045
      %v3772 = vld [vmem:[%s9 + $0x18] sm:$0xf]
      %v3773 = vpack.c.bf16 %v3768, %v3768
      %v3774 = vpack.c.bf16 %v3769, %v3769
      %v3775 = vpack.c.bf16 %v3770, %v3770
      %v3776 = vpack.c.bf16 %v3771, %v3771
      %v3778 = vsel %vm505, %v3772, 0
      %v3781 = vsel %vm509, %v3773, 0
      %v3784 = vsel %vm509, %v3774, 0
      %v3787 = vsel %vm509, %v3775, 0
      %v3790 = vsel %vm509, %v3776, 0
      %3792 = vmatpush.bf16.msra.mxu0 0
      %3793 = vmatpush.bf16.msra.mxu0 0
      %3794 = vmatpush.bf16.msra.mxu0 0
      %3795 = vmatpush.bf16.msra.mxu0 0
      %3796 = vmatpush.bf16.msra.mxu0 0
      %3797 = vmatpush.bf16.msra.mxu0 0
      %3798 = vmatpush.bf16.msra.mxu0 0
      %3799 = vmatpush.bf16.msra.mxu0 %v3781
      %3800 = vmatmul.bf16.gmra.mxu0 %v3778
      %v3801 = vpop.f32.mrf.mxu0
      %v3802 = vadd.f32 0.0, %v3801
      %v3803 = vpop.f32.mrf.mxu0
      %3804 = vdwg.mxu0
      %3805 = vmatpush.bf16.msra.mxu0 0
      %3806 = vmatpush.bf16.msra.mxu0 0
      %3807 = vmatpush.bf16.msra.mxu0 0
      %3808 = vmatpush.bf16.msra.mxu0 0
      %3809 = vmatpush.bf16.msra.mxu0 0
      %3810 = vmatpush.bf16.msra.mxu0 0
      %3811 = vmatpush.bf16.msra.mxu0 0
      %3812 = vmatpush.bf16.msra.mxu0 %v3784
      %3813 = vmatmul.bf16.gmra.mxu0 %v3778
      %v3814 = vpop.f32.mrf.mxu0
      %v3815 = vadd.f32 0.0, %v3814
      %v3816 = vpop.f32.mrf.mxu0
      %3817 = vdwg.mxu0
      %3818 = vmatpush.bf16.msra.mxu0 0
      %3819 = vmatpush.bf16.msra.mxu0 0
      %3820 = vmatpush.bf16.msra.mxu0 0
      %3821 = vmatpush.bf16.msra.mxu0 0
      %3822 = vmatpush.bf16.msra.mxu0 0
      %3823 = vmatpush.bf16.msra.mxu0 0
      %3824 = vmatpush.bf16.msra.mxu0 0
      %3825 = vmatpush.bf16.msra.mxu0 %v3787
      %3826 = vmatmul.bf16.gmra.mxu0 %v3778
      %v3827 = vpop.f32.mrf.mxu0
      %v3828 = vadd.f32 0.0, %v3827
      %v3829 = vpop.f32.mrf.mxu0
      %3830 = vdwg.mxu0
      %3831 = vmatpush.bf16.msra.mxu0 0
      %3832 = vmatpush.bf16.msra.mxu0 0
      %3833 = vmatpush.bf16.msra.mxu0 0
      %3834 = vmatpush.bf16.msra.mxu0 0
      %3835 = vmatpush.bf16.msra.mxu0 0
      %3836 = vmatpush.bf16.msra.mxu0 0
      %3837 = vmatpush.bf16.msra.mxu0 0
      %3838 = vmatpush.bf16.msra.mxu0 %v3790
      %3839 = vmatmul.bf16.gmra.mxu0 %v3778
      %v3840 = vpop.f32.mrf.mxu0
      %v3841 = vadd.f32 0.0, %v3840
      %v3842 = vpop.f32.mrf.mxu0
      %3843 = vdwg.mxu0
      %v3844 = vadd.f32 %v3752, %v3802
      %v3845 = vadd.f32 %v3753, %v3815
      %v3846 = vadd.f32 %v3754, %v3828
      %v3847 = vadd.f32 %v3755, %v3841
      %3848 = vrot.lane.b32.xlu0 %v2420, 112
      %v3849 = vpop.permute.xlu0 %3848
      %3850 = vrot.lane.b32.xlu0 %v2421, 112
      %v3851 = vpop.permute.xlu0 %3850
      %3852 = vrot.lane.b32.xlu0 %v2422, 112
      %v3853 = vpop.permute.xlu0 %3852
      %3854 = vrot.lane.b32.xlu0 %v2423, 112
      %v3855 = vpop.permute.xlu0 %3854
      %v3856 = vsel %vm1134, %v3853, %v3855
      %v3857 = vsel %vm1134, %v3851, %v3853
      %v3858 = vsel %vm1134, %v3849, %v3851
      %v3859 = vsel %vm1134, %v3855, %v3849
      %v3860 = vmul.f32 %v3858, %v1139
      %v3861 = vmul.f32 %v3857, %v1140
      %v3862 = vmul.f32 %v3856, %v1141
      %v3863 = vmul.f32 %v3859, %v1142
      %v3864 = vld [vmem:[%s9 + $0x1c] sm:$0xf]
      %v3865 = vpack.c.bf16 %v3860, %v3860
      %v3866 = vpack.c.bf16 %v3861, %v3861
      %v3867 = vpack.c.bf16 %v3862, %v3862
      %v3868 = vpack.c.bf16 %v3863, %v3863
      %v3870 = vsel %vm505, %v3864, 0
      %v3873 = vsel %vm509, %v3865, 0
      %v3876 = vsel %vm509, %v3866, 0
      %v3879 = vsel %vm509, %v3867, 0
      %v3882 = vsel %vm509, %v3868, 0
      %3884 = vmatpush.bf16.msra.mxu0 0
      %3885 = vmatpush.bf16.msra.mxu0 0
      %3886 = vmatpush.bf16.msra.mxu0 0
      %3887 = vmatpush.bf16.msra.mxu0 0
      %3888 = vmatpush.bf16.msra.mxu0 0
      %3889 = vmatpush.bf16.msra.mxu0 0
      %3890 = vmatpush.bf16.msra.mxu0 0
      %3891 = vmatpush.bf16.msra.mxu0 %v3873
      %3892 = vmatmul.bf16.gmra.mxu0 %v3870
      %v3893 = vpop.f32.mrf.mxu0
      %v3894 = vadd.f32 0.0, %v3893
      %v3895 = vpop.f32.mrf.mxu0
      %3896 = vdwg.mxu0
      %3897 = vmatpush.bf16.msra.mxu0 0
      %3898 = vmatpush.bf16.msra.mxu0 0
      %3899 = vmatpush.bf16.msra.mxu0 0
      %3900 = vmatpush.bf16.msra.mxu0 0
      %3901 = vmatpush.bf16.msra.mxu0 0
      %3902 = vmatpush.bf16.msra.mxu0 0
      %3903 = vmatpush.bf16.msra.mxu0 0
      %3904 = vmatpush.bf16.msra.mxu0 %v3876
      %3905 = vmatmul.bf16.gmra.mxu0 %v3870
      %v3906 = vpop.f32.mrf.mxu0
      %v3907 = vadd.f32 0.0, %v3906
      %v3908 = vpop.f32.mrf.mxu0
      %3909 = vdwg.mxu0
      %3910 = vmatpush.bf16.msra.mxu0 0
      %3911 = vmatpush.bf16.msra.mxu0 0
      %3912 = vmatpush.bf16.msra.mxu0 0
      %3913 = vmatpush.bf16.msra.mxu0 0
      %3914 = vmatpush.bf16.msra.mxu0 0
      %3915 = vmatpush.bf16.msra.mxu0 0
      %3916 = vmatpush.bf16.msra.mxu0 0
      %3917 = vmatpush.bf16.msra.mxu0 %v3879
      %3918 = vmatmul.bf16.gmra.mxu0 %v3870
      %v3919 = vpop.f32.mrf.mxu0
      %v3920 = vadd.f32 0.0, %v3919
      %v3921 = vpop.f32.mrf.mxu0
      %3922 = vdwg.mxu0
      %3923 = vmatpush.bf16.msra.mxu0 0
      %3924 = vmatpush.bf16.msra.mxu0 0
      %3925 = vmatpush.bf16.msra.mxu0 0
      %3926 = vmatpush.bf16.msra.mxu0 0
      %3927 = vmatpush.bf16.msra.mxu0 0
      %3928 = vmatpush.bf16.msra.mxu0 0
      %3929 = vmatpush.bf16.msra.mxu0 0
      %3930 = vmatpush.bf16.msra.mxu0 %v3882
      %3931 = vmatmul.bf16.gmra.mxu0 %v3870
      %v3932 = vpop.f32.mrf.mxu0
      %v3933 = vadd.f32 0.0, %v3932
      %v3934 = vpop.f32.mrf.mxu0
      %3935 = vdwg.mxu0
      %v3936 = vadd.f32 %v3844, %v3894
      %v3937 = vadd.f32 %v3845, %v3907
      %v3938 = vadd.f32 %v3846, %v3920
      %v3939 = vadd.f32 %v3847, %v3933
      %3940 = vrot.lane.b32.xlu0 %v2420, 111
      %v3941 = vpop.permute.xlu0 %3940
      %3942 = vrot.lane.b32.xlu0 %v2421, 111
      %v3943 = vpop.permute.xlu0 %3942
      %3944 = vrot.lane.b32.xlu0 %v2422, 111
      %v3945 = vpop.permute.xlu0 %3944
      %3946 = vrot.lane.b32.xlu0 %v2423, 111
      %v3947 = vpop.permute.xlu0 %3946
      %v3948 = vsel %vm1231, %v3945, %v3947
      %v3949 = vsel %vm1231, %v3943, %v3945
      %v3950 = vsel %vm1231, %v3941, %v3943
      %v3951 = vsel %vm1231, %v3947, %v3941
      %v3952 = vmul.f32 %v3950, %v1236
      %v3953 = vmul.f32 %v3949, %v1237
      %v3954 = vmul.f32 %v3948, %v1238
      %v3955 = vmul.f32 %v3951, %v1239
      %v3956 = vld [vmem:[%s9 + $0x20] sm:$0xf]
      %v3957 = vpack.c.bf16 %v3952, %v3952
      %v3958 = vpack.c.bf16 %v3953, %v3953
      %v3959 = vpack.c.bf16 %v3954, %v3954
      %v3960 = vpack.c.bf16 %v3955, %v3955
      %v3962 = vsel %vm505, %v3956, 0
      %v3965 = vsel %vm509, %v3957, 0
      %v3968 = vsel %vm509, %v3958, 0
      %v3971 = vsel %vm509, %v3959, 0
      %v3974 = vsel %vm509, %v3960, 0
      %3976 = vmatpush.bf16.msra.mxu0 0
      %3977 = vmatpush.bf16.msra.mxu0 0
      %3978 = vmatpush.bf16.msra.mxu0 0
      %3979 = vmatpush.bf16.msra.mxu0 0
      %3980 = vmatpush.bf16.msra.mxu0 0
      %3981 = vmatpush.bf16.msra.mxu0 0
      %3982 = vmatpush.bf16.msra.mxu0 0
      %3983 = vmatpush.bf16.msra.mxu0 %v3965
      %3984 = vmatmul.bf16.gmra.mxu0 %v3962
      %v3985 = vpop.f32.mrf.mxu0
      %v3986 = vadd.f32 0.0, %v3985
      %v3987 = vpop.f32.mrf.mxu0
      %3988 = vdwg.mxu0
      %3989 = vmatpush.bf16.msra.mxu0 0
      %3990 = vmatpush.bf16.msra.mxu0 0
      %3991 = vmatpush.bf16.msra.mxu0 0
      %3992 = vmatpush.bf16.msra.mxu0 0
      %3993 = vmatpush.bf16.msra.mxu0 0
      %3994 = vmatpush.bf16.msra.mxu0 0
      %3995 = vmatpush.bf16.msra.mxu0 0
      %3996 = vmatpush.bf16.msra.mxu0 %v3968
      %3997 = vmatmul.bf16.gmra.mxu0 %v3962
      %v3998 = vpop.f32.mrf.mxu0
      %v3999 = vadd.f32 0.0, %v3998
      %v4000 = vpop.f32.mrf.mxu0
      %4001 = vdwg.mxu0
      %4002 = vmatpush.bf16.msra.mxu0 0
      %4003 = vmatpush.bf16.msra.mxu0 0
      %4004 = vmatpush.bf16.msra.mxu0 0
      %4005 = vmatpush.bf16.msra.mxu0 0
      %4006 = vmatpush.bf16.msra.mxu0 0
      %4007 = vmatpush.bf16.msra.mxu0 0
      %4008 = vmatpush.bf16.msra.mxu0 0
      %4009 = vmatpush.bf16.msra.mxu0 %v3971
      %4010 = vmatmul.bf16.gmra.mxu0 %v3962
      %v4011 = vpop.f32.mrf.mxu0
      %v4012 = vadd.f32 0.0, %v4011
      %v4013 = vpop.f32.mrf.mxu0
      %4014 = vdwg.mxu0
      %4015 = vmatpush.bf16.msra.mxu0 0
      %4016 = vmatpush.bf16.msra.mxu0 0
      %4017 = vmatpush.bf16.msra.mxu0 0
      %4018 = vmatpush.bf16.msra.mxu0 0
      %4019 = vmatpush.bf16.msra.mxu0 0
      %4020 = vmatpush.bf16.msra.mxu0 0
      %4021 = vmatpush.bf16.msra.mxu0 0
      %4022 = vmatpush.bf16.msra.mxu0 %v3974
      %4023 = vmatmul.bf16.gmra.mxu0 %v3962
      %v4024 = vpop.f32.mrf.mxu0
      %v4025 = vadd.f32 0.0, %v4024
      %v4026 = vpop.f32.mrf.mxu0
      %4027 = vdwg.mxu0
      %v4028 = vadd.f32 %v3936, %v3986
      %v4029 = vadd.f32 %v3937, %v3999
      %v4030 = vadd.f32 %v3938, %v4012
      %v4031 = vadd.f32 %v3939, %v4025
      %v4032 = vadd.f32 %v3224, %v4028
      %v4033 = vadd.f32 %v3225, %v4029
      %v4034 = vadd.f32 %v3226, %v4030
      %v4035 = vadd.f32 %v3227, %v4031
      %v4036 = vld [vmem:[%s10] sm:$0xff]
      %4038 = vset.pattern.permute.xlu0 0
      %4039 = vperm.xlu0 %4038, %v4036
      %v4040 = vpop.permute.xlu0 %4039
      %v4042 = vadd.f32 %v4032, %v4040
      %v4043 = vadd.f32 %v4033, %v4040
      %v4044 = vadd.f32 %v4034, %v4040
      %v4045 = vadd.f32 %v4035, %v4040
      %v4046 = vmax.f32 %v4042, 0.0
      %v4047 = vmax.f32 %v4043, 0.0
      %v4048 = vmax.f32 %v4044, 0.0
      %v4049 = vmax.f32 %v4045, 0.0
      %v4050 = vld [vmem:[%s11] sm:$0x4]
      %v4051 = vpack.c.bf16 %v4046, %v4046
      %v4052 = vpack.c.bf16 %v4047, %v4047
      %v4053 = vpack.c.bf16 %v4048, %v4048
      %v4054 = vpack.c.bf16 %v4049, %v4049
      %4055 = vrot.lane.b32.xlu0 %v4046, 17
      %v4056 = vpop.permute.xlu0 %4055
      %4057 = vrot.lane.b32.xlu0 %v4047, 17
      %v4058 = vpop.permute.xlu0 %4057
      %4059 = vrot.lane.b32.xlu0 %v4048, 17
      %v4060 = vpop.permute.xlu0 %4059
      %4061 = vrot.lane.b32.xlu0 %v4049, 17
      %v4062 = vpop.permute.xlu0 %4061
      %v4063 = vsel %vm487, %v4060, %v4062
      %v4064 = vsel %vm487, %v4058, %v4060
      %v4065 = vsel %vm487, %v4056, %v4058
      %v4066 = vsel %vm487, %v4062, %v4056
      %v4067 = vmul.f32 %v4066, %v492
      %v4068 = vmul.f32 %v4065, %v493
      %v4069 = vmul.f32 %v4064, %v494
      %v4070 = vmul.f32 %v4063, %v495
      %v4071 = vld [vmem:[%s11] sm:$0x1]
      %v4072 = vpack.c.bf16 %v4067, %v4067
      %v4073 = vpack.c.bf16 %v4068, %v4068
      %v4074 = vpack.c.bf16 %v4069, %v4069
      %v4075 = vpack.c.bf16 %v4070, %v4070
      %v4077 = vsel %vm505, %v4071, 0
      %v4080 = vsel %vm509, %v4072, 0
      %v4083 = vsel %vm509, %v4073, 0
      %v4086 = vsel %vm509, %v4074, 0
      %v4089 = vsel %vm509, %v4075, 0
      %4091 = vmatpush.bf16.msra.mxu0 0
      %4092 = vmatpush.bf16.msra.mxu0 0
      %4093 = vmatpush.bf16.msra.mxu0 0
      %4094 = vmatpush.bf16.msra.mxu0 0
      %4095 = vmatpush.bf16.msra.mxu0 0
      %4096 = vmatpush.bf16.msra.mxu0 0
      %4097 = vmatpush.bf16.msra.mxu0 0
      %4098 = vmatpush.bf16.msra.mxu0 %v4080
      %4099 = vmatmul.bf16.gmra.mxu0 %v4077
      %v4100 = vpop.f32.mrf.mxu0
      %v4101 = vadd.f32 0.0, %v4100
      %v4102 = vpop.f32.mrf.mxu0
      %4103 = vdwg.mxu0
      %4104 = vmatpush.bf16.msra.mxu0 0
      %4105 = vmatpush.bf16.msra.mxu0 0
      %4106 = vmatpush.bf16.msra.mxu0 0
      %4107 = vmatpush.bf16.msra.mxu0 0
      %4108 = vmatpush.bf16.msra.mxu0 0
      %4109 = vmatpush.bf16.msra.mxu0 0
      %4110 = vmatpush.bf16.msra.mxu0 0
      %4111 = vmatpush.bf16.msra.mxu0 %v4083
      %4112 = vmatmul.bf16.gmra.mxu0 %v4077
      %v4113 = vpop.f32.mrf.mxu0
      %v4114 = vadd.f32 0.0, %v4113
      %v4115 = vpop.f32.mrf.mxu0
      %4116 = vdwg.mxu0
      %4117 = vmatpush.bf16.msra.mxu0 0
      %4118 = vmatpush.bf16.msra.mxu0 0
      %4119 = vmatpush.bf16.msra.mxu0 0
      %4120 = vmatpush.bf16.msra.mxu0 0
      %4121 = vmatpush.bf16.msra.mxu0 0
      %4122 = vmatpush.bf16.msra.mxu0 0
      %4123 = vmatpush.bf16.msra.mxu0 0
      %4124 = vmatpush.bf16.msra.mxu0 %v4086
      %4125 = vmatmul.bf16.gmra.mxu0 %v4077
      %v4126 = vpop.f32.mrf.mxu0
      %v4127 = vadd.f32 0.0, %v4126
      %v4128 = vpop.f32.mrf.mxu0
      %4129 = vdwg.mxu0
      %4130 = vmatpush.bf16.msra.mxu0 0
      %4131 = vmatpush.bf16.msra.mxu0 0
      %4132 = vmatpush.bf16.msra.mxu0 0
      %4133 = vmatpush.bf16.msra.mxu0 0
      %4134 = vmatpush.bf16.msra.mxu0 0
      %4135 = vmatpush.bf16.msra.mxu0 0
      %4136 = vmatpush.bf16.msra.mxu0 0
      %4137 = vmatpush.bf16.msra.mxu0 %v4089
      %4138 = vmatmul.bf16.gmra.mxu0 %v4077
      %v4139 = vpop.f32.mrf.mxu0
      %v4140 = vadd.f32 0.0, %v4139
      %v4141 = vpop.f32.mrf.mxu0
      %4142 = vdwg.mxu0
      %v4144 = vunpack.c.l.b16 %v4050
      %v4145 = vpack.c.b16 %v4144, %v4144
      %v4146 = vrot.slane %v4145, 2
      %v4148 = vsel %vm505, %v4146, 0
      %v4151 = vsel %vm509, %v4051, 0
      %v4154 = vsel %vm509, %v4052, 0
      %v4157 = vsel %vm509, %v4053, 0
      %v4160 = vsel %vm509, %v4054, 0
      %4162 = vmatpush.bf16.msra.mxu0 0
      %4163 = vmatpush.bf16.msra.mxu0 0
      %4164 = vmatpush.bf16.msra.mxu0 0
      %4165 = vmatpush.bf16.msra.mxu0 0
      %4166 = vmatpush.bf16.msra.mxu0 0
      %4167 = vmatpush.bf16.msra.mxu0 0
      %4168 = vmatpush.bf16.msra.mxu0 0
      %4169 = vmatpush.bf16.msra.mxu0 %v4151
      %4170 = vmatmul.bf16.gmra.mxu0 %v4148
      %v4171 = vpop.f32.mrf.mxu0
      %v4172 = vadd.f32 %v4101, %v4171
      %v4173 = vpop.f32.mrf.mxu0
      %4174 = vdwg.mxu0
      %4175 = vmatpush.bf16.msra.mxu0 0
      %4176 = vmatpush.bf16.msra.mxu0 0
      %4177 = vmatpush.bf16.msra.mxu0 0
      %4178 = vmatpush.bf16.msra.mxu0 0
      %4179 = vmatpush.bf16.msra.mxu0 0
      %4180 = vmatpush.bf16.msra.mxu0 0
      %4181 = vmatpush.bf16.msra.mxu0 0
      %4182 = vmatpush.bf16.msra.mxu0 %v4154
      %4183 = vmatmul.bf16.gmra.mxu0 %v4148
      %v4184 = vpop.f32.mrf.mxu0
      %v4185 = vadd.f32 %v4114, %v4184
      %v4186 = vpop.f32.mrf.mxu0
      %4187 = vdwg.mxu0
      %4188 = vmatpush.bf16.msra.mxu0 0
      %4189 = vmatpush.bf16.msra.mxu0 0
      %4190 = vmatpush.bf16.msra.mxu0 0
      %4191 = vmatpush.bf16.msra.mxu0 0
      %4192 = vmatpush.bf16.msra.mxu0 0
      %4193 = vmatpush.bf16.msra.mxu0 0
      %4194 = vmatpush.bf16.msra.mxu0 0
      %4195 = vmatpush.bf16.msra.mxu0 %v4157
      %4196 = vmatmul.bf16.gmra.mxu0 %v4148
      %v4197 = vpop.f32.mrf.mxu0
      %v4198 = vadd.f32 %v4127, %v4197
      %v4199 = vpop.f32.mrf.mxu0
      %4200 = vdwg.mxu0
      %4201 = vmatpush.bf16.msra.mxu0 0
      %4202 = vmatpush.bf16.msra.mxu0 0
      %4203 = vmatpush.bf16.msra.mxu0 0
      %4204 = vmatpush.bf16.msra.mxu0 0
      %4205 = vmatpush.bf16.msra.mxu0 0
      %4206 = vmatpush.bf16.msra.mxu0 0
      %4207 = vmatpush.bf16.msra.mxu0 0
      %4208 = vmatpush.bf16.msra.mxu0 %v4160
      %4209 = vmatmul.bf16.gmra.mxu0 %v4148
      %v4210 = vpop.f32.mrf.mxu0
      %v4211 = vadd.f32 %v4140, %v4210
      %v4212 = vpop.f32.mrf.mxu0
      %4213 = vdwg.mxu0
      %4214 = vrot.lane.b32.xlu0 %v4046, 16
      %v4215 = vpop.permute.xlu0 %4214
      %4216 = vrot.lane.b32.xlu0 %v4047, 16
      %v4217 = vpop.permute.xlu0 %4216
      %4218 = vrot.lane.b32.xlu0 %v4048, 16
      %v4219 = vpop.permute.xlu0 %4218
      %4220 = vrot.lane.b32.xlu0 %v4049, 16
      %v4221 = vpop.permute.xlu0 %4220
      %v4222 = vsel %vm649, %v4219, %v4221
      %v4223 = vsel %vm649, %v4217, %v4219
      %v4224 = vsel %vm649, %v4215, %v4217
      %v4225 = vsel %vm649, %v4221, %v4215
      %v4226 = vmul.f32 %v4225, %v654
      %v4227 = vmul.f32 %v4224, %v655
      %v4228 = vmul.f32 %v4223, %v656
      %v4229 = vmul.f32 %v4222, %v657
      %v4230 = vpack.c.bf16 %v4226, %v4226
      %v4231 = vpack.c.bf16 %v4227, %v4227
      %v4232 = vpack.c.bf16 %v4228, %v4228
      %v4233 = vpack.c.bf16 %v4229, %v4229
      %v4235 = vunpack.c.l.b16 %v4071
      %v4236 = vpack.c.b16 %v4235, %v4235
      %v4238 = vshrl.u32 %v4236, 16
      %v4241 = vsel %vm505, %v4238, 0
      %v4244 = vsel %vm509, %v4230, 0
      %v4247 = vsel %vm509, %v4231, 0
      %v4250 = vsel %vm509, %v4232, 0
      %v4253 = vsel %vm509, %v4233, 0
      %4255 = vmatpush.bf16.msra.mxu0 0
      %4256 = vmatpush.bf16.msra.mxu0 0
      %4257 = vmatpush.bf16.msra.mxu0 0
      %4258 = vmatpush.bf16.msra.mxu0 0
      %4259 = vmatpush.bf16.msra.mxu0 0
      %4260 = vmatpush.bf16.msra.mxu0 0
      %4261 = vmatpush.bf16.msra.mxu0 0
      %4262 = vmatpush.bf16.msra.mxu0 %v4244
      %4263 = vmatmul.bf16.gmra.mxu0 %v4241
      %v4264 = vpop.f32.mrf.mxu0
      %v4265 = vadd.f32 0.0, %v4264
      %v4266 = vpop.f32.mrf.mxu0
      %4267 = vdwg.mxu0
      %4268 = vmatpush.bf16.msra.mxu0 0
      %4269 = vmatpush.bf16.msra.mxu0 0
      %4270 = vmatpush.bf16.msra.mxu0 0
      %4271 = vmatpush.bf16.msra.mxu0 0
      %4272 = vmatpush.bf16.msra.mxu0 0
      %4273 = vmatpush.bf16.msra.mxu0 0
      %4274 = vmatpush.bf16.msra.mxu0 0
      %4275 = vmatpush.bf16.msra.mxu0 %v4247
      %4276 = vmatmul.bf16.gmra.mxu0 %v4241
      %v4277 = vpop.f32.mrf.mxu0
      %v4278 = vadd.f32 0.0, %v4277
      %v4279 = vpop.f32.mrf.mxu0
      %4280 = vdwg.mxu0
      %4281 = vmatpush.bf16.msra.mxu0 0
      %4282 = vmatpush.bf16.msra.mxu0 0
      %4283 = vmatpush.bf16.msra.mxu0 0
      %4284 = vmatpush.bf16.msra.mxu0 0
      %4285 = vmatpush.bf16.msra.mxu0 0
      %4286 = vmatpush.bf16.msra.mxu0 0
      %4287 = vmatpush.bf16.msra.mxu0 0
      %4288 = vmatpush.bf16.msra.mxu0 %v4250
      %4289 = vmatmul.bf16.gmra.mxu0 %v4241
      %v4290 = vpop.f32.mrf.mxu0
      %v4291 = vadd.f32 0.0, %v4290
      %v4292 = vpop.f32.mrf.mxu0
      %4293 = vdwg.mxu0
      %4294 = vmatpush.bf16.msra.mxu0 0
      %4295 = vmatpush.bf16.msra.mxu0 0
      %4296 = vmatpush.bf16.msra.mxu0 0
      %4297 = vmatpush.bf16.msra.mxu0 0
      %4298 = vmatpush.bf16.msra.mxu0 0
      %4299 = vmatpush.bf16.msra.mxu0 0
      %4300 = vmatpush.bf16.msra.mxu0 0
      %4301 = vmatpush.bf16.msra.mxu0 %v4253
      %4302 = vmatmul.bf16.gmra.mxu0 %v4241
      %v4303 = vpop.f32.mrf.mxu0
      %v4304 = vadd.f32 0.0, %v4303
      %v4305 = vpop.f32.mrf.mxu0
      %4306 = vdwg.mxu0
      %v4307 = vadd.f32 %v4172, %v4265
      %v4308 = vadd.f32 %v4185, %v4278
      %v4309 = vadd.f32 %v4198, %v4291
      %v4310 = vadd.f32 %v4211, %v4304
      %4311 = vrot.lane.b32.xlu0 %v4046, 15
      %v4312 = vpop.permute.xlu0 %4311
      %4313 = vrot.lane.b32.xlu0 %v4047, 15
      %v4314 = vpop.permute.xlu0 %4313
      %4315 = vrot.lane.b32.xlu0 %v4048, 15
      %v4316 = vpop.permute.xlu0 %4315
      %4317 = vrot.lane.b32.xlu0 %v4049, 15
      %v4318 = vpop.permute.xlu0 %4317
      %v4319 = vsel %vm746, %v4316, %v4318
      %v4320 = vsel %vm746, %v4314, %v4316
      %v4321 = vsel %vm746, %v4312, %v4314
      %v4322 = vsel %vm746, %v4318, %v4312
      %v4323 = vmul.f32 %v4322, %v751
      %v4324 = vmul.f32 %v4321, %v752
      %v4325 = vmul.f32 %v4320, %v753
      %v4326 = vmul.f32 %v4319, %v754
      %v4327 = vld [vmem:[%s11] sm:$0x2]
      %v4328 = vpack.c.bf16 %v4323, %v4323
      %v4329 = vpack.c.bf16 %v4324, %v4324
      %v4330 = vpack.c.bf16 %v4325, %v4325
      %v4331 = vpack.c.bf16 %v4326, %v4326
      %v4333 = vunpack.c.l.b16 %v4327
      %v4334 = vpack.c.b16 %v4333, %v4333
      %v4335 = vrot.slane %v4334, 1
      %v4337 = vsel %vm505, %v4335, 0
      %v4340 = vsel %vm509, %v4328, 0
      %v4343 = vsel %vm509, %v4329, 0
      %v4346 = vsel %vm509, %v4330, 0
      %v4349 = vsel %vm509, %v4331, 0
      %4351 = vmatpush.bf16.msra.mxu0 0
      %4352 = vmatpush.bf16.msra.mxu0 0
      %4353 = vmatpush.bf16.msra.mxu0 0
      %4354 = vmatpush.bf16.msra.mxu0 0
      %4355 = vmatpush.bf16.msra.mxu0 0
      %4356 = vmatpush.bf16.msra.mxu0 0
      %4357 = vmatpush.bf16.msra.mxu0 0
      %4358 = vmatpush.bf16.msra.mxu0 %v4340
      %4359 = vmatmul.bf16.gmra.mxu0 %v4337
      %v4360 = vpop.f32.mrf.mxu0
      %v4361 = vadd.f32 0.0, %v4360
      %v4362 = vpop.f32.mrf.mxu0
      %4363 = vdwg.mxu0
      %4364 = vmatpush.bf16.msra.mxu0 0
      %4365 = vmatpush.bf16.msra.mxu0 0
      %4366 = vmatpush.bf16.msra.mxu0 0
      %4367 = vmatpush.bf16.msra.mxu0 0
      %4368 = vmatpush.bf16.msra.mxu0 0
      %4369 = vmatpush.bf16.msra.mxu0 0
      %4370 = vmatpush.bf16.msra.mxu0 0
      %4371 = vmatpush.bf16.msra.mxu0 %v4343
      %4372 = vmatmul.bf16.gmra.mxu0 %v4337
      %v4373 = vpop.f32.mrf.mxu0
      %v4374 = vadd.f32 0.0, %v4373
      %v4375 = vpop.f32.mrf.mxu0
      %4376 = vdwg.mxu0
      %4377 = vmatpush.bf16.msra.mxu0 0
      %4378 = vmatpush.bf16.msra.mxu0 0
      %4379 = vmatpush.bf16.msra.mxu0 0
      %4380 = vmatpush.bf16.msra.mxu0 0
      %4381 = vmatpush.bf16.msra.mxu0 0
      %4382 = vmatpush.bf16.msra.mxu0 0
      %4383 = vmatpush.bf16.msra.mxu0 0
      %4384 = vmatpush.bf16.msra.mxu0 %v4346
      %4385 = vmatmul.bf16.gmra.mxu0 %v4337
      %v4386 = vpop.f32.mrf.mxu0
      %v4387 = vadd.f32 0.0, %v4386
      %v4388 = vpop.f32.mrf.mxu0
      %4389 = vdwg.mxu0
      %4390 = vmatpush.bf16.msra.mxu0 0
      %4391 = vmatpush.bf16.msra.mxu0 0
      %4392 = vmatpush.bf16.msra.mxu0 0
      %4393 = vmatpush.bf16.msra.mxu0 0
      %4394 = vmatpush.bf16.msra.mxu0 0
      %4395 = vmatpush.bf16.msra.mxu0 0
      %4396 = vmatpush.bf16.msra.mxu0 0
      %4397 = vmatpush.bf16.msra.mxu0 %v4349
      %4398 = vmatmul.bf16.gmra.mxu0 %v4337
      %v4399 = vpop.f32.mrf.mxu0
      %v4400 = vadd.f32 0.0, %v4399
      %v4401 = vpop.f32.mrf.mxu0
      %4402 = vdwg.mxu0
      %v4403 = vadd.f32 %v4307, %v4361
      %v4404 = vadd.f32 %v4308, %v4374
      %v4405 = vadd.f32 %v4309, %v4387
      %v4406 = vadd.f32 %v4310, %v4400
      %4407 = vrot.lane.b32.xlu0 %v4046, 1
      %v4408 = vpop.permute.xlu0 %4407
      %4409 = vrot.lane.b32.xlu0 %v4047, 1
      %v4410 = vpop.permute.xlu0 %4409
      %4411 = vrot.lane.b32.xlu0 %v4048, 1
      %v4412 = vpop.permute.xlu0 %4411
      %4413 = vrot.lane.b32.xlu0 %v4049, 1
      %v4414 = vpop.permute.xlu0 %4413
      %v4415 = vsel %vm843, %v4412, %v4414
      %v4416 = vsel %vm843, %v4410, %v4412
      %v4417 = vsel %vm843, %v4408, %v4410
      %v4418 = vsel %vm843, %v4414, %v4408
      %v4419 = vmul.f32 %v4418, %v848
      %v4420 = vmul.f32 %v4417, %v849
      %v4421 = vmul.f32 %v4416, %v850
      %v4422 = vmul.f32 %v4415, %v851
      %v4423 = vpack.c.bf16 %v4419, %v4419
      %v4424 = vpack.c.bf16 %v4420, %v4420
      %v4425 = vpack.c.bf16 %v4421, %v4421
      %v4426 = vpack.c.bf16 %v4422, %v4422
      %v4428 = vshrl.u32 %v4334, 16
      %v4430 = vrot.slane %v4428, 1
      %v4432 = vsel %vm505, %v4430, 0
      %v4435 = vsel %vm509, %v4423, 0
      %v4438 = vsel %vm509, %v4424, 0
      %v4441 = vsel %vm509, %v4425, 0
      %v4444 = vsel %vm509, %v4426, 0
      %4446 = vmatpush.bf16.msra.mxu0 0
      %4447 = vmatpush.bf16.msra.mxu0 0
      %4448 = vmatpush.bf16.msra.mxu0 0
      %4449 = vmatpush.bf16.msra.mxu0 0
      %4450 = vmatpush.bf16.msra.mxu0 0
      %4451 = vmatpush.bf16.msra.mxu0 0
      %4452 = vmatpush.bf16.msra.mxu0 0
      %4453 = vmatpush.bf16.msra.mxu0 %v4435
      %4454 = vmatmul.bf16.gmra.mxu0 %v4432
      %v4455 = vpop.f32.mrf.mxu0
      %v4456 = vadd.f32 0.0, %v4455
      %v4457 = vpop.f32.mrf.mxu0
      %4458 = vdwg.mxu0
      %4459 = vmatpush.bf16.msra.mxu0 0
      %4460 = vmatpush.bf16.msra.mxu0 0
      %4461 = vmatpush.bf16.msra.mxu0 0
      %4462 = vmatpush.bf16.msra.mxu0 0
      %4463 = vmatpush.bf16.msra.mxu0 0
      %4464 = vmatpush.bf16.msra.mxu0 0
      %4465 = vmatpush.bf16.msra.mxu0 0
      %4466 = vmatpush.bf16.msra.mxu0 %v4438
      %4467 = vmatmul.bf16.gmra.mxu0 %v4432
      %v4468 = vpop.f32.mrf.mxu0
      %v4469 = vadd.f32 0.0, %v4468
      %v4470 = vpop.f32.mrf.mxu0
      %4471 = vdwg.mxu0
      %4472 = vmatpush.bf16.msra.mxu0 0
      %4473 = vmatpush.bf16.msra.mxu0 0
      %4474 = vmatpush.bf16.msra.mxu0 0
      %4475 = vmatpush.bf16.msra.mxu0 0
      %4476 = vmatpush.bf16.msra.mxu0 0
      %4477 = vmatpush.bf16.msra.mxu0 0
      %4478 = vmatpush.bf16.msra.mxu0 0
      %4479 = vmatpush.bf16.msra.mxu0 %v4441
      %4480 = vmatmul.bf16.gmra.mxu0 %v4432
      %v4481 = vpop.f32.mrf.mxu0
      %v4482 = vadd.f32 0.0, %v4481
      %v4483 = vpop.f32.mrf.mxu0
      %4484 = vdwg.mxu0
      %4485 = vmatpush.bf16.msra.mxu0 0
      %4486 = vmatpush.bf16.msra.mxu0 0
      %4487 = vmatpush.bf16.msra.mxu0 0
      %4488 = vmatpush.bf16.msra.mxu0 0
      %4489 = vmatpush.bf16.msra.mxu0 0
      %4490 = vmatpush.bf16.msra.mxu0 0
      %4491 = vmatpush.bf16.msra.mxu0 0
      %4492 = vmatpush.bf16.msra.mxu0 %v4444
      %4493 = vmatmul.bf16.gmra.mxu0 %v4432
      %v4494 = vpop.f32.mrf.mxu0
      %v4495 = vadd.f32 0.0, %v4494
      %v4496 = vpop.f32.mrf.mxu0
      %4497 = vdwg.mxu0
      %v4498 = vadd.f32 %v4403, %v4456
      %v4499 = vadd.f32 %v4404, %v4469
      %v4500 = vadd.f32 %v4405, %v4482
      %v4501 = vadd.f32 %v4406, %v4495
      %4502 = vrot.lane.b32.xlu0 %v4046, 127
      %v4503 = vpop.permute.xlu0 %4502
      %4504 = vrot.lane.b32.xlu0 %v4047, 127
      %v4505 = vpop.permute.xlu0 %4504
      %4506 = vrot.lane.b32.xlu0 %v4048, 127
      %v4507 = vpop.permute.xlu0 %4506
      %4508 = vrot.lane.b32.xlu0 %v4049, 127
      %v4509 = vpop.permute.xlu0 %4508
      %v4510 = vsel %vm940, %v4507, %v4509
      %v4511 = vsel %vm940, %v4505, %v4507
      %v4512 = vsel %vm940, %v4503, %v4505
      %v4513 = vsel %vm940, %v4509, %v4503
      %v4514 = vmul.f32 %v4512, %v945
      %v4515 = vmul.f32 %v4511, %v946
      %v4516 = vmul.f32 %v4510, %v947
      %v4517 = vmul.f32 %v4513, %v948
      %v4518 = vpack.c.bf16 %v4514, %v4514
      %v4519 = vpack.c.bf16 %v4515, %v4515
      %v4520 = vpack.c.bf16 %v4516, %v4516
      %v4521 = vpack.c.bf16 %v4517, %v4517
      %v4523 = vshrl.u32 %v4145, 16
      %v4525 = vrot.slane %v4523, 2
      %v4527 = vsel %vm505, %v4525, 0
      %v4530 = vsel %vm509, %v4518, 0
      %v4533 = vsel %vm509, %v4519, 0
      %v4536 = vsel %vm509, %v4520, 0
      %v4539 = vsel %vm509, %v4521, 0
      %4541 = vmatpush.bf16.msra.mxu0 0
      %4542 = vmatpush.bf16.msra.mxu0 0
      %4543 = vmatpush.bf16.msra.mxu0 0
      %4544 = vmatpush.bf16.msra.mxu0 0
      %4545 = vmatpush.bf16.msra.mxu0 0
      %4546 = vmatpush.bf16.msra.mxu0 0
      %4547 = vmatpush.bf16.msra.mxu0 0
      %4548 = vmatpush.bf16.msra.mxu0 %v4530
      %4549 = vmatmul.bf16.gmra.mxu0 %v4527
      %v4550 = vpop.f32.mrf.mxu0
      %v4551 = vadd.f32 0.0, %v4550
      %v4552 = vpop.f32.mrf.mxu0
      %4553 = vdwg.mxu0
      %4554 = vmatpush.bf16.msra.mxu0 0
      %4555 = vmatpush.bf16.msra.mxu0 0
      %4556 = vmatpush.bf16.msra.mxu0 0
      %4557 = vmatpush.bf16.msra.mxu0 0
      %4558 = vmatpush.bf16.msra.mxu0 0
      %4559 = vmatpush.bf16.msra.mxu0 0
      %4560 = vmatpush.bf16.msra.mxu0 0
      %4561 = vmatpush.bf16.msra.mxu0 %v4533
      %4562 = vmatmul.bf16.gmra.mxu0 %v4527
      %v4563 = vpop.f32.mrf.mxu0
      %v4564 = vadd.f32 0.0, %v4563
      %v4565 = vpop.f32.mrf.mxu0
      %4566 = vdwg.mxu0
      %4567 = vmatpush.bf16.msra.mxu0 0
      %4568 = vmatpush.bf16.msra.mxu0 0
      %4569 = vmatpush.bf16.msra.mxu0 0
      %4570 = vmatpush.bf16.msra.mxu0 0
      %4571 = vmatpush.bf16.msra.mxu0 0
      %4572 = vmatpush.bf16.msra.mxu0 0
      %4573 = vmatpush.bf16.msra.mxu0 0
      %4574 = vmatpush.bf16.msra.mxu0 %v4536
      %4575 = vmatmul.bf16.gmra.mxu0 %v4527
      %v4576 = vpop.f32.mrf.mxu0
      %v4577 = vadd.f32 0.0, %v4576
      %v4578 = vpop.f32.mrf.mxu0
      %4579 = vdwg.mxu0
      %4580 = vmatpush.bf16.msra.mxu0 0
      %4581 = vmatpush.bf16.msra.mxu0 0
      %4582 = vmatpush.bf16.msra.mxu0 0
      %4583 = vmatpush.bf16.msra.mxu0 0
      %4584 = vmatpush.bf16.msra.mxu0 0
      %4585 = vmatpush.bf16.msra.mxu0 0
      %4586 = vmatpush.bf16.msra.mxu0 0
      %4587 = vmatpush.bf16.msra.mxu0 %v4539
      %4588 = vmatmul.bf16.gmra.mxu0 %v4527
      %v4589 = vpop.f32.mrf.mxu0
      %v4590 = vadd.f32 0.0, %v4589
      %v4591 = vpop.f32.mrf.mxu0
      %4592 = vdwg.mxu0
      %v4593 = vadd.f32 %v4498, %v4551
      %v4594 = vadd.f32 %v4499, %v4564
      %v4595 = vadd.f32 %v4500, %v4577
      %v4596 = vadd.f32 %v4501, %v4590
      %4597 = vrot.lane.b32.xlu0 %v4046, 113
      %v4598 = vpop.permute.xlu0 %4597
      %4599 = vrot.lane.b32.xlu0 %v4047, 113
      %v4600 = vpop.permute.xlu0 %4599
      %4601 = vrot.lane.b32.xlu0 %v4048, 113
      %v4602 = vpop.permute.xlu0 %4601
      %4603 = vrot.lane.b32.xlu0 %v4049, 113
      %v4604 = vpop.permute.xlu0 %4603
      %v4605 = vsel %vm1037, %v4602, %v4604
      %v4606 = vsel %vm1037, %v4600, %v4602
      %v4607 = vsel %vm1037, %v4598, %v4600
      %v4608 = vsel %vm1037, %v4604, %v4598
      %v4609 = vmul.f32 %v4607, %v1042
      %v4610 = vmul.f32 %v4606, %v1043
      %v4611 = vmul.f32 %v4605, %v1044
      %v4612 = vmul.f32 %v4608, %v1045
      %v4613 = vld [vmem:[%s11] sm:$0x8]
      %v4614 = vpack.c.bf16 %v4609, %v4609
      %v4615 = vpack.c.bf16 %v4610, %v4610
      %v4616 = vpack.c.bf16 %v4611, %v4611
      %v4617 = vpack.c.bf16 %v4612, %v4612
      %v4619 = vunpack.c.l.b16 %v4613
      %v4620 = vpack.c.b16 %v4619, %v4619
      %v4621 = vrot.slane %v4620, 3
      %v4623 = vsel %vm505, %v4621, 0
      %v4626 = vsel %vm509, %v4614, 0
      %v4629 = vsel %vm509, %v4615, 0
      %v4632 = vsel %vm509, %v4616, 0
      %v4635 = vsel %vm509, %v4617, 0
      %4637 = vmatpush.bf16.msra.mxu0 0
      %4638 = vmatpush.bf16.msra.mxu0 0
      %4639 = vmatpush.bf16.msra.mxu0 0
      %4640 = vmatpush.bf16.msra.mxu0 0
      %4641 = vmatpush.bf16.msra.mxu0 0
      %4642 = vmatpush.bf16.msra.mxu0 0
      %4643 = vmatpush.bf16.msra.mxu0 0
      %4644 = vmatpush.bf16.msra.mxu0 %v4626
      %4645 = vmatmul.bf16.gmra.mxu0 %v4623
      %v4646 = vpop.f32.mrf.mxu0
      %v4647 = vadd.f32 0.0, %v4646
      %v4648 = vpop.f32.mrf.mxu0
      %4649 = vdwg.mxu0
      %4650 = vmatpush.bf16.msra.mxu0 0
      %4651 = vmatpush.bf16.msra.mxu0 0
      %4652 = vmatpush.bf16.msra.mxu0 0
      %4653 = vmatpush.bf16.msra.mxu0 0
      %4654 = vmatpush.bf16.msra.mxu0 0
      %4655 = vmatpush.bf16.msra.mxu0 0
      %4656 = vmatpush.bf16.msra.mxu0 0
      %4657 = vmatpush.bf16.msra.mxu0 %v4629
      %4658 = vmatmul.bf16.gmra.mxu0 %v4623
      %v4659 = vpop.f32.mrf.mxu0
      %v4660 = vadd.f32 0.0, %v4659
      %v4661 = vpop.f32.mrf.mxu0
      %4662 = vdwg.mxu0
      %4663 = vmatpush.bf16.msra.mxu0 0
      %4664 = vmatpush.bf16.msra.mxu0 0
      %4665 = vmatpush.bf16.msra.mxu0 0
      %4666 = vmatpush.bf16.msra.mxu0 0
      %4667 = vmatpush.bf16.msra.mxu0 0
      %4668 = vmatpush.bf16.msra.mxu0 0
      %4669 = vmatpush.bf16.msra.mxu0 0
      %4670 = vmatpush.bf16.msra.mxu0 %v4632
      %4671 = vmatmul.bf16.gmra.mxu0 %v4623
      %v4672 = vpop.f32.mrf.mxu0
      %v4673 = vadd.f32 0.0, %v4672
      %v4674 = vpop.f32.mrf.mxu0
      %4675 = vdwg.mxu0
      %4676 = vmatpush.bf16.msra.mxu0 0
      %4677 = vmatpush.bf16.msra.mxu0 0
      %4678 = vmatpush.bf16.msra.mxu0 0
      %4679 = vmatpush.bf16.msra.mxu0 0
      %4680 = vmatpush.bf16.msra.mxu0 0
      %4681 = vmatpush.bf16.msra.mxu0 0
      %4682 = vmatpush.bf16.msra.mxu0 0
      %4683 = vmatpush.bf16.msra.mxu0 %v4635
      %4684 = vmatmul.bf16.gmra.mxu0 %v4623
      %v4685 = vpop.f32.mrf.mxu0
      %v4686 = vadd.f32 0.0, %v4685
      %v4687 = vpop.f32.mrf.mxu0
      %4688 = vdwg.mxu0
      %v4689 = vadd.f32 %v4593, %v4647
      %v4690 = vadd.f32 %v4594, %v4660
      %v4691 = vadd.f32 %v4595, %v4673
      %v4692 = vadd.f32 %v4596, %v4686
      %4693 = vrot.lane.b32.xlu0 %v4046, 112
      %v4694 = vpop.permute.xlu0 %4693
      %4695 = vrot.lane.b32.xlu0 %v4047, 112
      %v4696 = vpop.permute.xlu0 %4695
      %4697 = vrot.lane.b32.xlu0 %v4048, 112
      %v4698 = vpop.permute.xlu0 %4697
      %4699 = vrot.lane.b32.xlu0 %v4049, 112
      %v4700 = vpop.permute.xlu0 %4699
      %v4701 = vsel %vm1134, %v4698, %v4700
      %v4702 = vsel %vm1134, %v4696, %v4698
      %v4703 = vsel %vm1134, %v4694, %v4696
      %v4704 = vsel %vm1134, %v4700, %v4694
      %v4705 = vmul.f32 %v4703, %v1139
      %v4706 = vmul.f32 %v4702, %v1140
      %v4707 = vmul.f32 %v4701, %v1141
      %v4708 = vmul.f32 %v4704, %v1142
      %v4709 = vpack.c.bf16 %v4705, %v4705
      %v4710 = vpack.c.bf16 %v4706, %v4706
      %v4711 = vpack.c.bf16 %v4707, %v4707
      %v4712 = vpack.c.bf16 %v4708, %v4708
      %v4714 = vshrl.u32 %v4620, 16
      %v4716 = vrot.slane %v4714, 3
      %v4718 = vsel %vm505, %v4716, 0
      %v4721 = vsel %vm509, %v4709, 0
      %v4724 = vsel %vm509, %v4710, 0
      %v4727 = vsel %vm509, %v4711, 0
      %v4730 = vsel %vm509, %v4712, 0
      %4732 = vmatpush.bf16.msra.mxu0 0
      %4733 = vmatpush.bf16.msra.mxu0 0
      %4734 = vmatpush.bf16.msra.mxu0 0
      %4735 = vmatpush.bf16.msra.mxu0 0
      %4736 = vmatpush.bf16.msra.mxu0 0
      %4737 = vmatpush.bf16.msra.mxu0 0
      %4738 = vmatpush.bf16.msra.mxu0 0
      %4739 = vmatpush.bf16.msra.mxu0 %v4721
      %4740 = vmatmul.bf16.gmra.mxu0 %v4718
      %v4741 = vpop.f32.mrf.mxu0
      %v4742 = vadd.f32 0.0, %v4741
      %v4743 = vpop.f32.mrf.mxu0
      %4744 = vdwg.mxu0
      %4745 = vmatpush.bf16.msra.mxu0 0
      %4746 = vmatpush.bf16.msra.mxu0 0
      %4747 = vmatpush.bf16.msra.mxu0 0
      %4748 = vmatpush.bf16.msra.mxu0 0
      %4749 = vmatpush.bf16.msra.mxu0 0
      %4750 = vmatpush.bf16.msra.mxu0 0
      %4751 = vmatpush.bf16.msra.mxu0 0
      %4752 = vmatpush.bf16.msra.mxu0 %v4724
      %4753 = vmatmul.bf16.gmra.mxu0 %v4718
      %v4754 = vpop.f32.mrf.mxu0
      %v4755 = vadd.f32 0.0, %v4754
      %v4756 = vpop.f32.mrf.mxu0
      %4757 = vdwg.mxu0
      %4758 = vmatpush.bf16.msra.mxu0 0
      %4759 = vmatpush.bf16.msra.mxu0 0
      %4760 = vmatpush.bf16.msra.mxu0 0
      %4761 = vmatpush.bf16.msra.mxu0 0
      %4762 = vmatpush.bf16.msra.mxu0 0
      %4763 = vmatpush.bf16.msra.mxu0 0
      %4764 = vmatpush.bf16.msra.mxu0 0
      %4765 = vmatpush.bf16.msra.mxu0 %v4727
      %4766 = vmatmul.bf16.gmra.mxu0 %v4718
      %v4767 = vpop.f32.mrf.mxu0
      %v4768 = vadd.f32 0.0, %v4767
      %v4769 = vpop.f32.mrf.mxu0
      %4770 = vdwg.mxu0
      %4771 = vmatpush.bf16.msra.mxu0 0
      %4772 = vmatpush.bf16.msra.mxu0 0
      %4773 = vmatpush.bf16.msra.mxu0 0
      %4774 = vmatpush.bf16.msra.mxu0 0
      %4775 = vmatpush.bf16.msra.mxu0 0
      %4776 = vmatpush.bf16.msra.mxu0 0
      %4777 = vmatpush.bf16.msra.mxu0 0
      %4778 = vmatpush.bf16.msra.mxu0 %v4730
      %4779 = vmatmul.bf16.gmra.mxu0 %v4718
      %v4780 = vpop.f32.mrf.mxu0
      %v4781 = vadd.f32 0.0, %v4780
      %v4782 = vpop.f32.mrf.mxu0
      %4783 = vdwg.mxu0
      %v4784 = vadd.f32 %v4689, %v4742
      %v4785 = vadd.f32 %v4690, %v4755
      %v4786 = vadd.f32 %v4691, %v4768
      %v4787 = vadd.f32 %v4692, %v4781
      %4788 = vrot.lane.b32.xlu0 %v4046, 111
      %v4789 = vpop.permute.xlu0 %4788
      %4790 = vrot.lane.b32.xlu0 %v4047, 111
      %v4791 = vpop.permute.xlu0 %4790
      %4792 = vrot.lane.b32.xlu0 %v4048, 111
      %v4793 = vpop.permute.xlu0 %4792
      %4794 = vrot.lane.b32.xlu0 %v4049, 111
      %v4795 = vpop.permute.xlu0 %4794
      %v4796 = vsel %vm1231, %v4793, %v4795
      %v4797 = vsel %vm1231, %v4791, %v4793
      %v4798 = vsel %vm1231, %v4789, %v4791
      %v4799 = vsel %vm1231, %v4795, %v4789
      %v4800 = vmul.f32 %v4798, %v1236
      %v4801 = vmul.f32 %v4797, %v1237
      %v4802 = vmul.f32 %v4796, %v1238
      %v4803 = vmul.f32 %v4799, %v1239
      %v4804 = vld [vmem:[%s11 + $0x4] sm:$0x1]
      %v4805 = vpack.c.bf16 %v4800, %v4800
      %v4806 = vpack.c.bf16 %v4801, %v4801
      %v4807 = vpack.c.bf16 %v4802, %v4802
      %v4808 = vpack.c.bf16 %v4803, %v4803
      %v4810 = vsel %vm505, %v4804, 0
      %v4813 = vsel %vm509, %v4805, 0
      %v4816 = vsel %vm509, %v4806, 0
      %v4819 = vsel %vm509, %v4807, 0
      %v4822 = vsel %vm509, %v4808, 0
      %4824 = vmatpush.bf16.msra.mxu0 0
      %4825 = vmatpush.bf16.msra.mxu0 0
      %4826 = vmatpush.bf16.msra.mxu0 0
      %4827 = vmatpush.bf16.msra.mxu0 0
      %4828 = vmatpush.bf16.msra.mxu0 0
      %4829 = vmatpush.bf16.msra.mxu0 0
      %4830 = vmatpush.bf16.msra.mxu0 0
      %4831 = vmatpush.bf16.msra.mxu0 %v4813
      %4832 = vmatmul.bf16.gmra.mxu0 %v4810
      %v4833 = vpop.f32.mrf.mxu0
      %v4834 = vadd.f32 0.0, %v4833
      %v4835 = vpop.f32.mrf.mxu0
      %4836 = vdwg.mxu0
      %4837 = vmatpush.bf16.msra.mxu0 0
      %4838 = vmatpush.bf16.msra.mxu0 0
      %4839 = vmatpush.bf16.msra.mxu0 0
      %4840 = vmatpush.bf16.msra.mxu0 0
      %4841 = vmatpush.bf16.msra.mxu0 0
      %4842 = vmatpush.bf16.msra.mxu0 0
      %4843 = vmatpush.bf16.msra.mxu0 0
      %4844 = vmatpush.bf16.msra.mxu0 %v4816
      %4845 = vmatmul.bf16.gmra.mxu0 %v4810
      %v4846 = vpop.f32.mrf.mxu0
      %v4847 = vadd.f32 0.0, %v4846
      %v4848 = vpop.f32.mrf.mxu0
      %4849 = vdwg.mxu0
      %4850 = vmatpush.bf16.msra.mxu0 0
      %4851 = vmatpush.bf16.msra.mxu0 0
      %4852 = vmatpush.bf16.msra.mxu0 0
      %4853 = vmatpush.bf16.msra.mxu0 0
      %4854 = vmatpush.bf16.msra.mxu0 0
      %4855 = vmatpush.bf16.msra.mxu0 0
      %4856 = vmatpush.bf16.msra.mxu0 0
      %4857 = vmatpush.bf16.msra.mxu0 %v4819
      %4858 = vmatmul.bf16.gmra.mxu0 %v4810
      %v4859 = vpop.f32.mrf.mxu0
      %v4860 = vadd.f32 0.0, %v4859
      %v4861 = vpop.f32.mrf.mxu0
      %4862 = vdwg.mxu0
      %4863 = vmatpush.bf16.msra.mxu0 0
      %4864 = vmatpush.bf16.msra.mxu0 0
      %4865 = vmatpush.bf16.msra.mxu0 0
      %4866 = vmatpush.bf16.msra.mxu0 0
      %4867 = vmatpush.bf16.msra.mxu0 0
      %4868 = vmatpush.bf16.msra.mxu0 0
      %4869 = vmatpush.bf16.msra.mxu0 0
      %4870 = vmatpush.bf16.msra.mxu0 %v4822
      %4871 = vmatmul.bf16.gmra.mxu0 %v4810
      %v4872 = vpop.f32.mrf.mxu0
      %v4873 = vadd.f32 0.0, %v4872
      %v4874 = vpop.f32.mrf.mxu0
      %4875 = vdwg.mxu0
      %v4876 = vadd.f32 %v4784, %v4834
      %v4877 = vadd.f32 %v4785, %v4847
      %v4878 = vadd.f32 %v4786, %v4860
      %v4879 = vadd.f32 %v4787, %v4873
      %v4880 = vld [vmem:[#allocation2] sm:$0x1]
      %4882 = vset.pattern.permute.xlu0 0
      %4883 = vperm.xlu0 %4882, %v4880
      %v4884 = vpop.permute.xlu0 %4883
      %v4886 = vperm.slane %v4884, 0
      %v4887 = vadd.f32 %v4876, %v4886
      %v4888 = vadd.f32 %v4877, %v4886
      %v4889 = vadd.f32 %v4878, %v4886
      %v4890 = vadd.f32 %v4879, %v4886
      %v4891 = vmul.f32 %v4887, 1.442695
      %v4892 = vpow.pop %v4891
      %v4893 = vmul.f32 %v4888, 1.442695
      %v4894 = vpow.pop %v4893
      %v4895 = vmul.f32 %v4889, 1.442695
      %v4896 = vpow.pop %v4895
      %v4897 = vmul.f32 %v4890, 1.442695
      %v4898 = vpow.pop %v4897
      %v4899 = vadd.f32 %v4892, 1.0
      %v4900 = vadd.f32 %v4894, 1.0
      %v4901 = vadd.f32 %v4896, 1.0
      %v4902 = vadd.f32 %v4898, 1.0
      %v4903 = vrcp.pop %v4899
      %v4904 = vmul.f32 %v4899, %v4903
      %v4905 = vsub.f32 1.0, %v4904
      %v4906 = vmul.f32 %v4903, %v4905
      %v4907 = vadd.f32 %v4903, %v4906
      %vm4908 = vweird.f32 %v4899
      %vm4909 = vweird.f32 %v4903
      %vm4910 = vmor %vm4908, %vm4909
      %v4911 = vsel %vm4910, %v4903, %v4907
      %v4912 = vand.u32 2147483647, %v4899
      %vm4913 = vcmp.eq.f32.partialorder %v4912, 8.507059e+37
      %v4914 = vand.u32 %v4899, 2147483648
      %v4915 = vor.u32 1.1754944e-38, %v4914
      %v4916 = vsel %vm4913, %v4915, %v4911
      %v4917 = vrcp.pop %v4900
      %v4918 = vmul.f32 %v4900, %v4917
      %v4919 = vsub.f32 1.0, %v4918
      %v4920 = vmul.f32 %v4917, %v4919
      %v4921 = vadd.f32 %v4917, %v4920
      %vm4922 = vweird.f32 %v4900
      %vm4923 = vweird.f32 %v4917
      %vm4924 = vmor %vm4922, %vm4923
      %v4925 = vsel %vm4924, %v4917, %v4921
      %v4926 = vand.u32 2147483647, %v4900
      %vm4927 = vcmp.eq.f32.partialorder %v4926, 8.507059e+37
      %v4928 = vand.u32 %v4900, 2147483648
      %v4929 = vor.u32 1.1754944e-38, %v4928
      %v4930 = vsel %vm4927, %v4929, %v4925
      %v4931 = vrcp.pop %v4901
      %v4932 = vmul.f32 %v4901, %v4931
      %v4933 = vsub.f32 1.0, %v4932
      %v4934 = vmul.f32 %v4931, %v4933
      %v4935 = vadd.f32 %v4931, %v4934
      %vm4936 = vweird.f32 %v4901
      %vm4937 = vweird.f32 %v4931
      %vm4938 = vmor %vm4936, %vm4937
      %v4939 = vsel %vm4938, %v4931, %v4935
      %v4940 = vand.u32 2147483647, %v4901
      %vm4941 = vcmp.eq.f32.partialorder %v4940, 8.507059e+37
      %v4942 = vand.u32 %v4901, 2147483648
      %v4943 = vor.u32 1.1754944e-38, %v4942
      %v4944 = vsel %vm4941, %v4943, %v4939
      %v4945 = vrcp.pop %v4902
      %v4946 = vmul.f32 %v4902, %v4945
      %v4947 = vsub.f32 1.0, %v4946
      %v4948 = vmul.f32 %v4945, %v4947
      %v4949 = vadd.f32 %v4945, %v4948
      %vm4950 = vweird.f32 %v4902
      %vm4951 = vweird.f32 %v4945
      %vm4952 = vmor %vm4950, %vm4951
      %v4953 = vsel %vm4952, %v4945, %v4949
      %v4954 = vand.u32 2147483647, %v4902
      %vm4955 = vcmp.eq.f32.partialorder %v4954, 8.507059e+37
      %v4956 = vand.u32 %v4902, 2147483648
      %v4957 = vor.u32 1.1754944e-38, %v4956
      %v4958 = vsel %vm4955, %v4957, %v4953
      %v4959 = vsub.f32 %v1330, %v2420
      %v4960 = vsub.f32 %v1331, %v2421
      %v4961 = vsub.f32 %v1332, %v2422
      %v4962 = vsub.f32 %v1333, %v2423
      %v4963 = vperm.slane %v4916, 0
      %v4964 = vperm.slane %v4930, 0
      %v4965 = vperm.slane %v4944, 0
      %v4966 = vperm.slane %v4958, 0
      %v4967 = vmul.f32 %v4959, %v4963
      %v4968 = vmul.f32 %v4960, %v4964
      %v4969 = vmul.f32 %v4961, %v4965
      %v4970 = vmul.f32 %v4962, %v4966
      %v4971 = vadd.f32 %v2420, %v4967
      %v4972 = vadd.f32 %v2421, %v4968
      %v4973 = vadd.f32 %v2422, %v4969
      %v4974 = vadd.f32 %v2423, %v4970
      %4975 = vst [vmem:[%s462] sm:$0xff] %v4971
      %4976 = vst [vmem:[%s462 + $0x8] sm:$0xff] %v4972
      %4977 = vst [vmem:[%s462 + $0x10] sm:$0xff] %v4973
      %4978 = vst [vmem:[%s462 + $0x18] sm:$0xff] %v4974
      %p4979 = scmp.lt.s32.totalorder %s26, 1
      %s4980 = scalar_select %p4979, %s26, 1
      %s4981 = smul.addr %s4980, 4
      %s4982 = smul.addr %s4981, 8
      %s4983 = scalar_lea.vmem %s13, %s4982
      // Predicated region
      $region73: #{att_merge_forward.1} parent=71 // pred_check
        %p4984 = pneg %p327
      $region74: #{att_merge_forward.1} parent=71 // pred_check_branch
        %4986 = sbr.rel (%p4984) target = $region76
      $region75: #{att_merge_forward.1} parent=71 // pred_region
        _
      $region76: #{att_merge_forward.1} parent=71 // pred_fallthru
        _
    $region72: #{att_merge_forward.1} parent=5 // pred_fallthru
      _
    %p4987 = scmp.le.s32.totalorder 2, %s21
    // Predicated region
    $region77: #{att_merge_forward.1} parent=5 // pred_check
      %p4988 = pneg %p4987
    $region78: #{att_merge_forward.1} parent=5 // pred_check_branch
      %4990 = sbr.rel (%p4988) target = $region80
    $region79: #{att_merge_forward.1} parent=5 // pred_region
      %s4991 = ssub.s32 %s21, 2
      // Predicated region
      $region81: #{att_merge_forward.1} parent=79 // pred_check
        %p4992 = pneg %p333
      $region82: #{att_merge_forward.1} parent=79 // pred_check_branch
        %4994 = sbr.rel (%p4992) target = $region84
      $region83: #{att_merge_forward.1} parent=79 // pred_region
        %p4995 = scmp.lt.s32.totalorder %s27, 1
        %s4996 = scalar_select %p4995, %s27, 1
        %s4997 = smul.addr %s4996, 4
        %s4998 = smul.addr %s4997, 8
        %s4999 = scalar_lea.vmem %s13, %s4998
      $region84: #{att_merge_forward.1} parent=79 // pred_fallthru
        _
    $region80: #{att_merge_forward.1} parent=5 // pred_fallthru
      _
  $region6: #{att_merge_forward.1} parent=0 // loop_footer
    %s25 = sadd.s32 1, %s21
  $region7: #{att_merge_forward.1} parent=0 // loop_footer_branch
    %20 = sbr.rel target = $region3
  $region8: #{att_merge_forward.1} parent=0 // loop_exit
    _

</llo_original>
